<compile_context>
chip_gen: v6e
topology: v6e:2x2x1
jax: 0.10.0
libtpu: 0.0.40
codegen_flags: <defaults>
</compile_context>

<pallas_src>
import numpy as np
import jax
import jax.numpy as jnp
from jax import lax
from jax.experimental import pallas as pl
from jax.experimental.pallas import tpu as pltpu


def _round_up(x, m):
    return ((x + m - 1) // m) * m


# ----------------------------- fused Pallas kernel --------------------------
def _fused_cnn_kernel(x_ref,
                      bd1_ref, b1_ref,
                      p2_ref, bd2_ref, b2_ref,
                      p3_ref, bd3_ref, b3_ref,
                      o_ref):
    """conv1+ReLU -> conv2+ReLU -> conv3+ReLU, activations resident in VMEM/vregs."""

    # ---- layer 1: H-gather folded host-side into x_ref's leading (kh) axis ----
    acc = None
    for kh in range(x_ref.shape[0]):                       # unrolled: 5
        term = jnp.dot(x_ref[kh], bd1_ref[kh],             # bf16 x bf16 -> f32 acc
                       preferred_element_type=jnp.float32)
        acc = term if acc is None else acc + term
    h = jnp.maximum(acc + b1_ref[...], 0.0)                # f32 add/ReLU (v5e VPU has no bf16)

    # ---- layers 2 & 3: tiny 0/1 row-selection P + block-diagonal lane mix BD ----
    def layer(act_f32, p_ref, bd_ref, bias_ref):
        act = act_f32.astype(jnp.bfloat16)                 # bf16 operands, f32 accumulation
        acc = None
        for kh in range(p_ref.shape[0]):                   # unrolled: 3
            rows = jnp.dot(p_ref[kh], act,                 # exact 0/1 selection
                           preferred_element_type=jnp.float32)
            term = jnp.dot(rows.astype(jnp.bfloat16), bd_ref[kh],
                           preferred_element_type=jnp.float32)
            acc = term if acc is None else acc + term
        return jnp.maximum(acc + bias_ref[...], 0.0)

    h = layer(h, p2_ref, bd2_ref, b2_ref)
    h = layer(h, p3_ref, bd3_ref, b3_ref)
    o_ref[...] = h.astype(o_ref.dtype)


# ----------------------------- wrapper glue ---------------------------------
def _layer_matrices(w_oihw, bias, B, H_in, W_in, H_out, W_out, k, stride, pad,
                    lin_pad, lout_pad, build_p=True):
    """Row-selection (P, optional), lane-mixing (BD) and bias-row operands for one conv layer.

    Lane dims are built at the padded widths lin_pad >= W_in*Cin, lout_pad >= W_out*Cout so the
    kernel works on lane-dense (multiple-of-128) activations.
    """
    assert stride == k, "this module only uses stride == kernel_size convs"
    Cout, Cin, KH, KW = w_oihw.shape
    assert KH == KW == k

    # PyTorch's transpose(1,3) in/out == NHWC conv on the raw input with the kernel's
    # spatial axes swapped: w_eff[kh, kw, cin, cout] = w_oihw[cout, cin, kw, kh]
    w_eff = jnp.transpose(w_oihw, (3, 2, 1, 0)).astype(jnp.float32)
    block = w_eff.reshape(k, k * Cin, Cout)                      # per-kh [(kw, cin), cout]

    # BD[kh][v_in*Cin + c, v_out*Cout + o] = w_eff[kh, kw, c, o], v_in = v_out*k + kw - pad
    eye = jnp.eye(W_out, dtype=jnp.float32)
    bdpad = jnp.einsum("ij,kab->kiajb", eye, block)              # [k, W_out, k*Cin, W_out, Cout]
    bdpad = bdpad.reshape(k, W_out * k * Cin, W_out * Cout)      # rows indexed by padded column
    bd = jnp.zeros((k, lin_pad, lout_pad), jnp.float32)
    n_valid = min(W_out * k - pad, W_in)                         # original columns actually read
    bd = bd.at[:, : n_valid * Cin, : W_out * Cout].set(
        bdpad[:, pad * Cin:(pad + n_valid) * Cin, :])
    bd = bd.astype(jnp.bfloat16)

    # Bias replicated per output column; zero in the padded lanes.
    bias_row = jnp.zeros((1, lout_pad), jnp.float32)
    bias_row = bias_row.at[0, : W_out * Cout].set(jnp.tile(bias.astype(jnp.float32), W_out))

    p = None
    if build_p:
        # P[kh][b*H_out + u_out, b*H_in + u_in] = 1, u_in = u_out*k + kh - pad (when in range).
        # Shape-only -> baked as a compile-time constant (numpy at trace time).  bf16 is exact.
        pm = np.zeros((k, B * H_out, B * H_in), np.float32)
        for kh in range(k):
            for b in range(B):
                for uo in range(H_out):
                    ui = uo * k + kh - pad
                    if 0 <= ui < H_in:
                        pm[kh, b * H_out + uo, b * H_in + ui] = 1.0
        p = jnp.asarray(pm, dtype=jnp.bfloat16)

    return p, bd, bias_row


def downsampling_convnet_forward(input_images, params):
    """Equivalent of DownSamplingConvolutionalNet.forward (inference)."""
    x = input_images.astype(jnp.float32)
    B, H, W, Cin = x.shape
    C = params["b1"].shape[0]

    H1, W1 = (H - 5) // 5 + 1, (W - 5) // 5 + 1          # conv1: k=5, s=5, p=0
    H2, W2 = (H1 - 3) // 3 + 1, (W1 - 3) // 3 + 1        # conv2: k=3, s=3, p=0
    H3, W3 = (H2 - 1) // 3 + 1, (W2 - 1) // 3 + 1        # conv3: k=3, s=3, p=1

    # Lane-dense (multiple-of-128) widths for every activation.
    L1i = _round_up(W * Cin, 128)
    L1o = _round_up(W1 * C, 128)
    L2o = _round_up(W2 * C, 128)
    L3o = _round_up(W3 * C, 128)

    _, bd1, bias1 = _layer_matrices(params["w1"], params["b1"], B, H, W, H1, W1,
                                    5, 5, 0, L1i, L1o, build_p=False)
    p2, bd2, bias2 = _layer_matrices(params["w2"], params["b2"], B, H1, W1, H2, W2,
                                     3, 3, 0, L1o, L2o)
    p3, bd3, bias3 = _layer_matrices(params["w3"], params["b3"], B, H2, W2, H3, W3,
                                     3, 3, 1, L2o, L3o)

    # Layer-1 row gather (stride == kernel, pad == 0) is a pure reshape -> done host-side, so
    # the kernel never multiplies by a [B*H1, B*H] selection matrix.
    x_rows = x[:, :H1 * 5].reshape(B, H1, 5, W * Cin)             # [B, H1, 5, W*Cin]
    x_slab = jnp.transpose(x_rows, (2, 0, 1, 3)).reshape(5, B * H1, W * Cin)
    x_slab = jnp.pad(x_slab, ((0, 0), (0, 0), (0, L1i - W * Cin))).astype(jnp.bfloat16)

    operands = (x_slab, bd1, bias1, p2, bd2, bias2, p3, bd3, bias3)

    flops = 2 * (5 * (B * H1) * L1i * L1o
                 + 3 * ((B * H2) * (B * H1) * L1o + (B * H2) * L1o * L2o)
                 + 3 * ((B * H3) * (B * H2) * L2o + (B * H3) * L2o * L3o))
    bytes_accessed = sum(int(np.prod(a.shape)) * a.dtype.itemsize for a in operands) \
        + (B * H3) * L3o * 4
    cost = pl.CostEstimate(flops=flops, transcendentals=0, bytes_accessed=bytes_accessed)

    vmem = pl.BlockSpec(memory_space=pltpu.MemorySpace.VMEM)
    out2d = pl.pallas_call(
        _fused_cnn_kernel,
        out_shape=jax.ShapeDtypeStruct((B * H3, L3o), jnp.float32),
        in_specs=[vmem] * len(operands),
        out_specs=vmem,
        cost_estimate=cost,
        # TODO(synk): add pltpu.CompilerParams(vmem_limit_bytes=...) once operands grow.
    )(*operands)

    return out2d[:, : W3 * C].reshape(B, H3, W3, C)


def init_params(key, num_channels, num_conv_channels):
    """Deterministic Kaiming-uniform-style init matching nn.Conv2d parameter shapes."""
    ks = jax.random.split(key, 6)

    def conv_init(kw, kb, cout, cin, k):
        fan_in = cin * k * k
        bound = 1.0 / (fan_in ** 0.5)
        w = jax.random.uniform(kw, (cout, cin, k, k), jnp.float32, -bound, bound)
        b = jax.random.uniform(kb, (cout,), jnp.float32, -bound, bound)
        return w, b

    w1, b1 = conv_init(ks[0], ks[1], num_conv_channels, num_channels, 5)
    w2, b2 = conv_init(ks[2], ks[3], num_conv_channels, num_conv_channels, 3)
    w3, b3 = conv_init(ks[4], ks[5], num_conv_channels, num_conv_channels, 3)
    return dict(w1=w1, b1=b1, w2=w2, b2=b2, w3=w3, b3=b3)


# ------------------------- pure-JAX reference --------------------------------
def _ref_forward(input_images, params):
    """Literal transcription of the PyTorch forward (NCHW path), for verification."""
    x = jnp.transpose(input_images.astype(jnp.float32), (0, 3, 2, 1))   # .transpose(1, 3)

    def conv(x, w, b, s, p):
        y = lax.conv_general_dilated(
            x, w, window_strides=(s, s), padding=[(p, p), (p, p)],
            dimension_numbers=("NCHW", "OIHW", "NCHW"),
            precision=lax.Precision.HIGHEST)
        return jnp.maximum(y + b[None, :, None, None], 0.0)

    x = conv(x, params["w1"], params["b1"], 5, 0)
    x = conv(x, params["w2"], params["b2"], 3, 0)
    x = conv(x, params["w3"], params["b3"], 3, 1)
    Bsz, C, _, dim = x.shape
    x = jnp.transpose(x, (0, 3, 2, 1))                                   # .transpose(1, 3)
    return x.reshape(Bsz, dim, dim, C)


if __name__ == "__main__":
    num_conv_channels = 8
    fwd = jax.jit(downsampling_convnet_forward)

    # Two shapes: (a) the 90->18->6->2 case, (b) a 62->12->4->2 case that exercises the
    # "window overhangs the input" branches of the conv3 pad=1 construction and the
    # layer-1 row truncation (H1*5 < H).
    for (B, W, C_in) in [(2, 90, 3), (1, 62, 3)]:
        key = jax.random.PRNGKey(0)
        k_x, k_p = jax.random.split(key)
        input_images = jax.random.normal(k_x, (B, W, W, C_in), jnp.float32)
        params = init_params(k_p, C_in, num_conv_channels)

        out = jax.block_until_ready(fwd(input_images, params))
        ref = jax.block_until_ready(_ref_forward(input_images, params))

        assert out.shape == ref.shape, (out.shape, ref.shape)
        max_err = float(jnp.max(jnp.abs(out - ref)))
        # bf16 matmul operands with f32 accumulation over 3 chained layers -> loosened tolerance.
        assert jnp.allclose(out, ref, atol=5e-2, rtol=5e-2), max_err

    print("KERNEL_OK")
</pallas_src>

<mosaic_0001>
module attributes {stable_mosaic.version = 11 : i64} {
  func.func @_fused_cnn_kernel(%arg0: memref<5x36x384xbf16, #tpu.memory_space<vmem>>, %arg1: memref<5x384x256xbf16, #tpu.memory_space<vmem>>, %arg2: memref<1x256xf32, #tpu.memory_space<vmem>>, %arg3: memref<3x12x36xbf16, #tpu.memory_space<vmem>>, %arg4: memref<3x256x128xbf16, #tpu.memory_space<vmem>>, %arg5: memref<1x128xf32, #tpu.memory_space<vmem>>, %arg6: memref<3x4x12xbf16, #tpu.memory_space<vmem>>, %arg7: memref<3x128x128xbf16, #tpu.memory_space<vmem>>, %arg8: memref<1x128xf32, #tpu.memory_space<vmem>>, %arg9: memref<4x128xf32, #tpu.memory_space<vmem>>) attributes {dimension_semantics = [], scalar_prefetch = 0 : i64, scratch_operands = 0 : i64, tpu.core_type = #tpu.core_type<tc>} {
    %c0 = arith.constant 0 : index
    %c0_0 = arith.constant 0 : index
    %c0_1 = arith.constant 0 : index
    %0 = vector.load %arg0[%c0, %c0_0, %c0_1] : memref<5x36x384xbf16, #tpu.memory_space<vmem>>, vector<1x36x384xbf16>
    %1 = vector.shape_cast %0 : vector<1x36x384xbf16> to vector<36x384xbf16>
    %c0_2 = arith.constant 0 : index
    %c0_3 = arith.constant 0 : index
    %c0_4 = arith.constant 0 : index
    %2 = vector.load %arg1[%c0_2, %c0_3, %c0_4] : memref<5x384x256xbf16, #tpu.memory_space<vmem>>, vector<1x384x256xbf16>
    %3 = vector.shape_cast %2 : vector<1x384x256xbf16> to vector<384x256xbf16>
    %cst = arith.constant dense<0.000000e+00> : vector<36x256xf32>
    %4 = tpu.matmul %1, %3, %cst {dimension_numbers = #tpu.dot_dimension_numbers<[1], [0], [0], [1], [0, 0, 1, 1], [], []>} : vector<36x384xbf16>, vector<384x256xbf16>, vector<36x256xf32> -> vector<36x256xf32>
    %c1 = arith.constant 1 : index
    %c0_5 = arith.constant 0 : index
    %c0_6 = arith.constant 0 : index
    %5 = vector.load %arg0[%c1, %c0_5, %c0_6] : memref<5x36x384xbf16, #tpu.memory_space<vmem>>, vector<1x36x384xbf16>
    %6 = vector.shape_cast %5 : vector<1x36x384xbf16> to vector<36x384xbf16>
    %c1_7 = arith.constant 1 : index
    %c0_8 = arith.constant 0 : index
    %c0_9 = arith.constant 0 : index
    %7 = vector.load %arg1[%c1_7, %c0_8, %c0_9] : memref<5x384x256xbf16, #tpu.memory_space<vmem>>, vector<1x384x256xbf16>
    %8 = vector.shape_cast %7 : vector<1x384x256xbf16> to vector<384x256xbf16>
    %cst_10 = arith.constant dense<0.000000e+00> : vector<36x256xf32>
    %9 = tpu.matmul %6, %8, %cst_10 {dimension_numbers = #tpu.dot_dimension_numbers<[1], [0], [0], [1], [0, 0, 1, 1], [], []>} : vector<36x384xbf16>, vector<384x256xbf16>, vector<36x256xf32> -> vector<36x256xf32>
    %10 = arith.addf %4, %9 : vector<36x256xf32>
    %c2 = arith.constant 2 : index
    %c0_11 = arith.constant 0 : index
    %c0_12 = arith.constant 0 : index
    %11 = vector.load %arg0[%c2, %c0_11, %c0_12] : memref<5x36x384xbf16, #tpu.memory_space<vmem>>, vector<1x36x384xbf16>
    %12 = vector.shape_cast %11 : vector<1x36x384xbf16> to vector<36x384xbf16>
    %c2_13 = arith.constant 2 : index
    %c0_14 = arith.constant 0 : index
    %c0_15 = arith.constant 0 : index
    %13 = vector.load %arg1[%c2_13, %c0_14, %c0_15] : memref<5x384x256xbf16, #tpu.memory_space<vmem>>, vector<1x384x256xbf16>
    %14 = vector.shape_cast %13 : vector<1x384x256xbf16> to vector<384x256xbf16>
    %cst_16 = arith.constant dense<0.000000e+00> : vector<36x256xf32>
    %15 = tpu.matmul %12, %14, %cst_16 {dimension_numbers = #tpu.dot_dimension_numbers<[1], [0], [0], [1], [0, 0, 1, 1], [], []>} : vector<36x384xbf16>, vector<384x256xbf16>, vector<36x256xf32> -> vector<36x256xf32>
    %16 = arith.addf %10, %15 : vector<36x256xf32>
    %c3 = arith.constant 3 : index
    %c0_17 = arith.constant 0 : index
    %c0_18 = arith.constant 0 : index
    %17 = vector.load %arg0[%c3, %c0_17, %c0_18] : memref<5x36x384xbf16, #tpu.memory_space<vmem>>, vector<1x36x384xbf16>
    %18 = vector.shape_cast %17 : vector<1x36x384xbf16> to vector<36x384xbf16>
    %c3_19 = arith.constant 3 : index
    %c0_20 = arith.constant 0 : index
    %c0_21 = arith.constant 0 : index
    %19 = vector.load %arg1[%c3_19, %c0_20, %c0_21] : memref<5x384x256xbf16, #tpu.memory_space<vmem>>, vector<1x384x256xbf16>
    %20 = vector.shape_cast %19 : vector<1x384x256xbf16> to vector<384x256xbf16>
    %cst_22 = arith.constant dense<0.000000e+00> : vector<36x256xf32>
    %21 = tpu.matmul %18, %20, %cst_22 {dimension_numbers = #tpu.dot_dimension_numbers<[1], [0], [0], [1], [0, 0, 1, 1], [], []>} : vector<36x384xbf16>, vector<384x256xbf16>, vector<36x256xf32> -> vector<36x256xf32>
    %22 = arith.addf %16, %21 : vector<36x256xf32>
    %c4 = arith.constant 4 : index
    %c0_23 = arith.constant 0 : index
    %c0_24 = arith.constant 0 : index
    %23 = vector.load %arg0[%c4, %c0_23, %c0_24] : memref<5x36x384xbf16, #tpu.memory_space<vmem>>, vector<1x36x384xbf16>
    %24 = vector.shape_cast %23 : vector<1x36x384xbf16> to vector<36x384xbf16>
    %c4_25 = arith.constant 4 : index
    %c0_26 = arith.constant 0 : index
    %c0_27 = arith.constant 0 : index
    %25 = vector.load %arg1[%c4_25, %c0_26, %c0_27] : memref<5x384x256xbf16, #tpu.memory_space<vmem>>, vector<1x384x256xbf16>
    %26 = vector.shape_cast %25 : vector<1x384x256xbf16> to vector<384x256xbf16>
    %cst_28 = arith.constant dense<0.000000e+00> : vector<36x256xf32>
    %27 = tpu.matmul %24, %26, %cst_28 {dimension_numbers = #tpu.dot_dimension_numbers<[1], [0], [0], [1], [0, 0, 1, 1], [], []>} : vector<36x384xbf16>, vector<384x256xbf16>, vector<36x256xf32> -> vector<36x256xf32>
    %28 = arith.addf %22, %27 : vector<36x256xf32>
    %c0_29 = arith.constant 0 : index
    %c0_30 = arith.constant 0 : index
    %29 = vector.load %arg2[%c0_29, %c0_30] : memref<1x256xf32, #tpu.memory_space<vmem>>, vector<1x256xf32>
    %30 = vector.broadcast %29 : vector<1x256xf32> to vector<36x256xf32>
    %31 = arith.addf %28, %30 : vector<36x256xf32>
    %cst_31 = arith.constant 0.000000e+00 : f32
    %32 = vector.broadcast %cst_31 : f32 to vector<36x256xf32>
    %33 = arith.maximumf %31, %32 : vector<36x256xf32>
    %34 = arith.truncf %33 : vector<36x256xf32> to vector<36x256xbf16>
    %c0_32 = arith.constant 0 : index
    %c0_33 = arith.constant 0 : index
    %c0_34 = arith.constant 0 : index
    %35 = vector.load %arg3[%c0_32, %c0_33, %c0_34] : memref<3x12x36xbf16, #tpu.memory_space<vmem>>, vector<1x12x36xbf16>
    %36 = vector.shape_cast %35 : vector<1x12x36xbf16> to vector<12x36xbf16>
    %cst_35 = arith.constant dense<0.000000e+00> : vector<12x256xf32>
    %37 = tpu.matmul %36, %34, %cst_35 {dimension_numbers = #tpu.dot_dimension_numbers<[1], [0], [0], [1], [0, 0, 1, 1], [], []>} : vector<12x36xbf16>, vector<36x256xbf16>, vector<12x256xf32> -> vector<12x256xf32>
    %38 = arith.truncf %37 : vector<12x256xf32> to vector<12x256xbf16>
    %c0_36 = arith.constant 0 : index
    %c0_37 = arith.constant 0 : index
    %c0_38 = arith.constant 0 : index
    %39 = vector.load %arg4[%c0_36, %c0_37, %c0_38] : memref<3x256x128xbf16, #tpu.memory_space<vmem>>, vector<1x256x128xbf16>
    %40 = vector.shape_cast %39 : vector<1x256x128xbf16> to vector<256x128xbf16>
    %cst_39 = arith.constant dense<0.000000e+00> : vector<12x128xf32>
    %41 = tpu.matmul %38, %40, %cst_39 {dimension_numbers = #tpu.dot_dimension_numbers<[1], [0], [0], [1], [0, 0, 1, 1], [], []>} : vector<12x256xbf16>, vector<256x128xbf16>, vector<12x128xf32> -> vector<12x128xf32>
    %c1_40 = arith.constant 1 : index
    %c0_41 = arith.constant 0 : index
    %c0_42 = arith.constant 0 : index
    %42 = vector.load %arg3[%c1_40, %c0_41, %c0_42] : memref<3x12x36xbf16, #tpu.memory_space<vmem>>, vector<1x12x36xbf16>
    %43 = vector.shape_cast %42 : vector<1x12x36xbf16> to vector<12x36xbf16>
    %cst_43 = arith.constant dense<0.000000e+00> : vector<12x256xf32>
    %44 = tpu.matmul %43, %34, %cst_43 {dimension_numbers = #tpu.dot_dimension_numbers<[1], [0], [0], [1], [0, 0, 1, 1], [], []>} : vector<12x36xbf16>, vector<36x256xbf16>, vector<12x256xf32> -> vector<12x256xf32>
    %45 = arith.truncf %44 : vector<12x256xf32> to vector<12x256xbf16>
    %c1_44 = arith.constant 1 : index
    %c0_45 = arith.constant 0 : index
    %c0_46 = arith.constant 0 : index
    %46 = vector.load %arg4[%c1_44, %c0_45, %c0_46] : memref<3x256x128xbf16, #tpu.memory_space<vmem>>, vector<1x256x128xbf16>
    %47 = vector.shape_cast %46 : vector<1x256x128xbf16> to vector<256x128xbf16>
    %cst_47 = arith.constant dense<0.000000e+00> : vector<12x128xf32>
    %48 = tpu.matmul %45, %47, %cst_47 {dimension_numbers = #tpu.dot_dimension_numbers<[1], [0], [0], [1], [0, 0, 1, 1], [], []>} : vector<12x256xbf16>, vector<256x128xbf16>, vector<12x128xf32> -> vector<12x128xf32>
    %49 = arith.addf %41, %48 : vector<12x128xf32>
    %c2_48 = arith.constant 2 : index
    %c0_49 = arith.constant 0 : index
    %c0_50 = arith.constant 0 : index
    %50 = vector.load %arg3[%c2_48, %c0_49, %c0_50] : memref<3x12x36xbf16, #tpu.memory_space<vmem>>, vector<1x12x36xbf16>
    %51 = vector.shape_cast %50 : vector<1x12x36xbf16> to vector<12x36xbf16>
    %cst_51 = arith.constant dense<0.000000e+00> : vector<12x256xf32>
    %52 = tpu.matmul %51, %34, %cst_51 {dimension_numbers = #tpu.dot_dimension_numbers<[1], [0], [0], [1], [0, 0, 1, 1], [], []>} : vector<12x36xbf16>, vector<36x256xbf16>, vector<12x256xf32> -> vector<12x256xf32>
    %53 = arith.truncf %52 : vector<12x256xf32> to vector<12x256xbf16>
    %c2_52 = arith.constant 2 : index
    %c0_53 = arith.constant 0 : index
    %c0_54 = arith.constant 0 : index
    %54 = vector.load %arg4[%c2_52, %c0_53, %c0_54] : memref<3x256x128xbf16, #tpu.memory_space<vmem>>, vector<1x256x128xbf16>
    %55 = vector.shape_cast %54 : vector<1x256x128xbf16> to vector<256x128xbf16>
    %cst_55 = arith.constant dense<0.000000e+00> : vector<12x128xf32>
    %56 = tpu.matmul %53, %55, %cst_55 {dimension_numbers = #tpu.dot_dimension_numbers<[1], [0], [0], [1], [0, 0, 1, 1], [], []>} : vector<12x256xbf16>, vector<256x128xbf16>, vector<12x128xf32> -> vector<12x128xf32>
    %57 = arith.addf %49, %56 : vector<12x128xf32>
    %c0_56 = arith.constant 0 : index
    %c0_57 = arith.constant 0 : index
    %58 = vector.load %arg5[%c0_56, %c0_57] : memref<1x128xf32, #tpu.memory_space<vmem>>, vector<1x128xf32>
    %59 = vector.broadcast %58 : vector<1x128xf32> to vector<12x128xf32>
    %60 = arith.addf %57, %59 : vector<12x128xf32>
    %cst_58 = arith.constant 0.000000e+00 : f32
    %61 = vector.broadcast %cst_58 : f32 to vector<12x128xf32>
    %62 = arith.maximumf %60, %61 : vector<12x128xf32>
    %63 = arith.truncf %62 : vector<12x128xf32> to vector<12x128xbf16>
    %c0_59 = arith.constant 0 : index
    %c0_60 = arith.constant 0 : index
    %c0_61 = arith.constant 0 : index
    %64 = vector.load %arg6[%c0_59, %c0_60, %c0_61] : memref<3x4x12xbf16, #tpu.memory_space<vmem>>, vector<1x4x12xbf16>
    %65 = vector.shape_cast %64 : vector<1x4x12xbf16> to vector<4x12xbf16>
    %cst_62 = arith.constant dense<0.000000e+00> : vector<4x128xf32>
    %66 = tpu.matmul %65, %63, %cst_62 {dimension_numbers = #tpu.dot_dimension_numbers<[1], [0], [0], [1], [0, 0, 1, 1], [], []>} : vector<4x12xbf16>, vector<12x128xbf16>, vector<4x128xf32> -> vector<4x128xf32>
    %67 = arith.truncf %66 : vector<4x128xf32> to vector<4x128xbf16>
    %c0_63 = arith.constant 0 : index
    %c0_64 = arith.constant 0 : index
    %c0_65 = arith.constant 0 : index
    %68 = vector.load %arg7[%c0_63, %c0_64, %c0_65] : memref<3x128x128xbf16, #tpu.memory_space<vmem>>, vector<1x128x128xbf16>
    %69 = vector.shape_cast %68 : vector<1x128x128xbf16> to vector<128x128xbf16>
    %cst_66 = arith.constant dense<0.000000e+00> : vector<4x128xf32>
    %70 = tpu.matmul %67, %69, %cst_66 {dimension_numbers = #tpu.dot_dimension_numbers<[1], [0], [0], [1], [0, 0, 1, 1], [], []>} : vector<4x128xbf16>, vector<128x128xbf16>, vector<4x128xf32> -> vector<4x128xf32>
    %c1_67 = arith.constant 1 : index
    %c0_68 = arith.constant 0 : index
    %c0_69 = arith.constant 0 : index
    %71 = vector.load %arg6[%c1_67, %c0_68, %c0_69] : memref<3x4x12xbf16, #tpu.memory_space<vmem>>, vector<1x4x12xbf16>
    %72 = vector.shape_cast %71 : vector<1x4x12xbf16> to vector<4x12xbf16>
    %cst_70 = arith.constant dense<0.000000e+00> : vector<4x128xf32>
    %73 = tpu.matmul %72, %63, %cst_70 {dimension_numbers = #tpu.dot_dimension_numbers<[1], [0], [0], [1], [0, 0, 1, 1], [], []>} : vector<4x12xbf16>, vector<12x128xbf16>, vector<4x128xf32> -> vector<4x128xf32>
    %74 = arith.truncf %73 : vector<4x128xf32> to vector<4x128xbf16>
    %c1_71 = arith.constant 1 : index
    %c0_72 = arith.constant 0 : index
    %c0_73 = arith.constant 0 : index
    %75 = vector.load %arg7[%c1_71, %c0_72, %c0_73] : memref<3x128x128xbf16, #tpu.memory_space<vmem>>, vector<1x128x128xbf16>
    %76 = vector.shape_cast %75 : vector<1x128x128xbf16> to vector<128x128xbf16>
    %cst_74 = arith.constant dense<0.000000e+00> : vector<4x128xf32>
    %77 = tpu.matmul %74, %76, %cst_74 {dimension_numbers = #tpu.dot_dimension_numbers<[1], [0], [0], [1], [0, 0, 1, 1], [], []>} : vector<4x128xbf16>, vector<128x128xbf16>, vector<4x128xf32> -> vector<4x128xf32>
    %78 = arith.addf %70, %77 : vector<4x128xf32>
    %c2_75 = arith.constant 2 : index
    %c0_76 = arith.constant 0 : index
    %c0_77 = arith.constant 0 : index
    %79 = vector.load %arg6[%c2_75, %c0_76, %c0_77] : memref<3x4x12xbf16, #tpu.memory_space<vmem>>, vector<1x4x12xbf16>
    %80 = vector.shape_cast %79 : vector<1x4x12xbf16> to vector<4x12xbf16>
    %cst_78 = arith.constant dense<0.000000e+00> : vector<4x128xf32>
    %81 = tpu.matmul %80, %63, %cst_78 {dimension_numbers = #tpu.dot_dimension_numbers<[1], [0], [0], [1], [0, 0, 1, 1], [], []>} : vector<4x12xbf16>, vector<12x128xbf16>, vector<4x128xf32> -> vector<4x128xf32>
    %82 = arith.truncf %81 : vector<4x128xf32> to vector<4x128xbf16>
    %c2_79 = arith.constant 2 : index
    %c0_80 = arith.constant 0 : index
    %c0_81 = arith.constant 0 : index
    %83 = vector.load %arg7[%c2_79, %c0_80, %c0_81] : memref<3x128x128xbf16, #tpu.memory_space<vmem>>, vector<1x128x128xbf16>
    %84 = vector.shape_cast %83 : vector<1x128x128xbf16> to vector<128x128xbf16>
    %cst_82 = arith.constant dense<0.000000e+00> : vector<4x128xf32>
    %85 = tpu.matmul %82, %84, %cst_82 {dimension_numbers = #tpu.dot_dimension_numbers<[1], [0], [0], [1], [0, 0, 1, 1], [], []>} : vector<4x128xbf16>, vector<128x128xbf16>, vector<4x128xf32> -> vector<4x128xf32>
    %86 = arith.addf %78, %85 : vector<4x128xf32>
    %c0_83 = arith.constant 0 : index
    %c0_84 = arith.constant 0 : index
    %87 = vector.load %arg8[%c0_83, %c0_84] : memref<1x128xf32, #tpu.memory_space<vmem>>, vector<1x128xf32>
    %88 = vector.broadcast %87 : vector<1x128xf32> to vector<4x128xf32>
    %89 = arith.addf %86, %88 : vector<4x128xf32>
    %cst_85 = arith.constant 0.000000e+00 : f32
    %90 = vector.broadcast %cst_85 : f32 to vector<4x128xf32>
    %91 = arith.maximumf %89, %90 : vector<4x128xf32>
    %c0_86 = arith.constant 0 : index
    %c0_87 = arith.constant 0 : index
    %92 = vector.load %arg9[%c0_86, %c0_87] : memref<4x128xf32, #tpu.memory_space<vmem>>, vector<4x128xf32>
    tpu.vector_store %arg9[%c0_86, %c0_87], %91 {strides = array<i32>} : memref<4x128xf32, #tpu.memory_space<vmem>>, vector<4x128xf32>,
    return
  }
}

</mosaic_0001>

<llo_original>
// kernel: downsampling_convnet_forward.1
$region0: #{downsampling_convnet_forward.1}
  #allocation0 [shape = 'u32[]', space=smem, size = 0x4, offset = 0x4, fixed_abs, tag = 'smem constant byte address 0x4 - core index']
  #allocation1 [shape = 'u32[144,128]{1,0:T(1,128)}', space=vmem, size = 0x12000, scoped, tag = 'internal scratch']
  %s0 = inlined_call_operand.vmem [shape: bf16[5,36,384], index: 0, kind: input, shape index: {}]
  %s1 = inlined_call_operand.vmem [shape: bf16[5,384,256], index: 1, kind: input, shape index: {}]
  %s2 = inlined_call_operand.vmem [shape: f32[1,256], index: 2, kind: input, shape index: {}]
  %s3 = inlined_call_operand.vmem [shape: bf16[3,12,36], index: 3, kind: input, shape index: {}]
  %s4 = inlined_call_operand.vmem [shape: bf16[3,256,128], index: 4, kind: input, shape index: {}]
  %s5 = inlined_call_operand.vmem [shape: f32[1,128], index: 5, kind: input, shape index: {}]
  %s6 = inlined_call_operand.vmem [shape: bf16[3,4,12], index: 6, kind: input, shape index: {}]
  %s7 = inlined_call_operand.vmem [shape: bf16[3,128,128], index: 7, kind: input, shape index: {}]
  %s8 = inlined_call_operand.vmem [shape: f32[1,128], index: 8, kind: input, shape index: {}]
  %s9 = inlined_call_operand.vmem [shape: f32[4,128], index: 9, kind: output, shape index: {}]
  %s10 = sld [smem:[#allocation0]]
  $region46: #{downsampling_convnet_forward.1} parent=0
    _
  %s12 = ssub.s32 1, %s10
  %s13 = scalar_select 0, %s12, %s10
  // Predicated region
  $region2: #{downsampling_convnet_forward.1} parent=0 // pred_check
    _
  $region3: #{downsampling_convnet_forward.1} parent=0 // pred_check_branch
    %15 = sbr.rel (0) target = $region5
  $region4: #{downsampling_convnet_forward.1} parent=0 // pred_region
    _
  $region5: #{downsampling_convnet_forward.1} parent=0 // pred_fallthru
    _
  // Predicated region
  $region6: #{downsampling_convnet_forward.1} parent=0 // pred_check
    _
  $region7: #{downsampling_convnet_forward.1} parent=0 // pred_check_branch
    %17 = sbr.rel (0) target = $region9
  $region8: #{downsampling_convnet_forward.1} parent=0 // pred_region
    _
  $region9: #{downsampling_convnet_forward.1} parent=0 // pred_fallthru
    _
  // Predicated region
  $region10: #{downsampling_convnet_forward.1} parent=0 // pred_check
    _
  $region11: #{downsampling_convnet_forward.1} parent=0 // pred_check_branch
    %19 = sbr.rel (0) target = $region13
  $region12: #{downsampling_convnet_forward.1} parent=0 // pred_region
    _
  $region13: #{downsampling_convnet_forward.1} parent=0 // pred_fallthru
    _
  // Predicated region
  $region14: #{downsampling_convnet_forward.1} parent=0 // pred_check
    _
  $region15: #{downsampling_convnet_forward.1} parent=0 // pred_check_branch
    %21 = sbr.rel (0) target = $region17
  $region16: #{downsampling_convnet_forward.1} parent=0 // pred_region
    _
  $region17: #{downsampling_convnet_forward.1} parent=0 // pred_fallthru
    _
  // Predicated region
  $region18: #{downsampling_convnet_forward.1} parent=0 // pred_check
    _
  $region19: #{downsampling_convnet_forward.1} parent=0 // pred_check_branch
    %23 = sbr.rel (0) target = $region21
  $region20: #{downsampling_convnet_forward.1} parent=0 // pred_region
    _
  $region21: #{downsampling_convnet_forward.1} parent=0 // pred_fallthru
    _
  // Predicated region
  $region22: #{downsampling_convnet_forward.1} parent=0 // pred_check
    _
  $region23: #{downsampling_convnet_forward.1} parent=0 // pred_check_branch
    %25 = sbr.rel (0) target = $region25
  $region24: #{downsampling_convnet_forward.1} parent=0 // pred_region
    _
  $region25: #{downsampling_convnet_forward.1} parent=0 // pred_fallthru
    _
  // Predicated region
  $region26: #{downsampling_convnet_forward.1} parent=0 // pred_check
    _
  $region27: #{downsampling_convnet_forward.1} parent=0 // pred_check_branch
    %27 = sbr.rel (0) target = $region29
  $region28: #{downsampling_convnet_forward.1} parent=0 // pred_region
    _
  $region29: #{downsampling_convnet_forward.1} parent=0 // pred_fallthru
    _
  // Predicated region
  $region30: #{downsampling_convnet_forward.1} parent=0 // pred_check
    _
  $region31: #{downsampling_convnet_forward.1} parent=0 // pred_check_branch
    %29 = sbr.rel (0) target = $region33
  $region32: #{downsampling_convnet_forward.1} parent=0 // pred_region
    _
  $region33: #{downsampling_convnet_forward.1} parent=0 // pred_fallthru
    _
  // Predicated region
  $region34: #{downsampling_convnet_forward.1} parent=0 // pred_check
    _
  $region35: #{downsampling_convnet_forward.1} parent=0 // pred_check_branch
    %31 = sbr.rel (0) target = $region37
  $region36: #{downsampling_convnet_forward.1} parent=0 // pred_region
    _
  $region37: #{downsampling_convnet_forward.1} parent=0 // pred_fallthru
    _
  %v33 = vld [vmem:[%s0] sm:$0xff]
  %v34 = vld [vmem:[%s0 + $0x8] sm:$0xf]
  %v35 = vld [vmem:[%s0 + $0xc] sm:$0xff]
  %v36 = vld [vmem:[%s0 + $0x14] sm:$0xf]
  %v37 = vld [vmem:[%s0 + $0x18] sm:$0xff]
  %v38 = vld [vmem:[%s0 + $0x20] sm:$0xf]
  %v39 = vld [vmem:[%s0 + $0x24] sm:$0xff]
  %v40 = vld [vmem:[%s0 + $0x2c] sm:$0xf]
  %v41 = vld [vmem:[%s0 + $0x30] sm:$0x33]
  %v42 = vld [vmem:[%s0 + $0x38] sm:$0x3]
  %v43 = vld [vmem:[%s1] sm:$0xff]
  %v44 = vld [vmem:[%s1 + $0x8] sm:$0xff]
  %v45 = vld [vmem:[%s1 + $0x10] sm:$0xff]
  %v46 = vld [vmem:[%s1 + $0x18] sm:$0xff]
  %v47 = vld [vmem:[%s1 + $0x20] sm:$0xff]
  %v48 = vld [vmem:[%s1 + $0x28] sm:$0xff]
  %v49 = vld [vmem:[%s1 + $0x30] sm:$0xff]
  %v50 = vld [vmem:[%s1 + $0x38] sm:$0xff]
  %v51 = vld [vmem:[%s1 + $0x40] sm:$0xff]
  %v52 = vld [vmem:[%s1 + $0x48] sm:$0xff]
  %v53 = vld [vmem:[%s1 + $0x50] sm:$0xff]
  %v54 = vld [vmem:[%s1 + $0x58] sm:$0xff]
  %v55 = vld [vmem:[%s1 + $0x60] sm:$0xff]
  %v56 = vld [vmem:[%s1 + $0x68] sm:$0xff]
  %v57 = vld [vmem:[%s1 + $0x70] sm:$0xff]
  %v58 = vld [vmem:[%s1 + $0x78] sm:$0xff]
  %v59 = vld [vmem:[%s1 + $0x80] sm:$0xff]
  %v60 = vld [vmem:[%s1 + $0x88] sm:$0xff]
  %v61 = vld [vmem:[%s1 + $0x90] sm:$0xff]
  %v62 = vld [vmem:[%s1 + $0x98] sm:$0xff]
  %v63 = vld [vmem:[%s1 + $0xa0] sm:$0xff]
  %v64 = vld [vmem:[%s1 + $0xa8] sm:$0xff]
  %v65 = vld [vmem:[%s1 + $0xb0] sm:$0xff]
  %v66 = vld [vmem:[%s1 + $0xb8] sm:$0xff]
  %v67 = vld [vmem:[%s1 + $0xc0] sm:$0xff]
  %v68 = vld [vmem:[%s1 + $0xc8] sm:$0xff]
  %v69 = vld [vmem:[%s1 + $0xd0] sm:$0xff]
  %v70 = vld [vmem:[%s1 + $0xd8] sm:$0xff]
  %v71 = vld [vmem:[%s1 + $0xe0] sm:$0xff]
  %v72 = vld [vmem:[%s1 + $0xe8] sm:$0xff]
  %v73 = vld [vmem:[%s1 + $0xf0] sm:$0xff]
  %v74 = vld [vmem:[%s1 + $0xf8] sm:$0xff]
  %v75 = vld [vmem:[%s1 + $0x100] sm:$0xff]
  %v76 = vld [vmem:[%s1 + $0x108] sm:$0xff]
  %v77 = vld [vmem:[%s1 + $0x110] sm:$0xff]
  %v78 = vld [vmem:[%s1 + $0x118] sm:$0xff]
  %v79 = vld [vmem:[%s1 + $0x120] sm:$0xff]
  %v80 = vld [vmem:[%s1 + $0x128] sm:$0xff]
  %v81 = vld [vmem:[%s1 + $0x130] sm:$0xff]
  %v82 = vld [vmem:[%s1 + $0x138] sm:$0xff]
  %v83 = vld [vmem:[%s1 + $0x140] sm:$0xff]
  %v84 = vld [vmem:[%s1 + $0x148] sm:$0xff]
  %v85 = vld [vmem:[%s1 + $0x150] sm:$0xff]
  %v86 = vld [vmem:[%s1 + $0x158] sm:$0xff]
  %v87 = vld [vmem:[%s1 + $0x160] sm:$0xff]
  %v88 = vld [vmem:[%s1 + $0x168] sm:$0xff]
  %v89 = vld [vmem:[%s1 + $0x170] sm:$0xff]
  %v90 = vld [vmem:[%s1 + $0x178] sm:$0xff]
  %s91 = scalar_lea.vmem %s0, 60
  %v92 = vld [vmem:[%s91] sm:$0xff]
  %v93 = vld [vmem:[%s91 + $0x8] sm:$0xf]
  %v94 = vld [vmem:[%s91 + $0xc] sm:$0xff]
  %v95 = vld [vmem:[%s91 + $0x14] sm:$0xf]
  %v96 = vld [vmem:[%s91 + $0x18] sm:$0xff]
  %v97 = vld [vmem:[%s91 + $0x20] sm:$0xf]
  %v98 = vld [vmem:[%s91 + $0x24] sm:$0xff]
  %v99 = vld [vmem:[%s91 + $0x2c] sm:$0xf]
  %v100 = vld [vmem:[%s91 + $0x30] sm:$0x33]
  %v101 = vld [vmem:[%s91 + $0x38] sm:$0x3]
  %s102 = scalar_lea.vmem %s1, 384
  %v103 = vld [vmem:[%s102] sm:$0xff]
  %v104 = vld [vmem:[%s102 + $0x8] sm:$0xff]
  %v105 = vld [vmem:[%s102 + $0x10] sm:$0xff]
  %v106 = vld [vmem:[%s102 + $0x18] sm:$0xff]
  %v107 = vld [vmem:[%s102 + $0x20] sm:$0xff]
  %v108 = vld [vmem:[%s102 + $0x28] sm:$0xff]
  %v109 = vld [vmem:[%s102 + $0x30] sm:$0xff]
  %v110 = vld [vmem:[%s102 + $0x38] sm:$0xff]
  %v111 = vld [vmem:[%s102 + $0x40] sm:$0xff]
  %v112 = vld [vmem:[%s102 + $0x48] sm:$0xff]
  %v113 = vld [vmem:[%s102 + $0x50] sm:$0xff]
  %v114 = vld [vmem:[%s102 + $0x58] sm:$0xff]
  %v115 = vld [vmem:[%s102 + $0x60] sm:$0xff]
  %v116 = vld [vmem:[%s102 + $0x68] sm:$0xff]
  %v117 = vld [vmem:[%s102 + $0x70] sm:$0xff]
  %v118 = vld [vmem:[%s102 + $0x78] sm:$0xff]
  %v119 = vld [vmem:[%s102 + $0x80] sm:$0xff]
  %v120 = vld [vmem:[%s102 + $0x88] sm:$0xff]
  %v121 = vld [vmem:[%s102 + $0x90] sm:$0xff]
  %v122 = vld [vmem:[%s102 + $0x98] sm:$0xff]
  %v123 = vld [vmem:[%s102 + $0xa0] sm:$0xff]
  %v124 = vld [vmem:[%s102 + $0xa8] sm:$0xff]
  %v125 = vld [vmem:[%s102 + $0xb0] sm:$0xff]
  %v126 = vld [vmem:[%s102 + $0xb8] sm:$0xff]
  %v127 = vld [vmem:[%s102 + $0xc0] sm:$0xff]
  %v128 = vld [vmem:[%s102 + $0xc8] sm:$0xff]
  %v129 = vld [vmem:[%s102 + $0xd0] sm:$0xff]
  %v130 = vld [vmem:[%s102 + $0xd8] sm:$0xff]
  %v131 = vld [vmem:[%s102 + $0xe0] sm:$0xff]
  %v132 = vld [vmem:[%s102 + $0xe8] sm:$0xff]
  %v133 = vld [vmem:[%s102 + $0xf0] sm:$0xff]
  %v134 = vld [vmem:[%s102 + $0xf8] sm:$0xff]
  %v135 = vld [vmem:[%s102 + $0x100] sm:$0xff]
  %v136 = vld [vmem:[%s102 + $0x108] sm:$0xff]
  %v137 = vld [vmem:[%s102 + $0x110] sm:$0xff]
  %v138 = vld [vmem:[%s102 + $0x118] sm:$0xff]
  %v139 = vld [vmem:[%s102 + $0x120] sm:$0xff]
  %v140 = vld [vmem:[%s102 + $0x128] sm:$0xff]
  %v141 = vld [vmem:[%s102 + $0x130] sm:$0xff]
  %v142 = vld [vmem:[%s102 + $0x138] sm:$0xff]
  %v143 = vld [vmem:[%s102 + $0x140] sm:$0xff]
  %v144 = vld [vmem:[%s102 + $0x148] sm:$0xff]
  %v145 = vld [vmem:[%s102 + $0x150] sm:$0xff]
  %v146 = vld [vmem:[%s102 + $0x158] sm:$0xff]
  %v147 = vld [vmem:[%s102 + $0x160] sm:$0xff]
  %v148 = vld [vmem:[%s102 + $0x168] sm:$0xff]
  %v149 = vld [vmem:[%s102 + $0x170] sm:$0xff]
  %v150 = vld [vmem:[%s102 + $0x178] sm:$0xff]
  %v161 = vunpack.c.l.b16 %v92
  %v162 = vunpack.c.h.b16 %v92
  %v163 = vunpack.c.l.b16 %v93
  %v164 = vunpack.c.l.b16 %v94
  %v165 = vunpack.c.h.b16 %v94
  %v166 = vunpack.c.l.b16 %v95
  %v167 = vunpack.c.l.b16 %v96
  %v168 = vunpack.c.h.b16 %v96
  %v169 = vunpack.c.l.b16 %v97
  %v170 = vunpack.c.l.b16 %v98
  %v171 = vunpack.c.h.b16 %v98
  %v172 = vunpack.c.l.b16 %v99
  %v173 = vunpack.c.l.b16 %v100
  %v174 = vunpack.c.h.b16 %v100
  %v175 = vunpack.c.l.b16 %v101
  %v176 = vpack.c.b16 %v164, %v161
  %v177 = vpack.c.b16 %v165, %v162
  %v178 = vpack.c.b16 %v166, %v163
  %v179 = vpack.c.b16 %v170, %v167
  %v180 = vpack.c.b16 %v171, %v168
  %v181 = vpack.c.b16 %v172, %v169
  %v182 = vpack.c.b16 %v173, %v173
  %v183 = vpack.c.b16 %v174, %v174
  %v184 = vpack.c.b16 %v175, %v175
  %v242 = vunpack.c.l.b16 %v103
  %v243 = vunpack.c.h.b16 %v103
  %v244 = vunpack.c.l.b16 %v104
  %v245 = vunpack.c.h.b16 %v104
  %v246 = vunpack.c.l.b16 %v105
  %v247 = vunpack.c.h.b16 %v105
  %v248 = vunpack.c.l.b16 %v106
  %v249 = vunpack.c.h.b16 %v106
  %v250 = vunpack.c.l.b16 %v107
  %v251 = vunpack.c.h.b16 %v107
  %v252 = vunpack.c.l.b16 %v108
  %v253 = vunpack.c.h.b16 %v108
  %v254 = vunpack.c.l.b16 %v109
  %v255 = vunpack.c.h.b16 %v109
  %v256 = vunpack.c.l.b16 %v110
  %v257 = vunpack.c.h.b16 %v110
  %v258 = vunpack.c.l.b16 %v111
  %v259 = vunpack.c.h.b16 %v111
  %v260 = vunpack.c.l.b16 %v112
  %v261 = vunpack.c.h.b16 %v112
  %v262 = vunpack.c.l.b16 %v113
  %v263 = vunpack.c.h.b16 %v113
  %v264 = vunpack.c.l.b16 %v114
  %v265 = vunpack.c.h.b16 %v114
  %v266 = vunpack.c.l.b16 %v115
  %v267 = vunpack.c.h.b16 %v115
  %v268 = vunpack.c.l.b16 %v116
  %v269 = vunpack.c.h.b16 %v116
  %v270 = vunpack.c.l.b16 %v117
  %v271 = vunpack.c.h.b16 %v117
  %v272 = vunpack.c.l.b16 %v118
  %v273 = vunpack.c.h.b16 %v118
  %v274 = vunpack.c.l.b16 %v119
  %v275 = vunpack.c.h.b16 %v119
  %v276 = vunpack.c.l.b16 %v120
  %v277 = vunpack.c.h.b16 %v120
  %v278 = vunpack.c.l.b16 %v121
  %v279 = vunpack.c.h.b16 %v121
  %v280 = vunpack.c.l.b16 %v122
  %v281 = vunpack.c.h.b16 %v122
  %v282 = vunpack.c.l.b16 %v123
  %v283 = vunpack.c.h.b16 %v123
  %v284 = vunpack.c.l.b16 %v124
  %v285 = vunpack.c.h.b16 %v124
  %v286 = vunpack.c.l.b16 %v125
  %v287 = vunpack.c.h.b16 %v125
  %v288 = vunpack.c.l.b16 %v126
  %v289 = vunpack.c.h.b16 %v126
  %v290 = vunpack.c.l.b16 %v127
  %v291 = vunpack.c.h.b16 %v127
  %v292 = vunpack.c.l.b16 %v128
  %v293 = vunpack.c.h.b16 %v128
  %v294 = vunpack.c.l.b16 %v129
  %v295 = vunpack.c.h.b16 %v129
  %v296 = vunpack.c.l.b16 %v130
  %v297 = vunpack.c.h.b16 %v130
  %v298 = vunpack.c.l.b16 %v131
  %v299 = vunpack.c.h.b16 %v131
  %v300 = vunpack.c.l.b16 %v132
  %v301 = vunpack.c.h.b16 %v132
  %v302 = vunpack.c.l.b16 %v133
  %v303 = vunpack.c.h.b16 %v133
  %v304 = vunpack.c.l.b16 %v134
  %v305 = vunpack.c.h.b16 %v134
  %v306 = vunpack.c.l.b16 %v135
  %v307 = vunpack.c.h.b16 %v135
  %v308 = vunpack.c.l.b16 %v136
  %v309 = vunpack.c.h.b16 %v136
  %v310 = vunpack.c.l.b16 %v137
  %v311 = vunpack.c.h.b16 %v137
  %v312 = vunpack.c.l.b16 %v138
  %v313 = vunpack.c.h.b16 %v138
  %v314 = vunpack.c.l.b16 %v139
  %v315 = vunpack.c.h.b16 %v139
  %v316 = vunpack.c.l.b16 %v140
  %v317 = vunpack.c.h.b16 %v140
  %v318 = vunpack.c.l.b16 %v141
  %v319 = vunpack.c.h.b16 %v141
  %v320 = vunpack.c.l.b16 %v142
  %v321 = vunpack.c.h.b16 %v142
  %v322 = vunpack.c.l.b16 %v143
  %v323 = vunpack.c.h.b16 %v143
  %v324 = vunpack.c.l.b16 %v144
  %v325 = vunpack.c.h.b16 %v144
  %v326 = vunpack.c.l.b16 %v145
  %v327 = vunpack.c.h.b16 %v145
  %v328 = vunpack.c.l.b16 %v146
  %v329 = vunpack.c.h.b16 %v146
  %v330 = vunpack.c.l.b16 %v147
  %v331 = vunpack.c.h.b16 %v147
  %v332 = vunpack.c.l.b16 %v148
  %v333 = vunpack.c.h.b16 %v148
  %v334 = vunpack.c.l.b16 %v149
  %v335 = vunpack.c.h.b16 %v149
  %v336 = vunpack.c.l.b16 %v150
  %v337 = vunpack.c.h.b16 %v150
  %v338 = vpack.c.b16 %v244, %v242
  %v339 = vpack.c.b16 %v245, %v243
  %v340 = vpack.c.b16 %v248, %v246
  %v341 = vpack.c.b16 %v249, %v247
  %v342 = vpack.c.b16 %v252, %v250
  %v343 = vpack.c.b16 %v253, %v251
  %v344 = vpack.c.b16 %v256, %v254
  %v345 = vpack.c.b16 %v257, %v255
  %v346 = vpack.c.b16 %v260, %v258
  %v347 = vpack.c.b16 %v261, %v259
  %v348 = vpack.c.b16 %v264, %v262
  %v349 = vpack.c.b16 %v265, %v263
  %v350 = vpack.c.b16 %v268, %v266
  %v351 = vpack.c.b16 %v269, %v267
  %v352 = vpack.c.b16 %v272, %v270
  %v353 = vpack.c.b16 %v273, %v271
  %v354 = vpack.c.b16 %v276, %v274
  %v355 = vpack.c.b16 %v277, %v275
  %v356 = vpack.c.b16 %v280, %v278
  %v357 = vpack.c.b16 %v281, %v279
  %v358 = vpack.c.b16 %v284, %v282
  %v359 = vpack.c.b16 %v285, %v283
  %v360 = vpack.c.b16 %v288, %v286
  %v361 = vpack.c.b16 %v289, %v287
  %v362 = vpack.c.b16 %v292, %v290
  %v363 = vpack.c.b16 %v293, %v291
  %v364 = vpack.c.b16 %v296, %v294
  %v365 = vpack.c.b16 %v297, %v295
  %v366 = vpack.c.b16 %v300, %v298
  %v367 = vpack.c.b16 %v301, %v299
  %v368 = vpack.c.b16 %v304, %v302
  %v369 = vpack.c.b16 %v305, %v303
  %v370 = vpack.c.b16 %v308, %v306
  %v371 = vpack.c.b16 %v309, %v307
  %v372 = vpack.c.b16 %v312, %v310
  %v373 = vpack.c.b16 %v313, %v311
  %v374 = vpack.c.b16 %v316, %v314
  %v375 = vpack.c.b16 %v317, %v315
  %v376 = vpack.c.b16 %v320, %v318
  %v377 = vpack.c.b16 %v321, %v319
  %v378 = vpack.c.b16 %v324, %v322
  %v379 = vpack.c.b16 %v325, %v323
  %v380 = vpack.c.b16 %v328, %v326
  %v381 = vpack.c.b16 %v329, %v327
  %v382 = vpack.c.b16 %v332, %v330
  %v383 = vpack.c.b16 %v333, %v331
  %v384 = vpack.c.b16 %v336, %v334
  %v385 = vpack.c.b16 %v337, %v335
  %434 = vmatprep.subr.bf16.mxu0 %v353
  %435 = vmatpush1.bf16.msra.mxu0 %v352
  %436 = vmatprep.subr.bf16.mxu0 %v351
  %437 = vmatpush1.bf16.msra.mxu0 %v350
  %438 = vmatprep.subr.bf16.mxu0 %v349
  %439 = vmatpush1.bf16.msra.mxu0 %v348
  %440 = vmatprep.subr.bf16.mxu0 %v347
  %441 = vmatpush1.bf16.msra.mxu0 %v346
  %442 = vmatprep.subr.bf16.mxu0 %v345
  %443 = vmatpush1.bf16.msra.mxu0 %v344
  %444 = vmatprep.subr.bf16.mxu0 %v343
  %445 = vmatpush1.bf16.msra.mxu0 %v342
  %446 = vmatprep.subr.bf16.mxu0 %v341
  %447 = vmatpush1.bf16.msra.mxu0 %v340
  %448 = vmatprep.subr.bf16.mxu0 %v339
  %449 = vmatpush1.bf16.msra.mxu0 %v338
  %450 = vmatprep.subr.bf16.mxu0 %v369
  %451 = vmatpush2.bf16.msra.mxu0 %v368
  %452 = vmatprep.subr.bf16.mxu0 %v367
  %453 = vmatpush2.bf16.msra.mxu0 %v366
  %454 = vmatprep.subr.bf16.mxu0 %v365
  %455 = vmatpush2.bf16.msra.mxu0 %v364
  %456 = vmatprep.subr.bf16.mxu0 %v363
  %457 = vmatpush2.bf16.msra.mxu0 %v362
  %458 = vmatprep.subr.bf16.mxu0 %v361
  %459 = vmatpush2.bf16.msra.mxu0 %v360
  %460 = vmatprep.subr.bf16.mxu0 %v359
  %461 = vmatpush2.bf16.msra.mxu0 %v358
  %462 = vmatprep.subr.bf16.mxu0 %v357
  %463 = vmatpush2.bf16.msra.mxu0 %v356
  %464 = vmatprep.subr.bf16.mxu0 %v355
  %465 = vmatpush2.bf16.msra.mxu0 %v354
  %466 = vmatprep.mubr.bf16.mxu0 %v177
  %467 = vmatmul.mubr.bf16.gmra.mxu0 %v176
  %v468 = vpop.f32.mrf.mxu0
  %v469 = vadd.f32 0.0, %v468
  %v470 = vpop.f32.mrf.mxu0
  %v471 = vadd.f32 0.0, %v470
  %v472 = vpop.f32.mrf.mxu0
  %v473 = vadd.f32 0.0, %v472
  %v474 = vpop.f32.mrf.mxu0
  %v475 = vadd.f32 0.0, %v474
  %476 = vmatprep.mubr.bf16.mxu0 %v180
  %477 = vmatmul.mubr.bf16.gmra.mxu0 %v179
  %v478 = vpop.f32.mrf.mxu0
  %v479 = vadd.f32 0.0, %v478
  %v480 = vpop.f32.mrf.mxu0
  %v481 = vadd.f32 0.0, %v480
  %v482 = vpop.f32.mrf.mxu0
  %v483 = vadd.f32 0.0, %v482
  %v484 = vpop.f32.mrf.mxu0
  %v485 = vadd.f32 0.0, %v484
  %486 = vmatprep.mubr.bf16.mxu0 %v183
  %487 = vmatmul.mubr.bf16.gmra.mxu0 %v182
  %v488 = vpop.f32.mrf.mxu0
  %v489 = vadd.f32 0.0, %v488
  %v490 = vpop.f32.mrf.mxu0
  %v491 = vadd.f32 0.0, %v490
  %v492 = vpop.f32.mrf.mxu0
  %v493 = vpop.f32.mrf.mxu0
  %494 = vdwg.mxu0
  %495 = vmatprep.subr.bf16.mxu0 %v385
  %496 = vmatpush1.bf16.msra.mxu0 %v384
  %497 = vmatprep.subr.bf16.mxu0 %v383
  %498 = vmatpush1.bf16.msra.mxu0 %v382
  %499 = vmatprep.subr.bf16.mxu0 %v381
  %500 = vmatpush1.bf16.msra.mxu0 %v380
  %501 = vmatprep.subr.bf16.mxu0 %v379
  %502 = vmatpush1.bf16.msra.mxu0 %v378
  %503 = vmatprep.subr.bf16.mxu0 %v377
  %504 = vmatpush1.bf16.msra.mxu0 %v376
  %505 = vmatprep.subr.bf16.mxu0 %v375
  %506 = vmatpush1.bf16.msra.mxu0 %v374
  %507 = vmatprep.subr.bf16.mxu0 %v373
  %508 = vmatpush1.bf16.msra.mxu0 %v372
  %509 = vmatprep.subr.bf16.mxu0 %v371
  %510 = vmatpush1.bf16.msra.mxu0 %v370
  %511 = vmatprep.subr.bf16.mxu0 0
  %512 = vmatpush2.bf16.msra.mxu0 0
  %513 = vmatprep.subr.bf16.mxu0 0
  %514 = vmatpush2.bf16.msra.mxu0 0
  %515 = vmatprep.subr.bf16.mxu0 0
  %516 = vmatpush2.bf16.msra.mxu0 0
  %517 = vmatprep.subr.bf16.mxu0 0
  %518 = vmatpush2.bf16.msra.mxu0 0
  %519 = vmatprep.subr.bf16.mxu0 0
  %520 = vmatpush2.bf16.msra.mxu0 0
  %521 = vmatprep.subr.bf16.mxu0 0
  %522 = vmatpush2.bf16.msra.mxu0 0
  %523 = vmatprep.subr.bf16.mxu0 0
  %524 = vmatpush2.bf16.msra.mxu0 0
  %525 = vmatprep.subr.bf16.mxu0 0
  %526 = vmatpush2.bf16.msra.mxu0 0
  %527 = vmatprep.mubr.bf16.mxu0 0
  %528 = vmatmul.mubr.bf16.gmra.mxu0 %v178
  %v529 = vpop.f32.mrf.mxu0
  %v530 = vadd.f32 %v469, %v529
  %v531 = vpop.f32.mrf.mxu0
  %v532 = vadd.f32 %v471, %v531
  %v533 = vpop.f32.mrf.mxu0
  %v534 = vadd.f32 %v473, %v533
  %v535 = vpop.f32.mrf.mxu0
  %v536 = vadd.f32 %v475, %v535
  %537 = vmatprep.mubr.bf16.mxu0 0
  %538 = vmatmul.mubr.bf16.gmra.mxu0 %v181
  %v539 = vpop.f32.mrf.mxu0
  %v540 = vadd.f32 %v479, %v539
  %v541 = vpop.f32.mrf.mxu0
  %v542 = vadd.f32 %v481, %v541
  %v543 = vpop.f32.mrf.mxu0
  %v544 = vadd.f32 %v483, %v543
  %v545 = vpop.f32.mrf.mxu0
  %v546 = vadd.f32 %v485, %v545
  %547 = vmatprep.mubr.bf16.mxu0 0
  %548 = vmatmul.mubr.bf16.gmra.mxu0 %v184
  %v549 = vpop.f32.mrf.mxu0
  %v550 = vadd.f32 %v489, %v549
  %v551 = vpop.f32.mrf.mxu0
  %v552 = vadd.f32 %v491, %v551
  %v553 = vpop.f32.mrf.mxu0
  %v554 = vpop.f32.mrf.mxu0
  %555 = vdwg.mxu0
  %v566 = vunpack.c.l.b16 %v33
  %v567 = vunpack.c.h.b16 %v33
  %v568 = vunpack.c.l.b16 %v34
  %v569 = vunpack.c.l.b16 %v35
  %v570 = vunpack.c.h.b16 %v35
  %v571 = vunpack.c.l.b16 %v36
  %v572 = vunpack.c.l.b16 %v37
  %v573 = vunpack.c.h.b16 %v37
  %v574 = vunpack.c.l.b16 %v38
  %v575 = vunpack.c.l.b16 %v39
  %v576 = vunpack.c.h.b16 %v39
  %v577 = vunpack.c.l.b16 %v40
  %v578 = vunpack.c.l.b16 %v41
  %v579 = vunpack.c.h.b16 %v41
  %v580 = vunpack.c.l.b16 %v42
  %v581 = vpack.c.b16 %v569, %v566
  %v582 = vpack.c.b16 %v570, %v567
  %v583 = vpack.c.b16 %v571, %v568
  %v584 = vpack.c.b16 %v575, %v572
  %v585 = vpack.c.b16 %v576, %v573
  %v586 = vpack.c.b16 %v577, %v574
  %v587 = vpack.c.b16 %v578, %v578
  %v588 = vpack.c.b16 %v579, %v579
  %v589 = vpack.c.b16 %v580, %v580
  %v647 = vunpack.c.l.b16 %v43
  %v648 = vunpack.c.h.b16 %v43
  %v649 = vunpack.c.l.b16 %v44
  %v650 = vunpack.c.h.b16 %v44
  %v651 = vunpack.c.l.b16 %v45
  %v652 = vunpack.c.h.b16 %v45
  %v653 = vunpack.c.l.b16 %v46
  %v654 = vunpack.c.h.b16 %v46
  %v655 = vunpack.c.l.b16 %v47
  %v656 = vunpack.c.h.b16 %v47
  %v657 = vunpack.c.l.b16 %v48
  %v658 = vunpack.c.h.b16 %v48
  %v659 = vunpack.c.l.b16 %v49
  %v660 = vunpack.c.h.b16 %v49
  %v661 = vunpack.c.l.b16 %v50
  %v662 = vunpack.c.h.b16 %v50
  %v663 = vunpack.c.l.b16 %v51
  %v664 = vunpack.c.h.b16 %v51
  %v665 = vunpack.c.l.b16 %v52
  %v666 = vunpack.c.h.b16 %v52
  %v667 = vunpack.c.l.b16 %v53
  %v668 = vunpack.c.h.b16 %v53
  %v669 = vunpack.c.l.b16 %v54
  %v670 = vunpack.c.h.b16 %v54
  %v671 = vunpack.c.l.b16 %v55
  %v672 = vunpack.c.h.b16 %v55
  %v673 = vunpack.c.l.b16 %v56
  %v674 = vunpack.c.h.b16 %v56
  %v675 = vunpack.c.l.b16 %v57
  %v676 = vunpack.c.h.b16 %v57
  %v677 = vunpack.c.l.b16 %v58
  %v678 = vunpack.c.h.b16 %v58
  %v679 = vunpack.c.l.b16 %v59
  %v680 = vunpack.c.h.b16 %v59
  %v681 = vunpack.c.l.b16 %v60
  %v682 = vunpack.c.h.b16 %v60
  %v683 = vunpack.c.l.b16 %v61
  %v684 = vunpack.c.h.b16 %v61
  %v685 = vunpack.c.l.b16 %v62
  %v686 = vunpack.c.h.b16 %v62
  %v687 = vunpack.c.l.b16 %v63
  %v688 = vunpack.c.h.b16 %v63
  %v689 = vunpack.c.l.b16 %v64
  %v690 = vunpack.c.h.b16 %v64
  %v691 = vunpack.c.l.b16 %v65
  %v692 = vunpack.c.h.b16 %v65
  %v693 = vunpack.c.l.b16 %v66
  %v694 = vunpack.c.h.b16 %v66
  %v695 = vunpack.c.l.b16 %v67
  %v696 = vunpack.c.h.b16 %v67
  %v697 = vunpack.c.l.b16 %v68
  %v698 = vunpack.c.h.b16 %v68
  %v699 = vunpack.c.l.b16 %v69
  %v700 = vunpack.c.h.b16 %v69
  %v701 = vunpack.c.l.b16 %v70
  %v702 = vunpack.c.h.b16 %v70
  %v703 = vunpack.c.l.b16 %v71
  %v704 = vunpack.c.h.b16 %v71
  %v705 = vunpack.c.l.b16 %v72
  %v706 = vunpack.c.h.b16 %v72
  %v707 = vunpack.c.l.b16 %v73
  %v708 = vunpack.c.h.b16 %v73
  %v709 = vunpack.c.l.b16 %v74
  %v710 = vunpack.c.h.b16 %v74
  %v711 = vunpack.c.l.b16 %v75
  %v712 = vunpack.c.h.b16 %v75
  %v713 = vunpack.c.l.b16 %v76
  %v714 = vunpack.c.h.b16 %v76
  %v715 = vunpack.c.l.b16 %v77
  %v716 = vunpack.c.h.b16 %v77
  %v717 = vunpack.c.l.b16 %v78
  %v718 = vunpack.c.h.b16 %v78
  %v719 = vunpack.c.l.b16 %v79
  %v720 = vunpack.c.h.b16 %v79
  %v721 = vunpack.c.l.b16 %v80
  %v722 = vunpack.c.h.b16 %v80
  %v723 = vunpack.c.l.b16 %v81
  %v724 = vunpack.c.h.b16 %v81
  %v725 = vunpack.c.l.b16 %v82
  %v726 = vunpack.c.h.b16 %v82
  %v727 = vunpack.c.l.b16 %v83
  %v728 = vunpack.c.h.b16 %v83
  %v729 = vunpack.c.l.b16 %v84
  %v730 = vunpack.c.h.b16 %v84
  %v731 = vunpack.c.l.b16 %v85
  %v732 = vunpack.c.h.b16 %v85
  %v733 = vunpack.c.l.b16 %v86
  %v734 = vunpack.c.h.b16 %v86
  %v735 = vunpack.c.l.b16 %v87
  %v736 = vunpack.c.h.b16 %v87
  %v737 = vunpack.c.l.b16 %v88
  %v738 = vunpack.c.h.b16 %v88
  %v739 = vunpack.c.l.b16 %v89
  %v740 = vunpack.c.h.b16 %v89
  %v741 = vunpack.c.l.b16 %v90
  %v742 = vunpack.c.h.b16 %v90
  %v743 = vpack.c.b16 %v649, %v647
  %v744 = vpack.c.b16 %v650, %v648
  %v745 = vpack.c.b16 %v653, %v651
  %v746 = vpack.c.b16 %v654, %v652
  %v747 = vpack.c.b16 %v657, %v655
  %v748 = vpack.c.b16 %v658, %v656
  %v749 = vpack.c.b16 %v661, %v659
  %v750 = vpack.c.b16 %v662, %v660
  %v751 = vpack.c.b16 %v665, %v663
  %v752 = vpack.c.b16 %v666, %v664
  %v753 = vpack.c.b16 %v669, %v667
  %v754 = vpack.c.b16 %v670, %v668
  %v755 = vpack.c.b16 %v673, %v671
  %v756 = vpack.c.b16 %v674, %v672
  %v757 = vpack.c.b16 %v677, %v675
  %v758 = vpack.c.b16 %v678, %v676
  %v759 = vpack.c.b16 %v681, %v679
  %v760 = vpack.c.b16 %v682, %v680
  %v761 = vpack.c.b16 %v685, %v683
  %v762 = vpack.c.b16 %v686, %v684
  %v763 = vpack.c.b16 %v689, %v687
  %v764 = vpack.c.b16 %v690, %v688
  %v765 = vpack.c.b16 %v693, %v691
  %v766 = vpack.c.b16 %v694, %v692
  %v767 = vpack.c.b16 %v697, %v695
  %v768 = vpack.c.b16 %v698, %v696
  %v769 = vpack.c.b16 %v701, %v699
  %v770 = vpack.c.b16 %v702, %v700
  %v771 = vpack.c.b16 %v705, %v703
  %v772 = vpack.c.b16 %v706, %v704
  %v773 = vpack.c.b16 %v709, %v707
  %v774 = vpack.c.b16 %v710, %v708
  %v775 = vpack.c.b16 %v713, %v711
  %v776 = vpack.c.b16 %v714, %v712
  %v777 = vpack.c.b16 %v717, %v715
  %v778 = vpack.c.b16 %v718, %v716
  %v779 = vpack.c.b16 %v721, %v719
  %v780 = vpack.c.b16 %v722, %v720
  %v781 = vpack.c.b16 %v725, %v723
  %v782 = vpack.c.b16 %v726, %v724
  %v783 = vpack.c.b16 %v729, %v727
  %v784 = vpack.c.b16 %v730, %v728
  %v785 = vpack.c.b16 %v733, %v731
  %v786 = vpack.c.b16 %v734, %v732
  %v787 = vpack.c.b16 %v737, %v735
  %v788 = vpack.c.b16 %v738, %v736
  %v789 = vpack.c.b16 %v741, %v739
  %v790 = vpack.c.b16 %v742, %v740
  %839 = vmatprep.subr.bf16.mxu0 %v758
  %840 = vmatpush1.bf16.msra.mxu0 %v757
  %841 = vmatprep.subr.bf16.mxu0 %v756
  %842 = vmatpush1.bf16.msra.mxu0 %v755
  %843 = vmatprep.subr.bf16.mxu0 %v754
  %844 = vmatpush1.bf16.msra.mxu0 %v753
  %845 = vmatprep.subr.bf16.mxu0 %v752
  %846 = vmatpush1.bf16.msra.mxu0 %v751
  %847 = vmatprep.subr.bf16.mxu0 %v750
  %848 = vmatpush1.bf16.msra.mxu0 %v749
  %849 = vmatprep.subr.bf16.mxu0 %v748
  %850 = vmatpush1.bf16.msra.mxu0 %v747
  %851 = vmatprep.subr.bf16.mxu0 %v746
  %852 = vmatpush1.bf16.msra.mxu0 %v745
  %853 = vmatprep.subr.bf16.mxu0 %v744
  %854 = vmatpush1.bf16.msra.mxu0 %v743
  %855 = vmatprep.subr.bf16.mxu0 %v774
  %856 = vmatpush2.bf16.msra.mxu0 %v773
  %857 = vmatprep.subr.bf16.mxu0 %v772
  %858 = vmatpush2.bf16.msra.mxu0 %v771
  %859 = vmatprep.subr.bf16.mxu0 %v770
  %860 = vmatpush2.bf16.msra.mxu0 %v769
  %861 = vmatprep.subr.bf16.mxu0 %v768
  %862 = vmatpush2.bf16.msra.mxu0 %v767
  %863 = vmatprep.subr.bf16.mxu0 %v766
  %864 = vmatpush2.bf16.msra.mxu0 %v765
  %865 = vmatprep.subr.bf16.mxu0 %v764
  %866 = vmatpush2.bf16.msra.mxu0 %v763
  %867 = vmatprep.subr.bf16.mxu0 %v762
  %868 = vmatpush2.bf16.msra.mxu0 %v761
  %869 = vmatprep.subr.bf16.mxu0 %v760
  %870 = vmatpush2.bf16.msra.mxu0 %v759
  %871 = vmatprep.mubr.bf16.mxu0 %v582
  %872 = vmatmul.mubr.bf16.gmra.mxu0 %v581
  %v873 = vpop.f32.mrf.mxu0
  %v874 = vadd.f32 %v530, %v873
  %v875 = vpop.f32.mrf.mxu0
  %v876 = vadd.f32 %v532, %v875
  %v877 = vpop.f32.mrf.mxu0
  %v878 = vadd.f32 %v534, %v877
  %v879 = vpop.f32.mrf.mxu0
  %v880 = vadd.f32 %v536, %v879
  %881 = vmatprep.mubr.bf16.mxu0 %v585
  %882 = vmatmul.mubr.bf16.gmra.mxu0 %v584
  %v883 = vpop.f32.mrf.mxu0
  %v884 = vadd.f32 %v540, %v883
  %v885 = vpop.f32.mrf.mxu0
  %v886 = vadd.f32 %v542, %v885
  %v887 = vpop.f32.mrf.mxu0
  %v888 = vadd.f32 %v544, %v887
  %v889 = vpop.f32.mrf.mxu0
  %v890 = vadd.f32 %v546, %v889
  %891 = vmatprep.mubr.bf16.mxu0 %v588
  %892 = vmatmul.mubr.bf16.gmra.mxu0 %v587
  %v893 = vpop.f32.mrf.mxu0
  %v894 = vadd.f32 %v550, %v893
  %v895 = vpop.f32.mrf.mxu0
  %v896 = vadd.f32 %v552, %v895
  %v897 = vpop.f32.mrf.mxu0
  %v898 = vpop.f32.mrf.mxu0
  %899 = vdwg.mxu0
  %900 = vmatprep.subr.bf16.mxu0 %v790
  %901 = vmatpush1.bf16.msra.mxu0 %v789
  %902 = vmatprep.subr.bf16.mxu0 %v788
  %903 = vmatpush1.bf16.msra.mxu0 %v787
  %904 = vmatprep.subr.bf16.mxu0 %v786
  %905 = vmatpush1.bf16.msra.mxu0 %v785
  %906 = vmatprep.subr.bf16.mxu0 %v784
  %907 = vmatpush1.bf16.msra.mxu0 %v783
  %908 = vmatprep.subr.bf16.mxu0 %v782
  %909 = vmatpush1.bf16.msra.mxu0 %v781
  %910 = vmatprep.subr.bf16.mxu0 %v780
  %911 = vmatpush1.bf16.msra.mxu0 %v779
  %912 = vmatprep.subr.bf16.mxu0 %v778
  %913 = vmatpush1.bf16.msra.mxu0 %v777
  %914 = vmatprep.subr.bf16.mxu0 %v776
  %915 = vmatpush1.bf16.msra.mxu0 %v775
  %916 = vmatprep.subr.bf16.mxu0 0
  %917 = vmatpush2.bf16.msra.mxu0 0
  %918 = vmatprep.subr.bf16.mxu0 0
  %919 = vmatpush2.bf16.msra.mxu0 0
  %920 = vmatprep.subr.bf16.mxu0 0
  %921 = vmatpush2.bf16.msra.mxu0 0
  %922 = vmatprep.subr.bf16.mxu0 0
  %923 = vmatpush2.bf16.msra.mxu0 0
  %924 = vmatprep.subr.bf16.mxu0 0
  %925 = vmatpush2.bf16.msra.mxu0 0
  %926 = vmatprep.subr.bf16.mxu0 0
  %927 = vmatpush2.bf16.msra.mxu0 0
  %928 = vmatprep.subr.bf16.mxu0 0
  %929 = vmatpush2.bf16.msra.mxu0 0
  %930 = vmatprep.subr.bf16.mxu0 0
  %931 = vmatpush2.bf16.msra.mxu0 0
  %932 = vmatprep.mubr.bf16.mxu0 0
  %933 = vmatmul.mubr.bf16.gmra.mxu0 %v583
  %v934 = vpop.f32.mrf.mxu0
  %v935 = vadd.f32 %v874, %v934
  %v936 = vpop.f32.mrf.mxu0
  %v937 = vadd.f32 %v876, %v936
  %v938 = vpop.f32.mrf.mxu0
  %v939 = vadd.f32 %v878, %v938
  %v940 = vpop.f32.mrf.mxu0
  %v941 = vadd.f32 %v880, %v940
  %942 = vmatprep.mubr.bf16.mxu0 0
  %943 = vmatmul.mubr.bf16.gmra.mxu0 %v586
  %v944 = vpop.f32.mrf.mxu0
  %v945 = vadd.f32 %v884, %v944
  %v946 = vpop.f32.mrf.mxu0
  %v947 = vadd.f32 %v886, %v946
  %v948 = vpop.f32.mrf.mxu0
  %v949 = vadd.f32 %v888, %v948
  %v950 = vpop.f32.mrf.mxu0
  %v951 = vadd.f32 %v890, %v950
  %952 = vmatprep.mubr.bf16.mxu0 0
  %953 = vmatmul.mubr.bf16.gmra.mxu0 %v589
  %v954 = vpop.f32.mrf.mxu0
  %v955 = vadd.f32 %v894, %v954
  %v956 = vpop.f32.mrf.mxu0
  %v957 = vadd.f32 %v896, %v956
  %v958 = vpop.f32.mrf.mxu0
  %v959 = vpop.f32.mrf.mxu0
  %960 = vdwg.mxu0
  %s961 = scalar_lea.vmem %s0, 120
  %v962 = vld [vmem:[%s961] sm:$0xff]
  %v963 = vld [vmem:[%s961 + $0x8] sm:$0xf]
  %v964 = vld [vmem:[%s961 + $0xc] sm:$0xff]
  %v965 = vld [vmem:[%s961 + $0x14] sm:$0xf]
  %v966 = vld [vmem:[%s961 + $0x18] sm:$0xff]
  %v967 = vld [vmem:[%s961 + $0x20] sm:$0xf]
  %v968 = vld [vmem:[%s961 + $0x24] sm:$0xff]
  %v969 = vld [vmem:[%s961 + $0x2c] sm:$0xf]
  %v970 = vld [vmem:[%s961 + $0x30] sm:$0x33]
  %v971 = vld [vmem:[%s961 + $0x38] sm:$0x3]
  %s972 = scalar_lea.vmem %s1, 768
  %v973 = vld [vmem:[%s972] sm:$0xff]
  %v974 = vld [vmem:[%s972 + $0x8] sm:$0xff]
  %v975 = vld [vmem:[%s972 + $0x10] sm:$0xff]
  %v976 = vld [vmem:[%s972 + $0x18] sm:$0xff]
  %v977 = vld [vmem:[%s972 + $0x20] sm:$0xff]
  %v978 = vld [vmem:[%s972 + $0x28] sm:$0xff]
  %v979 = vld [vmem:[%s972 + $0x30] sm:$0xff]
  %v980 = vld [vmem:[%s972 + $0x38] sm:$0xff]
  %v981 = vld [vmem:[%s972 + $0x40] sm:$0xff]
  %v982 = vld [vmem:[%s972 + $0x48] sm:$0xff]
  %v983 = vld [vmem:[%s972 + $0x50] sm:$0xff]
  %v984 = vld [vmem:[%s972 + $0x58] sm:$0xff]
  %v985 = vld [vmem:[%s972 + $0x60] sm:$0xff]
  %v986 = vld [vmem:[%s972 + $0x68] sm:$0xff]
  %v987 = vld [vmem:[%s972 + $0x70] sm:$0xff]
  %v988 = vld [vmem:[%s972 + $0x78] sm:$0xff]
  %v989 = vld [vmem:[%s972 + $0x80] sm:$0xff]
  %v990 = vld [vmem:[%s972 + $0x88] sm:$0xff]
  %v991 = vld [vmem:[%s972 + $0x90] sm:$0xff]
  %v992 = vld [vmem:[%s972 + $0x98] sm:$0xff]
  %v993 = vld [vmem:[%s972 + $0xa0] sm:$0xff]
  %v994 = vld [vmem:[%s972 + $0xa8] sm:$0xff]
  %v995 = vld [vmem:[%s972 + $0xb0] sm:$0xff]
  %v996 = vld [vmem:[%s972 + $0xb8] sm:$0xff]
  %v997 = vld [vmem:[%s972 + $0xc0] sm:$0xff]
  %v998 = vld [vmem:[%s972 + $0xc8] sm:$0xff]
  %v999 = vld [vmem:[%s972 + $0xd0] sm:$0xff]
  %v1000 = vld [vmem:[%s972 + $0xd8] sm:$0xff]
  %v1001 = vld [vmem:[%s972 + $0xe0] sm:$0xff]
  %v1002 = vld [vmem:[%s972 + $0xe8] sm:$0xff]
  %v1003 = vld [vmem:[%s972 + $0xf0] sm:$0xff]
  %v1004 = vld [vmem:[%s972 + $0xf8] sm:$0xff]
  %v1005 = vld [vmem:[%s972 + $0x100] sm:$0xff]
  %v1006 = vld [vmem:[%s972 + $0x108] sm:$0xff]
  %v1007 = vld [vmem:[%s972 + $0x110] sm:$0xff]
  %v1008 = vld [vmem:[%s972 + $0x118] sm:$0xff]
  %v1009 = vld [vmem:[%s972 + $0x120] sm:$0xff]
  %v1010 = vld [vmem:[%s972 + $0x128] sm:$0xff]
  %v1011 = vld [vmem:[%s972 + $0x130] sm:$0xff]
  %v1012 = vld [vmem:[%s972 + $0x138] sm:$0xff]
  %v1013 = vld [vmem:[%s972 + $0x140] sm:$0xff]
  %v1014 = vld [vmem:[%s972 + $0x148] sm:$0xff]
  %v1015 = vld [vmem:[%s972 + $0x150] sm:$0xff]
  %v1016 = vld [vmem:[%s972 + $0x158] sm:$0xff]
  %v1017 = vld [vmem:[%s972 + $0x160] sm:$0xff]
  %v1018 = vld [vmem:[%s972 + $0x168] sm:$0xff]
  %v1019 = vld [vmem:[%s972 + $0x170] sm:$0xff]
  %v1020 = vld [vmem:[%s972 + $0x178] sm:$0xff]
  %v1031 = vunpack.c.l.b16 %v962
  %v1032 = vunpack.c.h.b16 %v962
  %v1033 = vunpack.c.l.b16 %v963
  %v1034 = vunpack.c.l.b16 %v964
  %v1035 = vunpack.c.h.b16 %v964
  %v1036 = vunpack.c.l.b16 %v965
  %v1037 = vunpack.c.l.b16 %v966
  %v1038 = vunpack.c.h.b16 %v966
  %v1039 = vunpack.c.l.b16 %v967
  %v1040 = vunpack.c.l.b16 %v968
  %v1041 = vunpack.c.h.b16 %v968
  %v1042 = vunpack.c.l.b16 %v969
  %v1043 = vunpack.c.l.b16 %v970
  %v1044 = vunpack.c.h.b16 %v970
  %v1045 = vunpack.c.l.b16 %v971
  %v1046 = vpack.c.b16 %v1034, %v1031
  %v1047 = vpack.c.b16 %v1035, %v1032
  %v1048 = vpack.c.b16 %v1036, %v1033
  %v1049 = vpack.c.b16 %v1040, %v1037
  %v1050 = vpack.c.b16 %v1041, %v1038
  %v1051 = vpack.c.b16 %v1042, %v1039
  %v1052 = vpack.c.b16 %v1043, %v1043
  %v1053 = vpack.c.b16 %v1044, %v1044
  %v1054 = vpack.c.b16 %v1045, %v1045
  %v1112 = vunpack.c.l.b16 %v973
  %v1113 = vunpack.c.h.b16 %v973
  %v1114 = vunpack.c.l.b16 %v974
  %v1115 = vunpack.c.h.b16 %v974
  %v1116 = vunpack.c.l.b16 %v975
  %v1117 = vunpack.c.h.b16 %v975
  %v1118 = vunpack.c.l.b16 %v976
  %v1119 = vunpack.c.h.b16 %v976
  %v1120 = vunpack.c.l.b16 %v977
  %v1121 = vunpack.c.h.b16 %v977
  %v1122 = vunpack.c.l.b16 %v978
  %v1123 = vunpack.c.h.b16 %v978
  %v1124 = vunpack.c.l.b16 %v979
  %v1125 = vunpack.c.h.b16 %v979
  %v1126 = vunpack.c.l.b16 %v980
  %v1127 = vunpack.c.h.b16 %v980
  %v1128 = vunpack.c.l.b16 %v981
  %v1129 = vunpack.c.h.b16 %v981
  %v1130 = vunpack.c.l.b16 %v982
  %v1131 = vunpack.c.h.b16 %v982
  %v1132 = vunpack.c.l.b16 %v983
  %v1133 = vunpack.c.h.b16 %v983
  %v1134 = vunpack.c.l.b16 %v984
  %v1135 = vunpack.c.h.b16 %v984
  %v1136 = vunpack.c.l.b16 %v985
  %v1137 = vunpack.c.h.b16 %v985
  %v1138 = vunpack.c.l.b16 %v986
  %v1139 = vunpack.c.h.b16 %v986
  %v1140 = vunpack.c.l.b16 %v987
  %v1141 = vunpack.c.h.b16 %v987
  %v1142 = vunpack.c.l.b16 %v988
  %v1143 = vunpack.c.h.b16 %v988
  %v1144 = vunpack.c.l.b16 %v989
  %v1145 = vunpack.c.h.b16 %v989
  %v1146 = vunpack.c.l.b16 %v990
  %v1147 = vunpack.c.h.b16 %v990
  %v1148 = vunpack.c.l.b16 %v991
  %v1149 = vunpack.c.h.b16 %v991
  %v1150 = vunpack.c.l.b16 %v992
  %v1151 = vunpack.c.h.b16 %v992
  %v1152 = vunpack.c.l.b16 %v993
  %v1153 = vunpack.c.h.b16 %v993
  %v1154 = vunpack.c.l.b16 %v994
  %v1155 = vunpack.c.h.b16 %v994
  %v1156 = vunpack.c.l.b16 %v995
  %v1157 = vunpack.c.h.b16 %v995
  %v1158 = vunpack.c.l.b16 %v996
  %v1159 = vunpack.c.h.b16 %v996
  %v1160 = vunpack.c.l.b16 %v997
  %v1161 = vunpack.c.h.b16 %v997
  %v1162 = vunpack.c.l.b16 %v998
  %v1163 = vunpack.c.h.b16 %v998
  %v1164 = vunpack.c.l.b16 %v999
  %v1165 = vunpack.c.h.b16 %v999
  %v1166 = vunpack.c.l.b16 %v1000
  %v1167 = vunpack.c.h.b16 %v1000
  %v1168 = vunpack.c.l.b16 %v1001
  %v1169 = vunpack.c.h.b16 %v1001
  %v1170 = vunpack.c.l.b16 %v1002
  %v1171 = vunpack.c.h.b16 %v1002
  %v1172 = vunpack.c.l.b16 %v1003
  %v1173 = vunpack.c.h.b16 %v1003
  %v1174 = vunpack.c.l.b16 %v1004
  %v1175 = vunpack.c.h.b16 %v1004
  %v1176 = vunpack.c.l.b16 %v1005
  %v1177 = vunpack.c.h.b16 %v1005
  %v1178 = vunpack.c.l.b16 %v1006
  %v1179 = vunpack.c.h.b16 %v1006
  %v1180 = vunpack.c.l.b16 %v1007
  %v1181 = vunpack.c.h.b16 %v1007
  %v1182 = vunpack.c.l.b16 %v1008
  %v1183 = vunpack.c.h.b16 %v1008
  %v1184 = vunpack.c.l.b16 %v1009
  %v1185 = vunpack.c.h.b16 %v1009
  %v1186 = vunpack.c.l.b16 %v1010
  %v1187 = vunpack.c.h.b16 %v1010
  %v1188 = vunpack.c.l.b16 %v1011
  %v1189 = vunpack.c.h.b16 %v1011
  %v1190 = vunpack.c.l.b16 %v1012
  %v1191 = vunpack.c.h.b16 %v1012
  %v1192 = vunpack.c.l.b16 %v1013
  %v1193 = vunpack.c.h.b16 %v1013
  %v1194 = vunpack.c.l.b16 %v1014
  %v1195 = vunpack.c.h.b16 %v1014
  %v1196 = vunpack.c.l.b16 %v1015
  %v1197 = vunpack.c.h.b16 %v1015
  %v1198 = vunpack.c.l.b16 %v1016
  %v1199 = vunpack.c.h.b16 %v1016
  %v1200 = vunpack.c.l.b16 %v1017
  %v1201 = vunpack.c.h.b16 %v1017
  %v1202 = vunpack.c.l.b16 %v1018
  %v1203 = vunpack.c.h.b16 %v1018
  %v1204 = vunpack.c.l.b16 %v1019
  %v1205 = vunpack.c.h.b16 %v1019
  %v1206 = vunpack.c.l.b16 %v1020
  %v1207 = vunpack.c.h.b16 %v1020
  %v1208 = vpack.c.b16 %v1114, %v1112
  %v1209 = vpack.c.b16 %v1115, %v1113
  %v1210 = vpack.c.b16 %v1118, %v1116
  %v1211 = vpack.c.b16 %v1119, %v1117
  %v1212 = vpack.c.b16 %v1122, %v1120
  %v1213 = vpack.c.b16 %v1123, %v1121
  %v1214 = vpack.c.b16 %v1126, %v1124
  %v1215 = vpack.c.b16 %v1127, %v1125
  %v1216 = vpack.c.b16 %v1130, %v1128
  %v1217 = vpack.c.b16 %v1131, %v1129
  %v1218 = vpack.c.b16 %v1134, %v1132
  %v1219 = vpack.c.b16 %v1135, %v1133
  %v1220 = vpack.c.b16 %v1138, %v1136
  %v1221 = vpack.c.b16 %v1139, %v1137
  %v1222 = vpack.c.b16 %v1142, %v1140
  %v1223 = vpack.c.b16 %v1143, %v1141
  %v1224 = vpack.c.b16 %v1146, %v1144
  %v1225 = vpack.c.b16 %v1147, %v1145
  %v1226 = vpack.c.b16 %v1150, %v1148
  %v1227 = vpack.c.b16 %v1151, %v1149
  %v1228 = vpack.c.b16 %v1154, %v1152
  %v1229 = vpack.c.b16 %v1155, %v1153
  %v1230 = vpack.c.b16 %v1158, %v1156
  %v1231 = vpack.c.b16 %v1159, %v1157
  %v1232 = vpack.c.b16 %v1162, %v1160
  %v1233 = vpack.c.b16 %v1163, %v1161
  %v1234 = vpack.c.b16 %v1166, %v1164
  %v1235 = vpack.c.b16 %v1167, %v1165
  %v1236 = vpack.c.b16 %v1170, %v1168
  %v1237 = vpack.c.b16 %v1171, %v1169
  %v1238 = vpack.c.b16 %v1174, %v1172
  %v1239 = vpack.c.b16 %v1175, %v1173
  %v1240 = vpack.c.b16 %v1178, %v1176
  %v1241 = vpack.c.b16 %v1179, %v1177
  %v1242 = vpack.c.b16 %v1182, %v1180
  %v1243 = vpack.c.b16 %v1183, %v1181
  %v1244 = vpack.c.b16 %v1186, %v1184
  %v1245 = vpack.c.b16 %v1187, %v1185
  %v1246 = vpack.c.b16 %v1190, %v1188
  %v1247 = vpack.c.b16 %v1191, %v1189
  %v1248 = vpack.c.b16 %v1194, %v1192
  %v1249 = vpack.c.b16 %v1195, %v1193
  %v1250 = vpack.c.b16 %v1198, %v1196
  %v1251 = vpack.c.b16 %v1199, %v1197
  %v1252 = vpack.c.b16 %v1202, %v1200
  %v1253 = vpack.c.b16 %v1203, %v1201
  %v1254 = vpack.c.b16 %v1206, %v1204
  %v1255 = vpack.c.b16 %v1207, %v1205
  %1304 = vmatprep.subr.bf16.mxu0 %v1223
  %1305 = vmatpush1.bf16.msra.mxu0 %v1222
  %1306 = vmatprep.subr.bf16.mxu0 %v1221
  %1307 = vmatpush1.bf16.msra.mxu0 %v1220
  %1308 = vmatprep.subr.bf16.mxu0 %v1219
  %1309 = vmatpush1.bf16.msra.mxu0 %v1218
  %1310 = vmatprep.subr.bf16.mxu0 %v1217
  %1311 = vmatpush1.bf16.msra.mxu0 %v1216
  %1312 = vmatprep.subr.bf16.mxu0 %v1215
  %1313 = vmatpush1.bf16.msra.mxu0 %v1214
  %1314 = vmatprep.subr.bf16.mxu0 %v1213
  %1315 = vmatpush1.bf16.msra.mxu0 %v1212
  %1316 = vmatprep.subr.bf16.mxu0 %v1211
  %1317 = vmatpush1.bf16.msra.mxu0 %v1210
  %1318 = vmatprep.subr.bf16.mxu0 %v1209
  %1319 = vmatpush1.bf16.msra.mxu0 %v1208
  %1320 = vmatprep.subr.bf16.mxu0 %v1239
  %1321 = vmatpush2.bf16.msra.mxu0 %v1238
  %1322 = vmatprep.subr.bf16.mxu0 %v1237
  %1323 = vmatpush2.bf16.msra.mxu0 %v1236
  %1324 = vmatprep.subr.bf16.mxu0 %v1235
  %1325 = vmatpush2.bf16.msra.mxu0 %v1234
  %1326 = vmatprep.subr.bf16.mxu0 %v1233
  %1327 = vmatpush2.bf16.msra.mxu0 %v1232
  %1328 = vmatprep.subr.bf16.mxu0 %v1231
  %1329 = vmatpush2.bf16.msra.mxu0 %v1230
  %1330 = vmatprep.subr.bf16.mxu0 %v1229
  %1331 = vmatpush2.bf16.msra.mxu0 %v1228
  %1332 = vmatprep.subr.bf16.mxu0 %v1227
  %1333 = vmatpush2.bf16.msra.mxu0 %v1226
  %1334 = vmatprep.subr.bf16.mxu0 %v1225
  %1335 = vmatpush2.bf16.msra.mxu0 %v1224
  %1336 = vmatprep.mubr.bf16.mxu0 %v1047
  %1337 = vmatmul.mubr.bf16.gmra.mxu0 %v1046
  %v1338 = vpop.f32.mrf.mxu0
  %v1339 = vadd.f32 0.0, %v1338
  %v1340 = vpop.f32.mrf.mxu0
  %v1341 = vadd.f32 0.0, %v1340
  %v1342 = vpop.f32.mrf.mxu0
  %v1343 = vadd.f32 0.0, %v1342
  %v1344 = vpop.f32.mrf.mxu0
  %v1345 = vadd.f32 0.0, %v1344
  %1346 = vmatprep.mubr.bf16.mxu0 %v1050
  %1347 = vmatmul.mubr.bf16.gmra.mxu0 %v1049
  %v1348 = vpop.f32.mrf.mxu0
  %v1349 = vadd.f32 0.0, %v1348
  %v1350 = vpop.f32.mrf.mxu0
  %v1351 = vadd.f32 0.0, %v1350
  %v1352 = vpop.f32.mrf.mxu0
  %v1353 = vadd.f32 0.0, %v1352
  %v1354 = vpop.f32.mrf.mxu0
  %v1355 = vadd.f32 0.0, %v1354
  %1356 = vmatprep.mubr.bf16.mxu0 %v1053
  %1357 = vmatmul.mubr.bf16.gmra.mxu0 %v1052
  %v1358 = vpop.f32.mrf.mxu0
  %v1359 = vadd.f32 0.0, %v1358
  %v1360 = vpop.f32.mrf.mxu0
  %v1361 = vadd.f32 0.0, %v1360
  %v1362 = vpop.f32.mrf.mxu0
  %v1363 = vpop.f32.mrf.mxu0
  %1364 = vdwg.mxu0
  %1365 = vmatprep.subr.bf16.mxu0 %v1255
  %1366 = vmatpush1.bf16.msra.mxu0 %v1254
  %1367 = vmatprep.subr.bf16.mxu0 %v1253
  %1368 = vmatpush1.bf16.msra.mxu0 %v1252
  %1369 = vmatprep.subr.bf16.mxu0 %v1251
  %1370 = vmatpush1.bf16.msra.mxu0 %v1250
  %1371 = vmatprep.subr.bf16.mxu0 %v1249
  %1372 = vmatpush1.bf16.msra.mxu0 %v1248
  %1373 = vmatprep.subr.bf16.mxu0 %v1247
  %1374 = vmatpush1.bf16.msra.mxu0 %v1246
  %1375 = vmatprep.subr.bf16.mxu0 %v1245
  %1376 = vmatpush1.bf16.msra.mxu0 %v1244
  %1377 = vmatprep.subr.bf16.mxu0 %v1243
  %1378 = vmatpush1.bf16.msra.mxu0 %v1242
  %1379 = vmatprep.subr.bf16.mxu0 %v1241
  %1380 = vmatpush1.bf16.msra.mxu0 %v1240
  %1381 = vmatprep.subr.bf16.mxu0 0
  %1382 = vmatpush2.bf16.msra.mxu0 0
  %1383 = vmatprep.subr.bf16.mxu0 0
  %1384 = vmatpush2.bf16.msra.mxu0 0
  %1385 = vmatprep.subr.bf16.mxu0 0
  %1386 = vmatpush2.bf16.msra.mxu0 0
  %1387 = vmatprep.subr.bf16.mxu0 0
  %1388 = vmatpush2.bf16.msra.mxu0 0
  %1389 = vmatprep.subr.bf16.mxu0 0
  %1390 = vmatpush2.bf16.msra.mxu0 0
  %1391 = vmatprep.subr.bf16.mxu0 0
  %1392 = vmatpush2.bf16.msra.mxu0 0
  %1393 = vmatprep.subr.bf16.mxu0 0
  %1394 = vmatpush2.bf16.msra.mxu0 0
  %1395 = vmatprep.subr.bf16.mxu0 0
  %1396 = vmatpush2.bf16.msra.mxu0 0
  %1397 = vmatprep.mubr.bf16.mxu0 0
  %1398 = vmatmul.mubr.bf16.gmra.mxu0 %v1048
  %v1399 = vpop.f32.mrf.mxu0
  %v1400 = vadd.f32 %v1339, %v1399
  %v1401 = vpop.f32.mrf.mxu0
  %v1402 = vadd.f32 %v1341, %v1401
  %v1403 = vpop.f32.mrf.mxu0
  %v1404 = vadd.f32 %v1343, %v1403
  %v1405 = vpop.f32.mrf.mxu0
  %v1406 = vadd.f32 %v1345, %v1405
  %1407 = vmatprep.mubr.bf16.mxu0 0
  %1408 = vmatmul.mubr.bf16.gmra.mxu0 %v1051
  %v1409 = vpop.f32.mrf.mxu0
  %v1410 = vadd.f32 %v1349, %v1409
  %v1411 = vpop.f32.mrf.mxu0
  %v1412 = vadd.f32 %v1351, %v1411
  %v1413 = vpop.f32.mrf.mxu0
  %v1414 = vadd.f32 %v1353, %v1413
  %v1415 = vpop.f32.mrf.mxu0
  %v1416 = vadd.f32 %v1355, %v1415
  %1417 = vmatprep.mubr.bf16.mxu0 0
  %1418 = vmatmul.mubr.bf16.gmra.mxu0 %v1054
  %v1419 = vpop.f32.mrf.mxu0
  %v1420 = vadd.f32 %v1359, %v1419
  %v1421 = vpop.f32.mrf.mxu0
  %v1422 = vadd.f32 %v1361, %v1421
  %v1423 = vpop.f32.mrf.mxu0
  %v1424 = vpop.f32.mrf.mxu0
  %1425 = vdwg.mxu0
  %v1426 = vadd.f32 %v935, %v1400
  %v1427 = vadd.f32 %v937, %v1402
  %v1428 = vadd.f32 %v939, %v1404
  %v1429 = vadd.f32 %v941, %v1406
  %v1430 = vadd.f32 %v945, %v1410
  %v1431 = vadd.f32 %v947, %v1412
  %v1432 = vadd.f32 %v949, %v1414
  %v1433 = vadd.f32 %v951, %v1416
  %v1434 = vadd.f32 %v955, %v1420
  %v1435 = vadd.f32 %v957, %v1422
  %s1436 = scalar_lea.vmem %s0, 180
  %v1437 = vld [vmem:[%s1436] sm:$0xff]
  %v1438 = vld [vmem:[%s1436 + $0x8] sm:$0xf]
  %v1439 = vld [vmem:[%s1436 + $0xc] sm:$0xff]
  %v1440 = vld [vmem:[%s1436 + $0x14] sm:$0xf]
  %v1441 = vld [vmem:[%s1436 + $0x18] sm:$0xff]
  %v1442 = vld [vmem:[%s1436 + $0x20] sm:$0xf]
  %v1443 = vld [vmem:[%s1436 + $0x24] sm:$0xff]
  %v1444 = vld [vmem:[%s1436 + $0x2c] sm:$0xf]
  %v1445 = vld [vmem:[%s1436 + $0x30] sm:$0x33]
  %v1446 = vld [vmem:[%s1436 + $0x38] sm:$0x3]
  %s1447 = scalar_lea.vmem %s1, 1152
  %v1448 = vld [vmem:[%s1447] sm:$0xff]
  %v1449 = vld [vmem:[%s1447 + $0x8] sm:$0xff]
  %v1450 = vld [vmem:[%s1447 + $0x10] sm:$0xff]
  %v1451 = vld [vmem:[%s1447 + $0x18] sm:$0xff]
  %v1452 = vld [vmem:[%s1447 + $0x20] sm:$0xff]
  %v1453 = vld [vmem:[%s1447 + $0x28] sm:$0xff]
  %v1454 = vld [vmem:[%s1447 + $0x30] sm:$0xff]
  %v1455 = vld [vmem:[%s1447 + $0x38] sm:$0xff]
  %v1456 = vld [vmem:[%s1447 + $0x40] sm:$0xff]
  %v1457 = vld [vmem:[%s1447 + $0x48] sm:$0xff]
  %v1458 = vld [vmem:[%s1447 + $0x50] sm:$0xff]
  %v1459 = vld [vmem:[%s1447 + $0x58] sm:$0xff]
  %v1460 = vld [vmem:[%s1447 + $0x60] sm:$0xff]
  %v1461 = vld [vmem:[%s1447 + $0x68] sm:$0xff]
  %v1462 = vld [vmem:[%s1447 + $0x70] sm:$0xff]
  %v1463 = vld [vmem:[%s1447 + $0x78] sm:$0xff]
  %v1464 = vld [vmem:[%s1447 + $0x80] sm:$0xff]
  %v1465 = vld [vmem:[%s1447 + $0x88] sm:$0xff]
  %v1466 = vld [vmem:[%s1447 + $0x90] sm:$0xff]
  %v1467 = vld [vmem:[%s1447 + $0x98] sm:$0xff]
  %v1468 = vld [vmem:[%s1447 + $0xa0] sm:$0xff]
  %v1469 = vld [vmem:[%s1447 + $0xa8] sm:$0xff]
  %v1470 = vld [vmem:[%s1447 + $0xb0] sm:$0xff]
  %v1471 = vld [vmem:[%s1447 + $0xb8] sm:$0xff]
  %v1472 = vld [vmem:[%s1447 + $0xc0] sm:$0xff]
  %v1473 = vld [vmem:[%s1447 + $0xc8] sm:$0xff]
  %v1474 = vld [vmem:[%s1447 + $0xd0] sm:$0xff]
  %v1475 = vld [vmem:[%s1447 + $0xd8] sm:$0xff]
  %v1476 = vld [vmem:[%s1447 + $0xe0] sm:$0xff]
  %v1477 = vld [vmem:[%s1447 + $0xe8] sm:$0xff]
  %v1478 = vld [vmem:[%s1447 + $0xf0] sm:$0xff]
  %v1479 = vld [vmem:[%s1447 + $0xf8] sm:$0xff]
  %v1480 = vld [vmem:[%s1447 + $0x100] sm:$0xff]
  %v1481 = vld [vmem:[%s1447 + $0x108] sm:$0xff]
  %v1482 = vld [vmem:[%s1447 + $0x110] sm:$0xff]
  %v1483 = vld [vmem:[%s1447 + $0x118] sm:$0xff]
  %v1484 = vld [vmem:[%s1447 + $0x120] sm:$0xff]
  %v1485 = vld [vmem:[%s1447 + $0x128] sm:$0xff]
  %v1486 = vld [vmem:[%s1447 + $0x130] sm:$0xff]
  %v1487 = vld [vmem:[%s1447 + $0x138] sm:$0xff]
  %v1488 = vld [vmem:[%s1447 + $0x140] sm:$0xff]
  %v1489 = vld [vmem:[%s1447 + $0x148] sm:$0xff]
  %v1490 = vld [vmem:[%s1447 + $0x150] sm:$0xff]
  %v1491 = vld [vmem:[%s1447 + $0x158] sm:$0xff]
  %v1492 = vld [vmem:[%s1447 + $0x160] sm:$0xff]
  %v1493 = vld [vmem:[%s1447 + $0x168] sm:$0xff]
  %v1494 = vld [vmem:[%s1447 + $0x170] sm:$0xff]
  %v1495 = vld [vmem:[%s1447 + $0x178] sm:$0xff]
  %v1506 = vunpack.c.l.b16 %v1437
  %v1507 = vunpack.c.h.b16 %v1437
  %v1508 = vunpack.c.l.b16 %v1438
  %v1509 = vunpack.c.l.b16 %v1439
  %v1510 = vunpack.c.h.b16 %v1439
  %v1511 = vunpack.c.l.b16 %v1440
  %v1512 = vunpack.c.l.b16 %v1441
  %v1513 = vunpack.c.h.b16 %v1441
  %v1514 = vunpack.c.l.b16 %v1442
  %v1515 = vunpack.c.l.b16 %v1443
  %v1516 = vunpack.c.h.b16 %v1443
  %v1517 = vunpack.c.l.b16 %v1444
  %v1518 = vunpack.c.l.b16 %v1445
  %v1519 = vunpack.c.h.b16 %v1445
  %v1520 = vunpack.c.l.b16 %v1446
  %v1521 = vpack.c.b16 %v1509, %v1506
  %v1522 = vpack.c.b16 %v1510, %v1507
  %v1523 = vpack.c.b16 %v1511, %v1508
  %v1524 = vpack.c.b16 %v1515, %v1512
  %v1525 = vpack.c.b16 %v1516, %v1513
  %v1526 = vpack.c.b16 %v1517, %v1514
  %v1527 = vpack.c.b16 %v1518, %v1518
  %v1528 = vpack.c.b16 %v1519, %v1519
  %v1529 = vpack.c.b16 %v1520, %v1520
  %v1587 = vunpack.c.l.b16 %v1448
  %v1588 = vunpack.c.h.b16 %v1448
  %v1589 = vunpack.c.l.b16 %v1449
  %v1590 = vunpack.c.h.b16 %v1449
  %v1591 = vunpack.c.l.b16 %v1450
  %v1592 = vunpack.c.h.b16 %v1450
  %v1593 = vunpack.c.l.b16 %v1451
  %v1594 = vunpack.c.h.b16 %v1451
  %v1595 = vunpack.c.l.b16 %v1452
  %v1596 = vunpack.c.h.b16 %v1452
  %v1597 = vunpack.c.l.b16 %v1453
  %v1598 = vunpack.c.h.b16 %v1453
  %v1599 = vunpack.c.l.b16 %v1454
  %v1600 = vunpack.c.h.b16 %v1454
  %v1601 = vunpack.c.l.b16 %v1455
  %v1602 = vunpack.c.h.b16 %v1455
  %v1603 = vunpack.c.l.b16 %v1456
  %v1604 = vunpack.c.h.b16 %v1456
  %v1605 = vunpack.c.l.b16 %v1457
  %v1606 = vunpack.c.h.b16 %v1457
  %v1607 = vunpack.c.l.b16 %v1458
  %v1608 = vunpack.c.h.b16 %v1458
  %v1609 = vunpack.c.l.b16 %v1459
  %v1610 = vunpack.c.h.b16 %v1459
  %v1611 = vunpack.c.l.b16 %v1460
  %v1612 = vunpack.c.h.b16 %v1460
  %v1613 = vunpack.c.l.b16 %v1461
  %v1614 = vunpack.c.h.b16 %v1461
  %v1615 = vunpack.c.l.b16 %v1462
  %v1616 = vunpack.c.h.b16 %v1462
  %v1617 = vunpack.c.l.b16 %v1463
  %v1618 = vunpack.c.h.b16 %v1463
  %v1619 = vunpack.c.l.b16 %v1464
  %v1620 = vunpack.c.h.b16 %v1464
  %v1621 = vunpack.c.l.b16 %v1465
  %v1622 = vunpack.c.h.b16 %v1465
  %v1623 = vunpack.c.l.b16 %v1466
  %v1624 = vunpack.c.h.b16 %v1466
  %v1625 = vunpack.c.l.b16 %v1467
  %v1626 = vunpack.c.h.b16 %v1467
  %v1627 = vunpack.c.l.b16 %v1468
  %v1628 = vunpack.c.h.b16 %v1468
  %v1629 = vunpack.c.l.b16 %v1469
  %v1630 = vunpack.c.h.b16 %v1469
  %v1631 = vunpack.c.l.b16 %v1470
  %v1632 = vunpack.c.h.b16 %v1470
  %v1633 = vunpack.c.l.b16 %v1471
  %v1634 = vunpack.c.h.b16 %v1471
  %v1635 = vunpack.c.l.b16 %v1472
  %v1636 = vunpack.c.h.b16 %v1472
  %v1637 = vunpack.c.l.b16 %v1473
  %v1638 = vunpack.c.h.b16 %v1473
  %v1639 = vunpack.c.l.b16 %v1474
  %v1640 = vunpack.c.h.b16 %v1474
  %v1641 = vunpack.c.l.b16 %v1475
  %v1642 = vunpack.c.h.b16 %v1475
  %v1643 = vunpack.c.l.b16 %v1476
  %v1644 = vunpack.c.h.b16 %v1476
  %v1645 = vunpack.c.l.b16 %v1477
  %v1646 = vunpack.c.h.b16 %v1477
  %v1647 = vunpack.c.l.b16 %v1478
  %v1648 = vunpack.c.h.b16 %v1478
  %v1649 = vunpack.c.l.b16 %v1479
  %v1650 = vunpack.c.h.b16 %v1479
  %v1651 = vunpack.c.l.b16 %v1480
  %v1652 = vunpack.c.h.b16 %v1480
  %v1653 = vunpack.c.l.b16 %v1481
  %v1654 = vunpack.c.h.b16 %v1481
  %v1655 = vunpack.c.l.b16 %v1482
  %v1656 = vunpack.c.h.b16 %v1482
  %v1657 = vunpack.c.l.b16 %v1483
  %v1658 = vunpack.c.h.b16 %v1483
  %v1659 = vunpack.c.l.b16 %v1484
  %v1660 = vunpack.c.h.b16 %v1484
  %v1661 = vunpack.c.l.b16 %v1485
  %v1662 = vunpack.c.h.b16 %v1485
  %v1663 = vunpack.c.l.b16 %v1486
  %v1664 = vunpack.c.h.b16 %v1486
  %v1665 = vunpack.c.l.b16 %v1487
  %v1666 = vunpack.c.h.b16 %v1487
  %v1667 = vunpack.c.l.b16 %v1488
  %v1668 = vunpack.c.h.b16 %v1488
  %v1669 = vunpack.c.l.b16 %v1489
  %v1670 = vunpack.c.h.b16 %v1489
  %v1671 = vunpack.c.l.b16 %v1490
  %v1672 = vunpack.c.h.b16 %v1490
  %v1673 = vunpack.c.l.b16 %v1491
  %v1674 = vunpack.c.h.b16 %v1491
  %v1675 = vunpack.c.l.b16 %v1492
  %v1676 = vunpack.c.h.b16 %v1492
  %v1677 = vunpack.c.l.b16 %v1493
  %v1678 = vunpack.c.h.b16 %v1493
  %v1679 = vunpack.c.l.b16 %v1494
  %v1680 = vunpack.c.h.b16 %v1494
  %v1681 = vunpack.c.l.b16 %v1495
  %v1682 = vunpack.c.h.b16 %v1495
  %v1683 = vpack.c.b16 %v1589, %v1587
  %v1684 = vpack.c.b16 %v1590, %v1588
  %v1685 = vpack.c.b16 %v1593, %v1591
  %v1686 = vpack.c.b16 %v1594, %v1592
  %v1687 = vpack.c.b16 %v1597, %v1595
  %v1688 = vpack.c.b16 %v1598, %v1596
  %v1689 = vpack.c.b16 %v1601, %v1599
  %v1690 = vpack.c.b16 %v1602, %v1600
  %v1691 = vpack.c.b16 %v1605, %v1603
  %v1692 = vpack.c.b16 %v1606, %v1604
  %v1693 = vpack.c.b16 %v1609, %v1607
  %v1694 = vpack.c.b16 %v1610, %v1608
  %v1695 = vpack.c.b16 %v1613, %v1611
  %v1696 = vpack.c.b16 %v1614, %v1612
  %v1697 = vpack.c.b16 %v1617, %v1615
  %v1698 = vpack.c.b16 %v1618, %v1616
  %v1699 = vpack.c.b16 %v1621, %v1619
  %v1700 = vpack.c.b16 %v1622, %v1620
  %v1701 = vpack.c.b16 %v1625, %v1623
  %v1702 = vpack.c.b16 %v1626, %v1624
  %v1703 = vpack.c.b16 %v1629, %v1627
  %v1704 = vpack.c.b16 %v1630, %v1628
  %v1705 = vpack.c.b16 %v1633, %v1631
  %v1706 = vpack.c.b16 %v1634, %v1632
  %v1707 = vpack.c.b16 %v1637, %v1635
  %v1708 = vpack.c.b16 %v1638, %v1636
  %v1709 = vpack.c.b16 %v1641, %v1639
  %v1710 = vpack.c.b16 %v1642, %v1640
  %v1711 = vpack.c.b16 %v1645, %v1643
  %v1712 = vpack.c.b16 %v1646, %v1644
  %v1713 = vpack.c.b16 %v1649, %v1647
  %v1714 = vpack.c.b16 %v1650, %v1648
  %v1715 = vpack.c.b16 %v1653, %v1651
  %v1716 = vpack.c.b16 %v1654, %v1652
  %v1717 = vpack.c.b16 %v1657, %v1655
  %v1718 = vpack.c.b16 %v1658, %v1656
  %v1719 = vpack.c.b16 %v1661, %v1659
  %v1720 = vpack.c.b16 %v1662, %v1660
  %v1721 = vpack.c.b16 %v1665, %v1663
  %v1722 = vpack.c.b16 %v1666, %v1664
  %v1723 = vpack.c.b16 %v1669, %v1667
  %v1724 = vpack.c.b16 %v1670, %v1668
  %v1725 = vpack.c.b16 %v1673, %v1671
  %v1726 = vpack.c.b16 %v1674, %v1672
  %v1727 = vpack.c.b16 %v1677, %v1675
  %v1728 = vpack.c.b16 %v1678, %v1676
  %v1729 = vpack.c.b16 %v1681, %v1679
  %v1730 = vpack.c.b16 %v1682, %v1680
  %1779 = vmatprep.subr.bf16.mxu0 %v1698
  %1780 = vmatpush1.bf16.msra.mxu0 %v1697
  %1781 = vmatprep.subr.bf16.mxu0 %v1696
  %1782 = vmatpush1.bf16.msra.mxu0 %v1695
  %1783 = vmatprep.subr.bf16.mxu0 %v1694
  %1784 = vmatpush1.bf16.msra.mxu0 %v1693
  %1785 = vmatprep.subr.bf16.mxu0 %v1692
  %1786 = vmatpush1.bf16.msra.mxu0 %v1691
  %1787 = vmatprep.subr.bf16.mxu0 %v1690
  %1788 = vmatpush1.bf16.msra.mxu0 %v1689
  %1789 = vmatprep.subr.bf16.mxu0 %v1688
  %1790 = vmatpush1.bf16.msra.mxu0 %v1687
  %1791 = vmatprep.subr.bf16.mxu0 %v1686
  %1792 = vmatpush1.bf16.msra.mxu0 %v1685
  %1793 = vmatprep.subr.bf16.mxu0 %v1684
  %1794 = vmatpush1.bf16.msra.mxu0 %v1683
  %1795 = vmatprep.subr.bf16.mxu0 %v1714
  %1796 = vmatpush2.bf16.msra.mxu0 %v1713
  %1797 = vmatprep.subr.bf16.mxu0 %v1712
  %1798 = vmatpush2.bf16.msra.mxu0 %v1711
  %1799 = vmatprep.subr.bf16.mxu0 %v1710
  %1800 = vmatpush2.bf16.msra.mxu0 %v1709
  %1801 = vmatprep.subr.bf16.mxu0 %v1708
  %1802 = vmatpush2.bf16.msra.mxu0 %v1707
  %1803 = vmatprep.subr.bf16.mxu0 %v1706
  %1804 = vmatpush2.bf16.msra.mxu0 %v1705
  %1805 = vmatprep.subr.bf16.mxu0 %v1704
  %1806 = vmatpush2.bf16.msra.mxu0 %v1703
  %1807 = vmatprep.subr.bf16.mxu0 %v1702
  %1808 = vmatpush2.bf16.msra.mxu0 %v1701
  %1809 = vmatprep.subr.bf16.mxu0 %v1700
  %1810 = vmatpush2.bf16.msra.mxu0 %v1699
  %1811 = vmatprep.mubr.bf16.mxu0 %v1522
  %1812 = vmatmul.mubr.bf16.gmra.mxu0 %v1521
  %v1813 = vpop.f32.mrf.mxu0
  %v1814 = vadd.f32 0.0, %v1813
  %v1815 = vpop.f32.mrf.mxu0
  %v1816 = vadd.f32 0.0, %v1815
  %v1817 = vpop.f32.mrf.mxu0
  %v1818 = vadd.f32 0.0, %v1817
  %v1819 = vpop.f32.mrf.mxu0
  %v1820 = vadd.f32 0.0, %v1819
  %1821 = vmatprep.mubr.bf16.mxu0 %v1525
  %1822 = vmatmul.mubr.bf16.gmra.mxu0 %v1524
  %v1823 = vpop.f32.mrf.mxu0
  %v1824 = vadd.f32 0.0, %v1823
  %v1825 = vpop.f32.mrf.mxu0
  %v1826 = vadd.f32 0.0, %v1825
  %v1827 = vpop.f32.mrf.mxu0
  %v1828 = vadd.f32 0.0, %v1827
  %v1829 = vpop.f32.mrf.mxu0
  %v1830 = vadd.f32 0.0, %v1829
  %1831 = vmatprep.mubr.bf16.mxu0 %v1528
  %1832 = vmatmul.mubr.bf16.gmra.mxu0 %v1527
  %v1833 = vpop.f32.mrf.mxu0
  %v1834 = vadd.f32 0.0, %v1833
  %v1835 = vpop.f32.mrf.mxu0
  %v1836 = vadd.f32 0.0, %v1835
  %v1837 = vpop.f32.mrf.mxu0
  %v1838 = vpop.f32.mrf.mxu0
  %1839 = vdwg.mxu0
  %1840 = vmatprep.subr.bf16.mxu0 %v1730
  %1841 = vmatpush1.bf16.msra.mxu0 %v1729
  %1842 = vmatprep.subr.bf16.mxu0 %v1728
  %1843 = vmatpush1.bf16.msra.mxu0 %v1727
  %1844 = vmatprep.subr.bf16.mxu0 %v1726
  %1845 = vmatpush1.bf16.msra.mxu0 %v1725
  %1846 = vmatprep.subr.bf16.mxu0 %v1724
  %1847 = vmatpush1.bf16.msra.mxu0 %v1723
  %1848 = vmatprep.subr.bf16.mxu0 %v1722
  %1849 = vmatpush1.bf16.msra.mxu0 %v1721
  %1850 = vmatprep.subr.bf16.mxu0 %v1720
  %1851 = vmatpush1.bf16.msra.mxu0 %v1719
  %1852 = vmatprep.subr.bf16.mxu0 %v1718
  %1853 = vmatpush1.bf16.msra.mxu0 %v1717
  %1854 = vmatprep.subr.bf16.mxu0 %v1716
  %1855 = vmatpush1.bf16.msra.mxu0 %v1715
  %1856 = vmatprep.subr.bf16.mxu0 0
  %1857 = vmatpush2.bf16.msra.mxu0 0
  %1858 = vmatprep.subr.bf16.mxu0 0
  %1859 = vmatpush2.bf16.msra.mxu0 0
  %1860 = vmatprep.subr.bf16.mxu0 0
  %1861 = vmatpush2.bf16.msra.mxu0 0
  %1862 = vmatprep.subr.bf16.mxu0 0
  %1863 = vmatpush2.bf16.msra.mxu0 0
  %1864 = vmatprep.subr.bf16.mxu0 0
  %1865 = vmatpush2.bf16.msra.mxu0 0
  %1866 = vmatprep.subr.bf16.mxu0 0
  %1867 = vmatpush2.bf16.msra.mxu0 0
  %1868 = vmatprep.subr.bf16.mxu0 0
  %1869 = vmatpush2.bf16.msra.mxu0 0
  %1870 = vmatprep.subr.bf16.mxu0 0
  %1871 = vmatpush2.bf16.msra.mxu0 0
  %1872 = vmatprep.mubr.bf16.mxu0 0
  %1873 = vmatmul.mubr.bf16.gmra.mxu0 %v1523
  %v1874 = vpop.f32.mrf.mxu0
  %v1875 = vadd.f32 %v1814, %v1874
  %v1876 = vpop.f32.mrf.mxu0
  %v1877 = vadd.f32 %v1816, %v1876
  %v1878 = vpop.f32.mrf.mxu0
  %v1879 = vadd.f32 %v1818, %v1878
  %v1880 = vpop.f32.mrf.mxu0
  %v1881 = vadd.f32 %v1820, %v1880
  %1882 = vmatprep.mubr.bf16.mxu0 0
  %1883 = vmatmul.mubr.bf16.gmra.mxu0 %v1526
  %v1884 = vpop.f32.mrf.mxu0
  %v1885 = vadd.f32 %v1824, %v1884
  %v1886 = vpop.f32.mrf.mxu0
  %v1887 = vadd.f32 %v1826, %v1886
  %v1888 = vpop.f32.mrf.mxu0
  %v1889 = vadd.f32 %v1828, %v1888
  %v1890 = vpop.f32.mrf.mxu0
  %v1891 = vadd.f32 %v1830, %v1890
  %1892 = vmatprep.mubr.bf16.mxu0 0
  %1893 = vmatmul.mubr.bf16.gmra.mxu0 %v1529
  %v1894 = vpop.f32.mrf.mxu0
  %v1895 = vadd.f32 %v1834, %v1894
  %v1896 = vpop.f32.mrf.mxu0
  %v1897 = vadd.f32 %v1836, %v1896
  %v1898 = vpop.f32.mrf.mxu0
  %v1899 = vpop.f32.mrf.mxu0
  %1900 = vdwg.mxu0
  %v1901 = vadd.f32 %v1426, %v1875
  %v1902 = vadd.f32 %v1427, %v1877
  %v1903 = vadd.f32 %v1428, %v1879
  %v1904 = vadd.f32 %v1429, %v1881
  %v1905 = vadd.f32 %v1430, %v1885
  %v1906 = vadd.f32 %v1431, %v1887
  %v1907 = vadd.f32 %v1432, %v1889
  %v1908 = vadd.f32 %v1433, %v1891
  %v1909 = vadd.f32 %v1434, %v1895
  %v1910 = vadd.f32 %v1435, %v1897
  %s1911 = scalar_lea.vmem %s0, 240
  %v1912 = vld [vmem:[%s1911] sm:$0xff]
  %v1913 = vld [vmem:[%s1911 + $0x8] sm:$0xf]
  %v1914 = vld [vmem:[%s1911 + $0xc] sm:$0xff]
  %v1915 = vld [vmem:[%s1911 + $0x14] sm:$0xf]
  %v1916 = vld [vmem:[%s1911 + $0x18] sm:$0xff]
  %v1917 = vld [vmem:[%s1911 + $0x20] sm:$0xf]
  %v1918 = vld [vmem:[%s1911 + $0x24] sm:$0xff]
  %v1919 = vld [vmem:[%s1911 + $0x2c] sm:$0xf]
  %v1920 = vld [vmem:[%s1911 + $0x30] sm:$0x33]
  %v1921 = vld [vmem:[%s1911 + $0x38] sm:$0x3]
  %s1922 = scalar_lea.vmem %s1, 1536
  %v1923 = vld [vmem:[%s1922] sm:$0xff]
  %v1924 = vld [vmem:[%s1922 + $0x8] sm:$0xff]
  %v1925 = vld [vmem:[%s1922 + $0x10] sm:$0xff]
  %v1926 = vld [vmem:[%s1922 + $0x18] sm:$0xff]
  %v1927 = vld [vmem:[%s1922 + $0x20] sm:$0xff]
  %v1928 = vld [vmem:[%s1922 + $0x28] sm:$0xff]
  %v1929 = vld [vmem:[%s1922 + $0x30] sm:$0xff]
  %v1930 = vld [vmem:[%s1922 + $0x38] sm:$0xff]
  %v1931 = vld [vmem:[%s1922 + $0x40] sm:$0xff]
  %v1932 = vld [vmem:[%s1922 + $0x48] sm:$0xff]
  %v1933 = vld [vmem:[%s1922 + $0x50] sm:$0xff]
  %v1934 = vld [vmem:[%s1922 + $0x58] sm:$0xff]
  %v1935 = vld [vmem:[%s1922 + $0x60] sm:$0xff]
  %v1936 = vld [vmem:[%s1922 + $0x68] sm:$0xff]
  %v1937 = vld [vmem:[%s1922 + $0x70] sm:$0xff]
  %v1938 = vld [vmem:[%s1922 + $0x78] sm:$0xff]
  %v1939 = vld [vmem:[%s1922 + $0x80] sm:$0xff]
  %v1940 = vld [vmem:[%s1922 + $0x88] sm:$0xff]
  %v1941 = vld [vmem:[%s1922 + $0x90] sm:$0xff]
  %v1942 = vld [vmem:[%s1922 + $0x98] sm:$0xff]
  %v1943 = vld [vmem:[%s1922 + $0xa0] sm:$0xff]
  %v1944 = vld [vmem:[%s1922 + $0xa8] sm:$0xff]
  %v1945 = vld [vmem:[%s1922 + $0xb0] sm:$0xff]
  %v1946 = vld [vmem:[%s1922 + $0xb8] sm:$0xff]
  %v1947 = vld [vmem:[%s1922 + $0xc0] sm:$0xff]
  %v1948 = vld [vmem:[%s1922 + $0xc8] sm:$0xff]
  %v1949 = vld [vmem:[%s1922 + $0xd0] sm:$0xff]
  %v1950 = vld [vmem:[%s1922 + $0xd8] sm:$0xff]
  %v1951 = vld [vmem:[%s1922 + $0xe0] sm:$0xff]
  %v1952 = vld [vmem:[%s1922 + $0xe8] sm:$0xff]
  %v1953 = vld [vmem:[%s1922 + $0xf0] sm:$0xff]
  %v1954 = vld [vmem:[%s1922 + $0xf8] sm:$0xff]
  %v1955 = vld [vmem:[%s1922 + $0x100] sm:$0xff]
  %v1956 = vld [vmem:[%s1922 + $0x108] sm:$0xff]
  %v1957 = vld [vmem:[%s1922 + $0x110] sm:$0xff]
  %v1958 = vld [vmem:[%s1922 + $0x118] sm:$0xff]
  %v1959 = vld [vmem:[%s1922 + $0x120] sm:$0xff]
  %v1960 = vld [vmem:[%s1922 + $0x128] sm:$0xff]
  %v1961 = vld [vmem:[%s1922 + $0x130] sm:$0xff]
  %v1962 = vld [vmem:[%s1922 + $0x138] sm:$0xff]
  %v1963 = vld [vmem:[%s1922 + $0x140] sm:$0xff]
  %v1964 = vld [vmem:[%s1922 + $0x148] sm:$0xff]
  %v1965 = vld [vmem:[%s1922 + $0x150] sm:$0xff]
  %v1966 = vld [vmem:[%s1922 + $0x158] sm:$0xff]
  %v1967 = vld [vmem:[%s1922 + $0x160] sm:$0xff]
  %v1968 = vld [vmem:[%s1922 + $0x168] sm:$0xff]
  %v1969 = vld [vmem:[%s1922 + $0x170] sm:$0xff]
  %v1970 = vld [vmem:[%s1922 + $0x178] sm:$0xff]
  %v1981 = vunpack.c.l.b16 %v1912
  %v1982 = vunpack.c.h.b16 %v1912
  %v1983 = vunpack.c.l.b16 %v1913
  %v1984 = vunpack.c.l.b16 %v1914
  %v1985 = vunpack.c.h.b16 %v1914
  %v1986 = vunpack.c.l.b16 %v1915
  %v1987 = vunpack.c.l.b16 %v1916
  %v1988 = vunpack.c.h.b16 %v1916
  %v1989 = vunpack.c.l.b16 %v1917
  %v1990 = vunpack.c.l.b16 %v1918
  %v1991 = vunpack.c.h.b16 %v1918
  %v1992 = vunpack.c.l.b16 %v1919
  %v1993 = vunpack.c.l.b16 %v1920
  %v1994 = vunpack.c.h.b16 %v1920
  %v1995 = vunpack.c.l.b16 %v1921
  %v1996 = vpack.c.b16 %v1984, %v1981
  %v1997 = vpack.c.b16 %v1985, %v1982
  %v1998 = vpack.c.b16 %v1986, %v1983
  %v1999 = vpack.c.b16 %v1990, %v1987
  %v2000 = vpack.c.b16 %v1991, %v1988
  %v2001 = vpack.c.b16 %v1992, %v1989
  %v2002 = vpack.c.b16 %v1993, %v1993
  %v2003 = vpack.c.b16 %v1994, %v1994
  %v2004 = vpack.c.b16 %v1995, %v1995
  %v2062 = vunpack.c.l.b16 %v1923
  %v2063 = vunpack.c.h.b16 %v1923
  %v2064 = vunpack.c.l.b16 %v1924
  %v2065 = vunpack.c.h.b16 %v1924
  %v2066 = vunpack.c.l.b16 %v1925
  %v2067 = vunpack.c.h.b16 %v1925
  %v2068 = vunpack.c.l.b16 %v1926
  %v2069 = vunpack.c.h.b16 %v1926
  %v2070 = vunpack.c.l.b16 %v1927
  %v2071 = vunpack.c.h.b16 %v1927
  %v2072 = vunpack.c.l.b16 %v1928
  %v2073 = vunpack.c.h.b16 %v1928
  %v2074 = vunpack.c.l.b16 %v1929
  %v2075 = vunpack.c.h.b16 %v1929
  %v2076 = vunpack.c.l.b16 %v1930
  %v2077 = vunpack.c.h.b16 %v1930
  %v2078 = vunpack.c.l.b16 %v1931
  %v2079 = vunpack.c.h.b16 %v1931
  %v2080 = vunpack.c.l.b16 %v1932
  %v2081 = vunpack.c.h.b16 %v1932
  %v2082 = vunpack.c.l.b16 %v1933
  %v2083 = vunpack.c.h.b16 %v1933
  %v2084 = vunpack.c.l.b16 %v1934
  %v2085 = vunpack.c.h.b16 %v1934
  %v2086 = vunpack.c.l.b16 %v1935
  %v2087 = vunpack.c.h.b16 %v1935
  %v2088 = vunpack.c.l.b16 %v1936
  %v2089 = vunpack.c.h.b16 %v1936
  %v2090 = vunpack.c.l.b16 %v1937
  %v2091 = vunpack.c.h.b16 %v1937
  %v2092 = vunpack.c.l.b16 %v1938
  %v2093 = vunpack.c.h.b16 %v1938
  %v2094 = vunpack.c.l.b16 %v1939
  %v2095 = vunpack.c.h.b16 %v1939
  %v2096 = vunpack.c.l.b16 %v1940
  %v2097 = vunpack.c.h.b16 %v1940
  %v2098 = vunpack.c.l.b16 %v1941
  %v2099 = vunpack.c.h.b16 %v1941
  %v2100 = vunpack.c.l.b16 %v1942
  %v2101 = vunpack.c.h.b16 %v1942
  %v2102 = vunpack.c.l.b16 %v1943
  %v2103 = vunpack.c.h.b16 %v1943
  %v2104 = vunpack.c.l.b16 %v1944
  %v2105 = vunpack.c.h.b16 %v1944
  %v2106 = vunpack.c.l.b16 %v1945
  %v2107 = vunpack.c.h.b16 %v1945
  %v2108 = vunpack.c.l.b16 %v1946
  %v2109 = vunpack.c.h.b16 %v1946
  %v2110 = vunpack.c.l.b16 %v1947
  %v2111 = vunpack.c.h.b16 %v1947
  %v2112 = vunpack.c.l.b16 %v1948
  %v2113 = vunpack.c.h.b16 %v1948
  %v2114 = vunpack.c.l.b16 %v1949
  %v2115 = vunpack.c.h.b16 %v1949
  %v2116 = vunpack.c.l.b16 %v1950
  %v2117 = vunpack.c.h.b16 %v1950
  %v2118 = vunpack.c.l.b16 %v1951
  %v2119 = vunpack.c.h.b16 %v1951
  %v2120 = vunpack.c.l.b16 %v1952
  %v2121 = vunpack.c.h.b16 %v1952
  %v2122 = vunpack.c.l.b16 %v1953
  %v2123 = vunpack.c.h.b16 %v1953
  %v2124 = vunpack.c.l.b16 %v1954
  %v2125 = vunpack.c.h.b16 %v1954
  %v2126 = vunpack.c.l.b16 %v1955
  %v2127 = vunpack.c.h.b16 %v1955
  %v2128 = vunpack.c.l.b16 %v1956
  %v2129 = vunpack.c.h.b16 %v1956
  %v2130 = vunpack.c.l.b16 %v1957
  %v2131 = vunpack.c.h.b16 %v1957
  %v2132 = vunpack.c.l.b16 %v1958
  %v2133 = vunpack.c.h.b16 %v1958
  %v2134 = vunpack.c.l.b16 %v1959
  %v2135 = vunpack.c.h.b16 %v1959
  %v2136 = vunpack.c.l.b16 %v1960
  %v2137 = vunpack.c.h.b16 %v1960
  %v2138 = vunpack.c.l.b16 %v1961
  %v2139 = vunpack.c.h.b16 %v1961
  %v2140 = vunpack.c.l.b16 %v1962
  %v2141 = vunpack.c.h.b16 %v1962
  %v2142 = vunpack.c.l.b16 %v1963
  %v2143 = vunpack.c.h.b16 %v1963
  %v2144 = vunpack.c.l.b16 %v1964
  %v2145 = vunpack.c.h.b16 %v1964
  %v2146 = vunpack.c.l.b16 %v1965
  %v2147 = vunpack.c.h.b16 %v1965
  %v2148 = vunpack.c.l.b16 %v1966
  %v2149 = vunpack.c.h.b16 %v1966
  %v2150 = vunpack.c.l.b16 %v1967
  %v2151 = vunpack.c.h.b16 %v1967
  %v2152 = vunpack.c.l.b16 %v1968
  %v2153 = vunpack.c.h.b16 %v1968
  %v2154 = vunpack.c.l.b16 %v1969
  %v2155 = vunpack.c.h.b16 %v1969
  %v2156 = vunpack.c.l.b16 %v1970
  %v2157 = vunpack.c.h.b16 %v1970
  %v2158 = vpack.c.b16 %v2064, %v2062
  %v2159 = vpack.c.b16 %v2065, %v2063
  %v2160 = vpack.c.b16 %v2068, %v2066
  %v2161 = vpack.c.b16 %v2069, %v2067
  %v2162 = vpack.c.b16 %v2072, %v2070
  %v2163 = vpack.c.b16 %v2073, %v2071
  %v2164 = vpack.c.b16 %v2076, %v2074
  %v2165 = vpack.c.b16 %v2077, %v2075
  %v2166 = vpack.c.b16 %v2080, %v2078
  %v2167 = vpack.c.b16 %v2081, %v2079
  %v2168 = vpack.c.b16 %v2084, %v2082
  %v2169 = vpack.c.b16 %v2085, %v2083
  %v2170 = vpack.c.b16 %v2088, %v2086
  %v2171 = vpack.c.b16 %v2089, %v2087
  %v2172 = vpack.c.b16 %v2092, %v2090
  %v2173 = vpack.c.b16 %v2093, %v2091
  %v2174 = vpack.c.b16 %v2096, %v2094
  %v2175 = vpack.c.b16 %v2097, %v2095
  %v2176 = vpack.c.b16 %v2100, %v2098
  %v2177 = vpack.c.b16 %v2101, %v2099
  %v2178 = vpack.c.b16 %v2104, %v2102
  %v2179 = vpack.c.b16 %v2105, %v2103
  %v2180 = vpack.c.b16 %v2108, %v2106
  %v2181 = vpack.c.b16 %v2109, %v2107
  %v2182 = vpack.c.b16 %v2112, %v2110
  %v2183 = vpack.c.b16 %v2113, %v2111
  %v2184 = vpack.c.b16 %v2116, %v2114
  %v2185 = vpack.c.b16 %v2117, %v2115
  %v2186 = vpack.c.b16 %v2120, %v2118
  %v2187 = vpack.c.b16 %v2121, %v2119
  %v2188 = vpack.c.b16 %v2124, %v2122
  %v2189 = vpack.c.b16 %v2125, %v2123
  %v2190 = vpack.c.b16 %v2128, %v2126
  %v2191 = vpack.c.b16 %v2129, %v2127
  %v2192 = vpack.c.b16 %v2132, %v2130
  %v2193 = vpack.c.b16 %v2133, %v2131
  %v2194 = vpack.c.b16 %v2136, %v2134
  %v2195 = vpack.c.b16 %v2137, %v2135
  %v2196 = vpack.c.b16 %v2140, %v2138
  %v2197 = vpack.c.b16 %v2141, %v2139
  %v2198 = vpack.c.b16 %v2144, %v2142
  %v2199 = vpack.c.b16 %v2145, %v2143
  %v2200 = vpack.c.b16 %v2148, %v2146
  %v2201 = vpack.c.b16 %v2149, %v2147
  %v2202 = vpack.c.b16 %v2152, %v2150
  %v2203 = vpack.c.b16 %v2153, %v2151
  %v2204 = vpack.c.b16 %v2156, %v2154
  %v2205 = vpack.c.b16 %v2157, %v2155
  %2254 = vmatprep.subr.bf16.mxu0 %v2173
  %2255 = vmatpush1.bf16.msra.mxu0 %v2172
  %2256 = vmatprep.subr.bf16.mxu0 %v2171
  %2257 = vmatpush1.bf16.msra.mxu0 %v2170
  %2258 = vmatprep.subr.bf16.mxu0 %v2169
  %2259 = vmatpush1.bf16.msra.mxu0 %v2168
  %2260 = vmatprep.subr.bf16.mxu0 %v2167
  %2261 = vmatpush1.bf16.msra.mxu0 %v2166
  %2262 = vmatprep.subr.bf16.mxu0 %v2165
  %2263 = vmatpush1.bf16.msra.mxu0 %v2164
  %2264 = vmatprep.subr.bf16.mxu0 %v2163
  %2265 = vmatpush1.bf16.msra.mxu0 %v2162
  %2266 = vmatprep.subr.bf16.mxu0 %v2161
  %2267 = vmatpush1.bf16.msra.mxu0 %v2160
  %2268 = vmatprep.subr.bf16.mxu0 %v2159
  %2269 = vmatpush1.bf16.msra.mxu0 %v2158
  %2270 = vmatprep.subr.bf16.mxu0 %v2189
  %2271 = vmatpush2.bf16.msra.mxu0 %v2188
  %2272 = vmatprep.subr.bf16.mxu0 %v2187
  %2273 = vmatpush2.bf16.msra.mxu0 %v2186
  %2274 = vmatprep.subr.bf16.mxu0 %v2185
  %2275 = vmatpush2.bf16.msra.mxu0 %v2184
  %2276 = vmatprep.subr.bf16.mxu0 %v2183
  %2277 = vmatpush2.bf16.msra.mxu0 %v2182
  %2278 = vmatprep.subr.bf16.mxu0 %v2181
  %2279 = vmatpush2.bf16.msra.mxu0 %v2180
  %2280 = vmatprep.subr.bf16.mxu0 %v2179
  %2281 = vmatpush2.bf16.msra.mxu0 %v2178
  %2282 = vmatprep.subr.bf16.mxu0 %v2177
  %2283 = vmatpush2.bf16.msra.mxu0 %v2176
  %2284 = vmatprep.subr.bf16.mxu0 %v2175
  %2285 = vmatpush2.bf16.msra.mxu0 %v2174
  %2286 = vmatprep.mubr.bf16.mxu0 %v1997
  %2287 = vmatmul.mubr.bf16.gmra.mxu0 %v1996
  %v2288 = vpop.f32.mrf.mxu0
  %v2289 = vadd.f32 0.0, %v2288
  %v2290 = vpop.f32.mrf.mxu0
  %v2291 = vadd.f32 0.0, %v2290
  %v2292 = vpop.f32.mrf.mxu0
  %v2293 = vadd.f32 0.0, %v2292
  %v2294 = vpop.f32.mrf.mxu0
  %v2295 = vadd.f32 0.0, %v2294
  %2296 = vmatprep.mubr.bf16.mxu0 %v2000
  %2297 = vmatmul.mubr.bf16.gmra.mxu0 %v1999
  %v2298 = vpop.f32.mrf.mxu0
  %v2299 = vadd.f32 0.0, %v2298
  %v2300 = vpop.f32.mrf.mxu0
  %v2301 = vadd.f32 0.0, %v2300
  %v2302 = vpop.f32.mrf.mxu0
  %v2303 = vadd.f32 0.0, %v2302
  %v2304 = vpop.f32.mrf.mxu0
  %v2305 = vadd.f32 0.0, %v2304
  %2306 = vmatprep.mubr.bf16.mxu0 %v2003
  %2307 = vmatmul.mubr.bf16.gmra.mxu0 %v2002
  %v2308 = vpop.f32.mrf.mxu0
  %v2309 = vadd.f32 0.0, %v2308
  %v2310 = vpop.f32.mrf.mxu0
  %v2311 = vadd.f32 0.0, %v2310
  %v2312 = vpop.f32.mrf.mxu0
  %v2313 = vpop.f32.mrf.mxu0
  %2314 = vdwg.mxu0
  %2315 = vmatprep.subr.bf16.mxu0 %v2205
  %2316 = vmatpush1.bf16.msra.mxu0 %v2204
  %2317 = vmatprep.subr.bf16.mxu0 %v2203
  %2318 = vmatpush1.bf16.msra.mxu0 %v2202
  %2319 = vmatprep.subr.bf16.mxu0 %v2201
  %2320 = vmatpush1.bf16.msra.mxu0 %v2200
  %2321 = vmatprep.subr.bf16.mxu0 %v2199
  %2322 = vmatpush1.bf16.msra.mxu0 %v2198
  %2323 = vmatprep.subr.bf16.mxu0 %v2197
  %2324 = vmatpush1.bf16.msra.mxu0 %v2196
  %2325 = vmatprep.subr.bf16.mxu0 %v2195
  %2326 = vmatpush1.bf16.msra.mxu0 %v2194
  %2327 = vmatprep.subr.bf16.mxu0 %v2193
  %2328 = vmatpush1.bf16.msra.mxu0 %v2192
  %2329 = vmatprep.subr.bf16.mxu0 %v2191
  %2330 = vmatpush1.bf16.msra.mxu0 %v2190
  %2331 = vmatprep.subr.bf16.mxu0 0
  %2332 = vmatpush2.bf16.msra.mxu0 0
  %2333 = vmatprep.subr.bf16.mxu0 0
  %2334 = vmatpush2.bf16.msra.mxu0 0
  %2335 = vmatprep.subr.bf16.mxu0 0
  %2336 = vmatpush2.bf16.msra.mxu0 0
  %2337 = vmatprep.subr.bf16.mxu0 0
  %2338 = vmatpush2.bf16.msra.mxu0 0
  %2339 = vmatprep.subr.bf16.mxu0 0
  %2340 = vmatpush2.bf16.msra.mxu0 0
  %2341 = vmatprep.subr.bf16.mxu0 0
  %2342 = vmatpush2.bf16.msra.mxu0 0
  %2343 = vmatprep.subr.bf16.mxu0 0
  %2344 = vmatpush2.bf16.msra.mxu0 0
  %2345 = vmatprep.subr.bf16.mxu0 0
  %2346 = vmatpush2.bf16.msra.mxu0 0
  %2347 = vmatprep.mubr.bf16.mxu0 0
  %2348 = vmatmul.mubr.bf16.gmra.mxu0 %v1998
  %v2349 = vpop.f32.mrf.mxu0
  %v2350 = vadd.f32 %v2289, %v2349
  %v2351 = vpop.f32.mrf.mxu0
  %v2352 = vadd.f32 %v2291, %v2351
  %v2353 = vpop.f32.mrf.mxu0
  %v2354 = vadd.f32 %v2293, %v2353
  %v2355 = vpop.f32.mrf.mxu0
  %v2356 = vadd.f32 %v2295, %v2355
  %2357 = vmatprep.mubr.bf16.mxu0 0
  %2358 = vmatmul.mubr.bf16.gmra.mxu0 %v2001
  %v2359 = vpop.f32.mrf.mxu0
  %v2360 = vadd.f32 %v2299, %v2359
  %v2361 = vpop.f32.mrf.mxu0
  %v2362 = vadd.f32 %v2301, %v2361
  %v2363 = vpop.f32.mrf.mxu0
  %v2364 = vadd.f32 %v2303, %v2363
  %v2365 = vpop.f32.mrf.mxu0
  %v2366 = vadd.f32 %v2305, %v2365
  %2367 = vmatprep.mubr.bf16.mxu0 0
  %2368 = vmatmul.mubr.bf16.gmra.mxu0 %v2004
  %v2369 = vpop.f32.mrf.mxu0
  %v2370 = vadd.f32 %v2309, %v2369
  %v2371 = vpop.f32.mrf.mxu0
  %v2372 = vadd.f32 %v2311, %v2371
  %v2373 = vpop.f32.mrf.mxu0
  %v2374 = vpop.f32.mrf.mxu0
  %2375 = vdwg.mxu0
  %v2376 = vadd.f32 %v1901, %v2350
  %v2377 = vadd.f32 %v1902, %v2352
  %v2378 = vadd.f32 %v1903, %v2354
  %v2379 = vadd.f32 %v1904, %v2356
  %v2380 = vadd.f32 %v1905, %v2360
  %v2381 = vadd.f32 %v1906, %v2362
  %v2382 = vadd.f32 %v1907, %v2364
  %v2383 = vadd.f32 %v1908, %v2366
  %v2384 = vadd.f32 %v1909, %v2370
  %v2385 = vadd.f32 %v1910, %v2372
  %v2386 = vld [vmem:[%s2] sm:$0x3]
  %v2388 = vlaneseq
  %v2389 = vshrl.u32 %v2388, 7
  %v2390 = vsub.s32 0, %v2389
  %v2391 = vrot.slane %v2386, %v2390
  %v2392 = vlaneseq
  %v2393 = vshrl.u32 %v2392, 7
  %v2394 = vsub.s32 1, %v2393
  %v2395 = vrot.slane %v2386, %v2394
  %v2398 = vadd.f32 %v2376, %v2391
  %v2399 = vadd.f32 %v2377, %v2395
  %v2400 = vadd.f32 %v2378, %v2391
  %v2401 = vadd.f32 %v2379, %v2395
  %v2402 = vadd.f32 %v2380, %v2391
  %v2403 = vadd.f32 %v2381, %v2395
  %v2404 = vadd.f32 %v2382, %v2391
  %v2405 = vadd.f32 %v2383, %v2395
  %v2406 = vadd.f32 %v2384, %v2391
  %v2407 = vadd.f32 %v2385, %v2395
  %v2408 = vmax.f32 %v2398, 0.0
  %v2409 = vmax.f32 %v2399, 0.0
  %v2410 = vmax.f32 %v2400, 0.0
  %v2411 = vmax.f32 %v2401, 0.0
  %v2412 = vmax.f32 %v2402, 0.0
  %v2413 = vmax.f32 %v2403, 0.0
  %v2414 = vmax.f32 %v2404, 0.0
  %v2415 = vmax.f32 %v2405, 0.0
  %v2416 = vmax.f32 %v2406, 0.0
  %v2417 = vmax.f32 %v2407, 0.0
  %v2418 = vpack.c.bf16 %v2410, %v2408
  %v2419 = vpack.c.bf16 %v2411, %v2409
  %v2420 = vpack.c.bf16 %v2414, %v2412
  %v2421 = vpack.c.bf16 %v2415, %v2413
  %v2422 = vpack.c.bf16 %v2416, %v2416
  %v2423 = vpack.c.bf16 %v2417, %v2417
  %v2424 = vld [vmem:[%s3] sm:$0xf]
  %v2425 = vld [vmem:[%s3 + $0x4] sm:$0x3]
  %v2428 = vunpack.c.l.b16 %v2424
  %v2429 = vunpack.c.l.b16 %v2425
  %v2430 = vpack.c.b16 %v2429, %v2428
  %vm2431 = vcmask 293888
  %v2433 = vsel %vm2431, %v2430, 0
  %vm2435 = vcmask 1041408
  %v2437 = vsel %vm2435, %v2422, 0
  %v2440 = vsel %vm2435, %v2423, 0
  %2442 = vmatprep.subr.bf16.mxu0 0
  %2443 = vmatpush1.bf16.msra.mxu0 0
  %2444 = vmatprep.subr.bf16.mxu0 0
  %2445 = vmatpush1.bf16.msra.mxu0 0
  %2446 = vmatprep.subr.bf16.mxu0 0
  %2447 = vmatpush1.bf16.msra.mxu0 0
  %2448 = vmatprep.subr.bf16.mxu0 0
  %2449 = vmatpush1.bf16.msra.mxu0 0
  %2450 = vmatprep.subr.bf16.mxu0 0
  %2451 = vmatpush1.bf16.msra.mxu0 0
  %2452 = vmatprep.subr.bf16.mxu0 %v2440
  %2453 = vmatpush1.bf16.msra.mxu0 %v2437
  %2454 = vmatprep.subr.bf16.mxu0 %v2421
  %2455 = vmatpush1.bf16.msra.mxu0 %v2420
  %2456 = vmatprep.subr.bf16.mxu0 %v2419
  %2457 = vmatpush1.bf16.msra.mxu0 %v2418
  %2458 = vmatprep.subr.bf16.mxu0 0
  %2459 = vmatpush2.bf16.msra.mxu0 0
  %2460 = vmatprep.subr.bf16.mxu0 0
  %2461 = vmatpush2.bf16.msra.mxu0 0
  %2462 = vmatprep.subr.bf16.mxu0 0
  %2463 = vmatpush2.bf16.msra.mxu0 0
  %2464 = vmatprep.subr.bf16.mxu0 0
  %2465 = vmatpush2.bf16.msra.mxu0 0
  %2466 = vmatprep.subr.bf16.mxu0 0
  %2467 = vmatpush2.bf16.msra.mxu0 0
  %2468 = vmatprep.subr.bf16.mxu0 0
  %2469 = vmatpush2.bf16.msra.mxu0 0
  %2470 = vmatprep.subr.bf16.mxu0 0
  %2471 = vmatpush2.bf16.msra.mxu0 0
  %2472 = vmatprep.subr.bf16.mxu0 0
  %2473 = vmatpush2.bf16.msra.mxu0 0
  %2474 = vmatprep.mubr.bf16.mxu0 0
  %2475 = vmatmul.mubr.bf16.gmra.mxu0 %v2433
  %v2476 = vpop.f32.mrf.mxu0
  %v2477 = vadd.f32 0.0, %v2476
  %v2478 = vpop.f32.mrf.mxu0
  %v2479 = vadd.f32 0.0, %v2478
  %v2480 = vpop.f32.mrf.mxu0
  %v2481 = vadd.f32 0.0, %v2480
  %v2482 = vpop.f32.mrf.mxu0
  %v2483 = vadd.f32 0.0, %v2482
  %2484 = vdwg.mxu0
  %v2485 = vpack.c.bf16 %v2481, %v2477
  %v2486 = vpack.c.bf16 %v2483, %v2479
  %v2487 = vld [vmem:[%s4] sm:$0xf]
  %v2488 = vld [vmem:[%s4 + $0x4] sm:$0xf]
  %v2489 = vld [vmem:[%s4 + $0x8] sm:$0xf]
  %v2490 = vld [vmem:[%s4 + $0xc] sm:$0xf]
  %v2491 = vld [vmem:[%s4 + $0x10] sm:$0xf]
  %v2492 = vld [vmem:[%s4 + $0x14] sm:$0xf]
  %v2493 = vld [vmem:[%s4 + $0x18] sm:$0xf]
  %v2494 = vld [vmem:[%s4 + $0x1c] sm:$0xf]
  %v2495 = vld [vmem:[%s4 + $0x20] sm:$0xf]
  %v2496 = vld [vmem:[%s4 + $0x24] sm:$0xf]
  %v2497 = vld [vmem:[%s4 + $0x28] sm:$0xf]
  %v2498 = vld [vmem:[%s4 + $0x2c] sm:$0xf]
  %v2499 = vld [vmem:[%s4 + $0x30] sm:$0xf]
  %v2500 = vld [vmem:[%s4 + $0x34] sm:$0xf]
  %v2501 = vld [vmem:[%s4 + $0x38] sm:$0xf]
  %v2502 = vld [vmem:[%s4 + $0x3c] sm:$0xf]
  %v2503 = vld [vmem:[%s4 + $0x40] sm:$0xf]
  %v2504 = vld [vmem:[%s4 + $0x44] sm:$0xf]
  %v2505 = vld [vmem:[%s4 + $0x48] sm:$0xf]
  %v2506 = vld [vmem:[%s4 + $0x4c] sm:$0xf]
  %v2507 = vld [vmem:[%s4 + $0x50] sm:$0xf]
  %v2508 = vld [vmem:[%s4 + $0x54] sm:$0xf]
  %v2509 = vld [vmem:[%s4 + $0x58] sm:$0xf]
  %v2510 = vld [vmem:[%s4 + $0x5c] sm:$0xf]
  %v2511 = vld [vmem:[%s4 + $0x60] sm:$0xf]
  %v2512 = vld [vmem:[%s4 + $0x64] sm:$0xf]
  %v2513 = vld [vmem:[%s4 + $0x68] sm:$0xf]
  %v2514 = vld [vmem:[%s4 + $0x6c] sm:$0xf]
  %v2515 = vld [vmem:[%s4 + $0x70] sm:$0xf]
  %v2516 = vld [vmem:[%s4 + $0x74] sm:$0xf]
  %v2517 = vld [vmem:[%s4 + $0x78] sm:$0xf]
  %v2518 = vld [vmem:[%s4 + $0x7c] sm:$0xf]
  %s2519 = scalar_lea.vmem %s3, 8
  %v2520 = vld [vmem:[%s2519] sm:$0xf]
  %v2521 = vld [vmem:[%s2519 + $0x4] sm:$0x3]
  %v2524 = vunpack.c.l.b16 %v2520
  %v2525 = vunpack.c.l.b16 %v2521
  %v2526 = vpack.c.b16 %v2525, %v2524
  %v2528 = vsel %vm2431, %v2526, 0
  %2530 = vmatprep.subr.bf16.mxu0 0
  %2531 = vmatpush1.bf16.msra.mxu0 0
  %2532 = vmatprep.subr.bf16.mxu0 0
  %2533 = vmatpush1.bf16.msra.mxu0 0
  %2534 = vmatprep.subr.bf16.mxu0 0
  %2535 = vmatpush1.bf16.msra.mxu0 0
  %2536 = vmatprep.subr.bf16.mxu0 0
  %2537 = vmatpush1.bf16.msra.mxu0 0
  %2538 = vmatprep.subr.bf16.mxu0 0
  %2539 = vmatpush1.bf16.msra.mxu0 0
  %2540 = vmatprep.subr.bf16.mxu0 %v2440
  %2541 = vmatpush1.bf16.msra.mxu0 %v2437
  %2542 = vmatprep.subr.bf16.mxu0 %v2421
  %2543 = vmatpush1.bf16.msra.mxu0 %v2420
  %2544 = vmatprep.subr.bf16.mxu0 %v2419
  %2545 = vmatpush1.bf16.msra.mxu0 %v2418
  %2546 = vmatprep.subr.bf16.mxu0 0
  %2547 = vmatpush2.bf16.msra.mxu0 0
  %2548 = vmatprep.subr.bf16.mxu0 0
  %2549 = vmatpush2.bf16.msra.mxu0 0
  %2550 = vmatprep.subr.bf16.mxu0 0
  %2551 = vmatpush2.bf16.msra.mxu0 0
  %2552 = vmatprep.subr.bf16.mxu0 0
  %2553 = vmatpush2.bf16.msra.mxu0 0
  %2554 = vmatprep.subr.bf16.mxu0 0
  %2555 = vmatpush2.bf16.msra.mxu0 0
  %2556 = vmatprep.subr.bf16.mxu0 0
  %2557 = vmatpush2.bf16.msra.mxu0 0
  %2558 = vmatprep.subr.bf16.mxu0 0
  %2559 = vmatpush2.bf16.msra.mxu0 0
  %2560 = vmatprep.subr.bf16.mxu0 0
  %2561 = vmatpush2.bf16.msra.mxu0 0
  %2562 = vmatprep.mubr.bf16.mxu0 0
  %2563 = vmatmul.mubr.bf16.gmra.mxu0 %v2528
  %v2564 = vpop.f32.mrf.mxu0
  %v2565 = vadd.f32 0.0, %v2564
  %v2566 = vpop.f32.mrf.mxu0
  %v2567 = vadd.f32 0.0, %v2566
  %v2568 = vpop.f32.mrf.mxu0
  %v2569 = vadd.f32 0.0, %v2568
  %v2570 = vpop.f32.mrf.mxu0
  %v2571 = vadd.f32 0.0, %v2570
  %2572 = vdwg.mxu0
  %v2573 = vpack.c.bf16 %v2569, %v2565
  %v2574 = vpack.c.bf16 %v2571, %v2567
  %s2575 = scalar_lea.vmem %s4, 128
  %v2576 = vld [vmem:[%s2575] sm:$0xf]
  %v2577 = vld [vmem:[%s2575 + $0x4] sm:$0xf]
  %v2578 = vld [vmem:[%s2575 + $0x8] sm:$0xf]
  %v2579 = vld [vmem:[%s2575 + $0xc] sm:$0xf]
  %v2580 = vld [vmem:[%s2575 + $0x10] sm:$0xf]
  %v2581 = vld [vmem:[%s2575 + $0x14] sm:$0xf]
  %v2582 = vld [vmem:[%s2575 + $0x18] sm:$0xf]
  %v2583 = vld [vmem:[%s2575 + $0x1c] sm:$0xf]
  %v2584 = vld [vmem:[%s2575 + $0x20] sm:$0xf]
  %v2585 = vld [vmem:[%s2575 + $0x24] sm:$0xf]
  %v2586 = vld [vmem:[%s2575 + $0x28] sm:$0xf]
  %v2587 = vld [vmem:[%s2575 + $0x2c] sm:$0xf]
  %v2588 = vld [vmem:[%s2575 + $0x30] sm:$0xf]
  %v2589 = vld [vmem:[%s2575 + $0x34] sm:$0xf]
  %v2590 = vld [vmem:[%s2575 + $0x38] sm:$0xf]
  %v2591 = vld [vmem:[%s2575 + $0x3c] sm:$0xf]
  %v2592 = vld [vmem:[%s2575 + $0x40] sm:$0xf]
  %v2593 = vld [vmem:[%s2575 + $0x44] sm:$0xf]
  %v2594 = vld [vmem:[%s2575 + $0x48] sm:$0xf]
  %v2595 = vld [vmem:[%s2575 + $0x4c] sm:$0xf]
  %v2596 = vld [vmem:[%s2575 + $0x50] sm:$0xf]
  %v2597 = vld [vmem:[%s2575 + $0x54] sm:$0xf]
  %v2598 = vld [vmem:[%s2575 + $0x58] sm:$0xf]
  %v2599 = vld [vmem:[%s2575 + $0x5c] sm:$0xf]
  %v2600 = vld [vmem:[%s2575 + $0x60] sm:$0xf]
  %v2601 = vld [vmem:[%s2575 + $0x64] sm:$0xf]
  %v2602 = vld [vmem:[%s2575 + $0x68] sm:$0xf]
  %v2603 = vld [vmem:[%s2575 + $0x6c] sm:$0xf]
  %v2604 = vld [vmem:[%s2575 + $0x70] sm:$0xf]
  %v2605 = vld [vmem:[%s2575 + $0x74] sm:$0xf]
  %v2606 = vld [vmem:[%s2575 + $0x78] sm:$0xf]
  %v2607 = vld [vmem:[%s2575 + $0x7c] sm:$0xf]
  %v2640 = vunpack.c.l.b16 %v2576
  %v2641 = vunpack.c.l.b16 %v2577
  %v2642 = vunpack.c.l.b16 %v2578
  %v2643 = vunpack.c.l.b16 %v2579
  %v2644 = vunpack.c.l.b16 %v2580
  %v2645 = vunpack.c.l.b16 %v2581
  %v2646 = vunpack.c.l.b16 %v2582
  %v2647 = vunpack.c.l.b16 %v2583
  %v2648 = vunpack.c.l.b16 %v2584
  %v2649 = vunpack.c.l.b16 %v2585
  %v2650 = vunpack.c.l.b16 %v2586
  %v2651 = vunpack.c.l.b16 %v2587
  %v2652 = vunpack.c.l.b16 %v2588
  %v2653 = vunpack.c.l.b16 %v2589
  %v2654 = vunpack.c.l.b16 %v2590
  %v2655 = vunpack.c.l.b16 %v2591
  %v2656 = vunpack.c.l.b16 %v2592
  %v2657 = vunpack.c.l.b16 %v2593
  %v2658 = vunpack.c.l.b16 %v2594
  %v2659 = vunpack.c.l.b16 %v2595
  %v2660 = vunpack.c.l.b16 %v2596
  %v2661 = vunpack.c.l.b16 %v2597
  %v2662 = vunpack.c.l.b16 %v2598
  %v2663 = vunpack.c.l.b16 %v2599
  %v2664 = vunpack.c.l.b16 %v2600
  %v2665 = vunpack.c.l.b16 %v2601
  %v2666 = vunpack.c.l.b16 %v2602
  %v2667 = vunpack.c.l.b16 %v2603
  %v2668 = vunpack.c.l.b16 %v2604
  %v2669 = vunpack.c.l.b16 %v2605
  %v2670 = vunpack.c.l.b16 %v2606
  %v2671 = vunpack.c.l.b16 %v2607
  %v2672 = vpack.c.b16 %v2641, %v2640
  %v2673 = vpack.c.b16 %v2643, %v2642
  %v2674 = vpack.c.b16 %v2645, %v2644
  %v2675 = vpack.c.b16 %v2647, %v2646
  %v2676 = vpack.c.b16 %v2649, %v2648
  %v2677 = vpack.c.b16 %v2651, %v2650
  %v2678 = vpack.c.b16 %v2653, %v2652
  %v2679 = vpack.c.b16 %v2655, %v2654
  %v2680 = vpack.c.b16 %v2657, %v2656
  %v2681 = vpack.c.b16 %v2659, %v2658
  %v2682 = vpack.c.b16 %v2661, %v2660
  %v2683 = vpack.c.b16 %v2663, %v2662
  %v2684 = vpack.c.b16 %v2665, %v2664
  %v2685 = vpack.c.b16 %v2667, %v2666
  %v2686 = vpack.c.b16 %v2669, %v2668
  %v2687 = vpack.c.b16 %v2671, %v2670
  %2704 = vmatprep.subr.bf16.mxu0 0
  %2705 = vmatpush1.bf16.msra.mxu0 %v2679
  %2706 = vmatprep.subr.bf16.mxu0 0
  %2707 = vmatpush1.bf16.msra.mxu0 %v2678
  %2708 = vmatprep.subr.bf16.mxu0 0
  %2709 = vmatpush1.bf16.msra.mxu0 %v2677
  %2710 = vmatprep.subr.bf16.mxu0 0
  %2711 = vmatpush1.bf16.msra.mxu0 %v2676
  %2712 = vmatprep.subr.bf16.mxu0 0
  %2713 = vmatpush1.bf16.msra.mxu0 %v2675
  %2714 = vmatprep.subr.bf16.mxu0 0
  %2715 = vmatpush1.bf16.msra.mxu0 %v2674
  %2716 = vmatprep.subr.bf16.mxu0 0
  %2717 = vmatpush1.bf16.msra.mxu0 %v2673
  %2718 = vmatprep.subr.bf16.mxu0 0
  %2719 = vmatpush1.bf16.msra.mxu0 %v2672
  %2720 = vmatprep.subr.bf16.mxu0 0
  %2721 = vmatpush2.bf16.msra.mxu0 %v2687
  %2722 = vmatprep.subr.bf16.mxu0 0
  %2723 = vmatpush2.bf16.msra.mxu0 %v2686
  %2724 = vmatprep.subr.bf16.mxu0 0
  %2725 = vmatpush2.bf16.msra.mxu0 %v2685
  %2726 = vmatprep.subr.bf16.mxu0 0
  %2727 = vmatpush2.bf16.msra.mxu0 %v2684
  %2728 = vmatprep.subr.bf16.mxu0 0
  %2729 = vmatpush2.bf16.msra.mxu0 %v2683
  %2730 = vmatprep.subr.bf16.mxu0 0
  %2731 = vmatpush2.bf16.msra.mxu0 %v2682
  %2732 = vmatprep.subr.bf16.mxu0 0
  %2733 = vmatpush2.bf16.msra.mxu0 %v2681
  %2734 = vmatprep.subr.bf16.mxu0 0
  %2735 = vmatpush2.bf16.msra.mxu0 %v2680
  %2736 = vmatprep.mubr.bf16.mxu0 %v2574
  %2737 = vmatmul.mubr.bf16.gmra.mxu0 %v2573
  %v2738 = vpop.f32.mrf.mxu0
  %v2739 = vadd.f32 0.0, %v2738
  %v2740 = vpop.f32.mrf.mxu0
  %v2741 = vpop.f32.mrf.mxu0
  %v2742 = vadd.f32 0.0, %v2741
  %v2743 = vpop.f32.mrf.mxu0
  %2744 = vdwg.mxu0
  %v2777 = vunpack.c.l.b16 %v2487
  %v2778 = vunpack.c.l.b16 %v2488
  %v2779 = vunpack.c.l.b16 %v2489
  %v2780 = vunpack.c.l.b16 %v2490
  %v2781 = vunpack.c.l.b16 %v2491
  %v2782 = vunpack.c.l.b16 %v2492
  %v2783 = vunpack.c.l.b16 %v2493
  %v2784 = vunpack.c.l.b16 %v2494
  %v2785 = vunpack.c.l.b16 %v2495
  %v2786 = vunpack.c.l.b16 %v2496
  %v2787 = vunpack.c.l.b16 %v2497
  %v2788 = vunpack.c.l.b16 %v2498
  %v2789 = vunpack.c.l.b16 %v2499
  %v2790 = vunpack.c.l.b16 %v2500
  %v2791 = vunpack.c.l.b16 %v2501
  %v2792 = vunpack.c.l.b16 %v2502
  %v2793 = vunpack.c.l.b16 %v2503
  %v2794 = vunpack.c.l.b16 %v2504
  %v2795 = vunpack.c.l.b16 %v2505
  %v2796 = vunpack.c.l.b16 %v2506
  %v2797 = vunpack.c.l.b16 %v2507
  %v2798 = vunpack.c.l.b16 %v2508
  %v2799 = vunpack.c.l.b16 %v2509
  %v2800 = vunpack.c.l.b16 %v2510
  %v2801 = vunpack.c.l.b16 %v2511
  %v2802 = vunpack.c.l.b16 %v2512
  %v2803 = vunpack.c.l.b16 %v2513
  %v2804 = vunpack.c.l.b16 %v2514
  %v2805 = vunpack.c.l.b16 %v2515
  %v2806 = vunpack.c.l.b16 %v2516
  %v2807 = vunpack.c.l.b16 %v2517
  %v2808 = vunpack.c.l.b16 %v2518
  %v2809 = vpack.c.b16 %v2778, %v2777
  %v2810 = vpack.c.b16 %v2780, %v2779
  %v2811 = vpack.c.b16 %v2782, %v2781
  %v2812 = vpack.c.b16 %v2784, %v2783
  %v2813 = vpack.c.b16 %v2786, %v2785
  %v2814 = vpack.c.b16 %v2788, %v2787
  %v2815 = vpack.c.b16 %v2790, %v2789
  %v2816 = vpack.c.b16 %v2792, %v2791
  %v2817 = vpack.c.b16 %v2794, %v2793
  %v2818 = vpack.c.b16 %v2796, %v2795
  %v2819 = vpack.c.b16 %v2798, %v2797
  %v2820 = vpack.c.b16 %v2800, %v2799
  %v2821 = vpack.c.b16 %v2802, %v2801
  %v2822 = vpack.c.b16 %v2804, %v2803
  %v2823 = vpack.c.b16 %v2806, %v2805
  %v2824 = vpack.c.b16 %v2808, %v2807
  %2841 = vmatprep.subr.bf16.mxu0 0
  %2842 = vmatpush1.bf16.msra.mxu0 %v2816
  %2843 = vmatprep.subr.bf16.mxu0 0
  %2844 = vmatpush1.bf16.msra.mxu0 %v2815
  %2845 = vmatprep.subr.bf16.mxu0 0
  %2846 = vmatpush1.bf16.msra.mxu0 %v2814
  %2847 = vmatprep.subr.bf16.mxu0 0
  %2848 = vmatpush1.bf16.msra.mxu0 %v2813
  %2849 = vmatprep.subr.bf16.mxu0 0
  %2850 = vmatpush1.bf16.msra.mxu0 %v2812
  %2851 = vmatprep.subr.bf16.mxu0 0
  %2852 = vmatpush1.bf16.msra.mxu0 %v2811
  %2853 = vmatprep.subr.bf16.mxu0 0
  %2854 = vmatpush1.bf16.msra.mxu0 %v2810
  %2855 = vmatprep.subr.bf16.mxu0 0
  %2856 = vmatpush1.bf16.msra.mxu0 %v2809
  %2857 = vmatprep.subr.bf16.mxu0 0
  %2858 = vmatpush2.bf16.msra.mxu0 %v2824
  %2859 = vmatprep.subr.bf16.mxu0 0
  %2860 = vmatpush2.bf16.msra.mxu0 %v2823
  %2861 = vmatprep.subr.bf16.mxu0 0
  %2862 = vmatpush2.bf16.msra.mxu0 %v2822
  %2863 = vmatprep.subr.bf16.mxu0 0
  %2864 = vmatpush2.bf16.msra.mxu0 %v2821
  %2865 = vmatprep.subr.bf16.mxu0 0
  %2866 = vmatpush2.bf16.msra.mxu0 %v2820
  %2867 = vmatprep.subr.bf16.mxu0 0
  %2868 = vmatpush2.bf16.msra.mxu0 %v2819
  %2869 = vmatprep.subr.bf16.mxu0 0
  %2870 = vmatpush2.bf16.msra.mxu0 %v2818
  %2871 = vmatprep.subr.bf16.mxu0 0
  %2872 = vmatpush2.bf16.msra.mxu0 %v2817
  %2873 = vmatprep.mubr.bf16.mxu0 %v2486
  %2874 = vmatmul.mubr.bf16.gmra.mxu0 %v2485
  %v2875 = vpop.f32.mrf.mxu0
  %v2876 = vadd.f32 %v2739, %v2875
  %v2877 = vpop.f32.mrf.mxu0
  %v2878 = vpop.f32.mrf.mxu0
  %v2879 = vadd.f32 %v2742, %v2878
  %v2880 = vpop.f32.mrf.mxu0
  %2881 = vdwg.mxu0
  %s2882 = scalar_lea.vmem %s3, 16
  %v2883 = vld [vmem:[%s2882] sm:$0xf]
  %v2884 = vld [vmem:[%s2882 + $0x4] sm:$0x3]
  %v2887 = vunpack.c.l.b16 %v2883
  %v2888 = vunpack.c.l.b16 %v2884
  %v2889 = vpack.c.b16 %v2888, %v2887
  %v2891 = vsel %vm2431, %v2889, 0
  %2893 = vmatprep.subr.bf16.mxu0 0
  %2894 = vmatpush1.bf16.msra.mxu0 0
  %2895 = vmatprep.subr.bf16.mxu0 0
  %2896 = vmatpush1.bf16.msra.mxu0 0
  %2897 = vmatprep.subr.bf16.mxu0 0
  %2898 = vmatpush1.bf16.msra.mxu0 0
  %2899 = vmatprep.subr.bf16.mxu0 0
  %2900 = vmatpush1.bf16.msra.mxu0 0
  %2901 = vmatprep.subr.bf16.mxu0 0
  %2902 = vmatpush1.bf16.msra.mxu0 0
  %2903 = vmatprep.subr.bf16.mxu0 %v2440
  %2904 = vmatpush1.bf16.msra.mxu0 %v2437
  %2905 = vmatprep.subr.bf16.mxu0 %v2421
  %2906 = vmatpush1.bf16.msra.mxu0 %v2420
  %2907 = vmatprep.subr.bf16.mxu0 %v2419
  %2908 = vmatpush1.bf16.msra.mxu0 %v2418
  %2909 = vmatprep.subr.bf16.mxu0 0
  %2910 = vmatpush2.bf16.msra.mxu0 0
  %2911 = vmatprep.subr.bf16.mxu0 0
  %2912 = vmatpush2.bf16.msra.mxu0 0
  %2913 = vmatprep.subr.bf16.mxu0 0
  %2914 = vmatpush2.bf16.msra.mxu0 0
  %2915 = vmatprep.subr.bf16.mxu0 0
  %2916 = vmatpush2.bf16.msra.mxu0 0
  %2917 = vmatprep.subr.bf16.mxu0 0
  %2918 = vmatpush2.bf16.msra.mxu0 0
  %2919 = vmatprep.subr.bf16.mxu0 0
  %2920 = vmatpush2.bf16.msra.mxu0 0
  %2921 = vmatprep.subr.bf16.mxu0 0
  %2922 = vmatpush2.bf16.msra.mxu0 0
  %2923 = vmatprep.subr.bf16.mxu0 0
  %2924 = vmatpush2.bf16.msra.mxu0 0
  %2925 = vmatprep.mubr.bf16.mxu0 0
  %2926 = vmatmul.mubr.bf16.gmra.mxu0 %v2891
  %v2927 = vpop.f32.mrf.mxu0
  %v2928 = vadd.f32 0.0, %v2927
  %v2929 = vpop.f32.mrf.mxu0
  %v2930 = vadd.f32 0.0, %v2929
  %v2931 = vpop.f32.mrf.mxu0
  %v2932 = vadd.f32 0.0, %v2931
  %v2933 = vpop.f32.mrf.mxu0
  %v2934 = vadd.f32 0.0, %v2933
  %2935 = vdwg.mxu0
  %v2936 = vpack.c.bf16 %v2932, %v2928
  %v2937 = vpack.c.bf16 %v2934, %v2930
  %s2938 = scalar_lea.vmem %s4, 256
  %v2939 = vld [vmem:[%s2938] sm:$0xf]
  %v2940 = vld [vmem:[%s2938 + $0x4] sm:$0xf]
  %v2941 = vld [vmem:[%s2938 + $0x8] sm:$0xf]
  %v2942 = vld [vmem:[%s2938 + $0xc] sm:$0xf]
  %v2943 = vld [vmem:[%s2938 + $0x10] sm:$0xf]
  %v2944 = vld [vmem:[%s2938 + $0x14] sm:$0xf]
  %v2945 = vld [vmem:[%s2938 + $0x18] sm:$0xf]
  %v2946 = vld [vmem:[%s2938 + $0x1c] sm:$0xf]
  %v2947 = vld [vmem:[%s2938 + $0x20] sm:$0xf]
  %v2948 = vld [vmem:[%s2938 + $0x24] sm:$0xf]
  %v2949 = vld [vmem:[%s2938 + $0x28] sm:$0xf]
  %v2950 = vld [vmem:[%s2938 + $0x2c] sm:$0xf]
  %v2951 = vld [vmem:[%s2938 + $0x30] sm:$0xf]
  %v2952 = vld [vmem:[%s2938 + $0x34] sm:$0xf]
  %v2953 = vld [vmem:[%s2938 + $0x38] sm:$0xf]
  %v2954 = vld [vmem:[%s2938 + $0x3c] sm:$0xf]
  %v2955 = vld [vmem:[%s2938 + $0x40] sm:$0xf]
  %v2956 = vld [vmem:[%s2938 + $0x44] sm:$0xf]
  %v2957 = vld [vmem:[%s2938 + $0x48] sm:$0xf]
  %v2958 = vld [vmem:[%s2938 + $0x4c] sm:$0xf]
  %v2959 = vld [vmem:[%s2938 + $0x50] sm:$0xf]
  %v2960 = vld [vmem:[%s2938 + $0x54] sm:$0xf]
  %v2961 = vld [vmem:[%s2938 + $0x58] sm:$0xf]
  %v2962 = vld [vmem:[%s2938 + $0x5c] sm:$0xf]
  %v2963 = vld [vmem:[%s2938 + $0x60] sm:$0xf]
  %v2964 = vld [vmem:[%s2938 + $0x64] sm:$0xf]
  %v2965 = vld [vmem:[%s2938 + $0x68] sm:$0xf]
  %v2966 = vld [vmem:[%s2938 + $0x6c] sm:$0xf]
  %v2967 = vld [vmem:[%s2938 + $0x70] sm:$0xf]
  %v2968 = vld [vmem:[%s2938 + $0x74] sm:$0xf]
  %v2969 = vld [vmem:[%s2938 + $0x78] sm:$0xf]
  %v2970 = vld [vmem:[%s2938 + $0x7c] sm:$0xf]
  %v3003 = vunpack.c.l.b16 %v2939
  %v3004 = vunpack.c.l.b16 %v2940
  %v3005 = vunpack.c.l.b16 %v2941
  %v3006 = vunpack.c.l.b16 %v2942
  %v3007 = vunpack.c.l.b16 %v2943
  %v3008 = vunpack.c.l.b16 %v2944
  %v3009 = vunpack.c.l.b16 %v2945
  %v3010 = vunpack.c.l.b16 %v2946
  %v3011 = vunpack.c.l.b16 %v2947
  %v3012 = vunpack.c.l.b16 %v2948
  %v3013 = vunpack.c.l.b16 %v2949
  %v3014 = vunpack.c.l.b16 %v2950
  %v3015 = vunpack.c.l.b16 %v2951
  %v3016 = vunpack.c.l.b16 %v2952
  %v3017 = vunpack.c.l.b16 %v2953
  %v3018 = vunpack.c.l.b16 %v2954
  %v3019 = vunpack.c.l.b16 %v2955
  %v3020 = vunpack.c.l.b16 %v2956
  %v3021 = vunpack.c.l.b16 %v2957
  %v3022 = vunpack.c.l.b16 %v2958
  %v3023 = vunpack.c.l.b16 %v2959
  %v3024 = vunpack.c.l.b16 %v2960
  %v3025 = vunpack.c.l.b16 %v2961
  %v3026 = vunpack.c.l.b16 %v2962
  %v3027 = vunpack.c.l.b16 %v2963
  %v3028 = vunpack.c.l.b16 %v2964
  %v3029 = vunpack.c.l.b16 %v2965
  %v3030 = vunpack.c.l.b16 %v2966
  %v3031 = vunpack.c.l.b16 %v2967
  %v3032 = vunpack.c.l.b16 %v2968
  %v3033 = vunpack.c.l.b16 %v2969
  %v3034 = vunpack.c.l.b16 %v2970
  %v3035 = vpack.c.b16 %v3004, %v3003
  %v3036 = vpack.c.b16 %v3006, %v3005
  %v3037 = vpack.c.b16 %v3008, %v3007
  %v3038 = vpack.c.b16 %v3010, %v3009
  %v3039 = vpack.c.b16 %v3012, %v3011
  %v3040 = vpack.c.b16 %v3014, %v3013
  %v3041 = vpack.c.b16 %v3016, %v3015
  %v3042 = vpack.c.b16 %v3018, %v3017
  %v3043 = vpack.c.b16 %v3020, %v3019
  %v3044 = vpack.c.b16 %v3022, %v3021
  %v3045 = vpack.c.b16 %v3024, %v3023
  %v3046 = vpack.c.b16 %v3026, %v3025
  %v3047 = vpack.c.b16 %v3028, %v3027
  %v3048 = vpack.c.b16 %v3030, %v3029
  %v3049 = vpack.c.b16 %v3032, %v3031
  %v3050 = vpack.c.b16 %v3034, %v3033
  %3067 = vmatprep.subr.bf16.mxu0 0
  %3068 = vmatpush1.bf16.msra.mxu0 %v3042
  %3069 = vmatprep.subr.bf16.mxu0 0
  %3070 = vmatpush1.bf16.msra.mxu0 %v3041
  %3071 = vmatprep.subr.bf16.mxu0 0
  %3072 = vmatpush1.bf16.msra.mxu0 %v3040
  %3073 = vmatprep.subr.bf16.mxu0 0
  %3074 = vmatpush1.bf16.msra.mxu0 %v3039
  %3075 = vmatprep.subr.bf16.mxu0 0
  %3076 = vmatpush1.bf16.msra.mxu0 %v3038
  %3077 = vmatprep.subr.bf16.mxu0 0
  %3078 = vmatpush1.bf16.msra.mxu0 %v3037
  %3079 = vmatprep.subr.bf16.mxu0 0
  %3080 = vmatpush1.bf16.msra.mxu0 %v3036
  %3081 = vmatprep.subr.bf16.mxu0 0
  %3082 = vmatpush1.bf16.msra.mxu0 %v3035
  %3083 = vmatprep.subr.bf16.mxu0 0
  %3084 = vmatpush2.bf16.msra.mxu0 %v3050
  %3085 = vmatprep.subr.bf16.mxu0 0
  %3086 = vmatpush2.bf16.msra.mxu0 %v3049
  %3087 = vmatprep.subr.bf16.mxu0 0
  %3088 = vmatpush2.bf16.msra.mxu0 %v3048
  %3089 = vmatprep.subr.bf16.mxu0 0
  %3090 = vmatpush2.bf16.msra.mxu0 %v3047
  %3091 = vmatprep.subr.bf16.mxu0 0
  %3092 = vmatpush2.bf16.msra.mxu0 %v3046
  %3093 = vmatprep.subr.bf16.mxu0 0
  %3094 = vmatpush2.bf16.msra.mxu0 %v3045
  %3095 = vmatprep.subr.bf16.mxu0 0
  %3096 = vmatpush2.bf16.msra.mxu0 %v3044
  %3097 = vmatprep.subr.bf16.mxu0 0
  %3098 = vmatpush2.bf16.msra.mxu0 %v3043
  %3099 = vmatprep.mubr.bf16.mxu0 %v2937
  %3100 = vmatmul.mubr.bf16.gmra.mxu0 %v2936
  %v3101 = vpop.f32.mrf.mxu0
  %v3102 = vadd.f32 0.0, %v3101
  %v3103 = vpop.f32.mrf.mxu0
  %v3104 = vpop.f32.mrf.mxu0
  %v3105 = vadd.f32 0.0, %v3104
  %v3106 = vpop.f32.mrf.mxu0
  %3107 = vdwg.mxu0
  %v3108 = vadd.f32 %v2876, %v3102
  %v3109 = vadd.f32 %v2879, %v3105
  %v3110 = vld [vmem:[%s5] sm:$0x1]
  %v3112 = vlaneseq
  %v3113 = vshrl.u32 %v3112, 7
  %v3114 = vsub.s32 0, %v3113
  %v3115 = vrot.slane %v3110, %v3114
  %v3117 = vadd.f32 %v3108, %v3115
  %v3118 = vadd.f32 %v3109, %v3115
  %v3119 = vmax.f32 %v3117, 0.0
  %v3120 = vmax.f32 %v3118, 0.0
  %v3121 = vpack.c.bf16 %v3120, %v3119
  %v3122 = vld [vmem:[%s6] sm:$0x3]
  %vm3123 = vcmask 97280
  %v3125 = vsel %vm3123, %v3122, 0
  %vm3127 = vcmask 1045504
  %v3129 = vsel %vm3127, %v3121, 0
  %3131 = vmatprep.subr.bf16.mxu0 0
  %3132 = vmatpush1.bf16.msra.mxu0 0
  %3133 = vmatprep.subr.bf16.mxu0 0
  %3134 = vmatpush1.bf16.msra.mxu0 0
  %3135 = vmatprep.subr.bf16.mxu0 0
  %3136 = vmatpush1.bf16.msra.mxu0 0
  %3137 = vmatprep.subr.bf16.mxu0 0
  %3138 = vmatpush1.bf16.msra.mxu0 0
  %3139 = vmatprep.subr.bf16.mxu0 0
  %3140 = vmatpush1.bf16.msra.mxu0 0
  %3141 = vmatprep.subr.bf16.mxu0 0
  %3142 = vmatpush1.bf16.msra.mxu0 0
  %3143 = vmatprep.subr.bf16.mxu0 0
  %3144 = vmatpush1.bf16.msra.mxu0 0
  %3145 = vmatprep.subr.bf16.mxu0 0
  %3146 = vmatpush1.bf16.msra.mxu0 %v3129
  %3147 = vmatprep.subr.bf16.mxu0 0
  %3148 = vmatpush2.bf16.msra.mxu0 0
  %3149 = vmatprep.subr.bf16.mxu0 0
  %3150 = vmatpush2.bf16.msra.mxu0 0
  %3151 = vmatprep.subr.bf16.mxu0 0
  %3152 = vmatpush2.bf16.msra.mxu0 0
  %3153 = vmatprep.subr.bf16.mxu0 0
  %3154 = vmatpush2.bf16.msra.mxu0 0
  %3155 = vmatprep.subr.bf16.mxu0 0
  %3156 = vmatpush2.bf16.msra.mxu0 0
  %3157 = vmatprep.subr.bf16.mxu0 0
  %3158 = vmatpush2.bf16.msra.mxu0 0
  %3159 = vmatprep.subr.bf16.mxu0 0
  %3160 = vmatpush2.bf16.msra.mxu0 0
  %3161 = vmatprep.subr.bf16.mxu0 0
  %3162 = vmatpush2.bf16.msra.mxu0 0
  %3163 = vmatprep.mubr.bf16.mxu0 0
  %3164 = vmatmul.mubr.bf16.gmra.mxu0 %v3125
  %v3165 = vpop.f32.mrf.mxu0
  %v3166 = vadd.f32 0.0, %v3165
  %v3167 = vpop.f32.mrf.mxu0
  %v3168 = vpop.f32.mrf.mxu0
  %v3169 = vpop.f32.mrf.mxu0
  %3170 = vdwg.mxu0
  %v3171 = vpack.c.bf16 %v3166, %v3166
  %v3172 = vld [vmem:[%s7] sm:$0xf]
  %v3173 = vld [vmem:[%s7 + $0x4] sm:$0xf]
  %v3174 = vld [vmem:[%s7 + $0x8] sm:$0xf]
  %v3175 = vld [vmem:[%s7 + $0xc] sm:$0xf]
  %v3176 = vld [vmem:[%s7 + $0x10] sm:$0xf]
  %v3177 = vld [vmem:[%s7 + $0x14] sm:$0xf]
  %v3178 = vld [vmem:[%s7 + $0x18] sm:$0xf]
  %v3179 = vld [vmem:[%s7 + $0x1c] sm:$0xf]
  %v3180 = vld [vmem:[%s7 + $0x20] sm:$0xf]
  %v3181 = vld [vmem:[%s7 + $0x24] sm:$0xf]
  %v3182 = vld [vmem:[%s7 + $0x28] sm:$0xf]
  %v3183 = vld [vmem:[%s7 + $0x2c] sm:$0xf]
  %v3184 = vld [vmem:[%s7 + $0x30] sm:$0xf]
  %v3185 = vld [vmem:[%s7 + $0x34] sm:$0xf]
  %v3186 = vld [vmem:[%s7 + $0x38] sm:$0xf]
  %v3187 = vld [vmem:[%s7 + $0x3c] sm:$0xf]
  %s3188 = scalar_lea.vmem %s6, 2
  %v3189 = vld [vmem:[%s3188] sm:$0x3]
  %v3191 = vsel %vm3123, %v3189, 0
  %3193 = vmatprep.subr.bf16.mxu0 0
  %3194 = vmatpush1.bf16.msra.mxu0 0
  %3195 = vmatprep.subr.bf16.mxu0 0
  %3196 = vmatpush1.bf16.msra.mxu0 0
  %3197 = vmatprep.subr.bf16.mxu0 0
  %3198 = vmatpush1.bf16.msra.mxu0 0
  %3199 = vmatprep.subr.bf16.mxu0 0
  %3200 = vmatpush1.bf16.msra.mxu0 0
  %3201 = vmatprep.subr.bf16.mxu0 0
  %3202 = vmatpush1.bf16.msra.mxu0 0
  %3203 = vmatprep.subr.bf16.mxu0 0
  %3204 = vmatpush1.bf16.msra.mxu0 0
  %3205 = vmatprep.subr.bf16.mxu0 0
  %3206 = vmatpush1.bf16.msra.mxu0 0
  %3207 = vmatprep.subr.bf16.mxu0 0
  %3208 = vmatpush1.bf16.msra.mxu0 %v3129
  %3209 = vmatprep.subr.bf16.mxu0 0
  %3210 = vmatpush2.bf16.msra.mxu0 0
  %3211 = vmatprep.subr.bf16.mxu0 0
  %3212 = vmatpush2.bf16.msra.mxu0 0
  %3213 = vmatprep.subr.bf16.mxu0 0
  %3214 = vmatpush2.bf16.msra.mxu0 0
  %3215 = vmatprep.subr.bf16.mxu0 0
  %3216 = vmatpush2.bf16.msra.mxu0 0
  %3217 = vmatprep.subr.bf16.mxu0 0
  %3218 = vmatpush2.bf16.msra.mxu0 0
  %3219 = vmatprep.subr.bf16.mxu0 0
  %3220 = vmatpush2.bf16.msra.mxu0 0
  %3221 = vmatprep.subr.bf16.mxu0 0
  %3222 = vmatpush2.bf16.msra.mxu0 0
  %3223 = vmatprep.subr.bf16.mxu0 0
  %3224 = vmatpush2.bf16.msra.mxu0 0
  %3225 = vmatprep.mubr.bf16.mxu0 0
  %3226 = vmatmul.mubr.bf16.gmra.mxu0 %v3191
  %v3227 = vpop.f32.mrf.mxu0
  %v3228 = vadd.f32 0.0, %v3227
  %v3229 = vpop.f32.mrf.mxu0
  %v3230 = vpop.f32.mrf.mxu0
  %v3231 = vpop.f32.mrf.mxu0
  %3232 = vdwg.mxu0
  %v3233 = vpack.c.bf16 %v3228, %v3228
  %s3234 = scalar_lea.vmem %s7, 64
  %v3235 = vld [vmem:[%s3234] sm:$0xf]
  %v3236 = vld [vmem:[%s3234 + $0x4] sm:$0xf]
  %v3237 = vld [vmem:[%s3234 + $0x8] sm:$0xf]
  %v3238 = vld [vmem:[%s3234 + $0xc] sm:$0xf]
  %v3239 = vld [vmem:[%s3234 + $0x10] sm:$0xf]
  %v3240 = vld [vmem:[%s3234 + $0x14] sm:$0xf]
  %v3241 = vld [vmem:[%s3234 + $0x18] sm:$0xf]
  %v3242 = vld [vmem:[%s3234 + $0x1c] sm:$0xf]
  %v3243 = vld [vmem:[%s3234 + $0x20] sm:$0xf]
  %v3244 = vld [vmem:[%s3234 + $0x24] sm:$0xf]
  %v3245 = vld [vmem:[%s3234 + $0x28] sm:$0xf]
  %v3246 = vld [vmem:[%s3234 + $0x2c] sm:$0xf]
  %v3247 = vld [vmem:[%s3234 + $0x30] sm:$0xf]
  %v3248 = vld [vmem:[%s3234 + $0x34] sm:$0xf]
  %v3249 = vld [vmem:[%s3234 + $0x38] sm:$0xf]
  %v3250 = vld [vmem:[%s3234 + $0x3c] sm:$0xf]
  %v3267 = vunpack.c.l.b16 %v3235
  %v3268 = vunpack.c.l.b16 %v3236
  %v3269 = vunpack.c.l.b16 %v3237
  %v3270 = vunpack.c.l.b16 %v3238
  %v3271 = vunpack.c.l.b16 %v3239
  %v3272 = vunpack.c.l.b16 %v3240
  %v3273 = vunpack.c.l.b16 %v3241
  %v3274 = vunpack.c.l.b16 %v3242
  %v3275 = vunpack.c.l.b16 %v3243
  %v3276 = vunpack.c.l.b16 %v3244
  %v3277 = vunpack.c.l.b16 %v3245
  %v3278 = vunpack.c.l.b16 %v3246
  %v3279 = vunpack.c.l.b16 %v3247
  %v3280 = vunpack.c.l.b16 %v3248
  %v3281 = vunpack.c.l.b16 %v3249
  %v3282 = vunpack.c.l.b16 %v3250
  %v3283 = vpack.c.b16 %v3268, %v3267
  %v3284 = vpack.c.b16 %v3270, %v3269
  %v3285 = vpack.c.b16 %v3272, %v3271
  %v3286 = vpack.c.b16 %v3274, %v3273
  %v3287 = vpack.c.b16 %v3276, %v3275
  %v3288 = vpack.c.b16 %v3278, %v3277
  %v3289 = vpack.c.b16 %v3280, %v3279
  %v3290 = vpack.c.b16 %v3282, %v3281
  %3299 = vmatprep.subr.bf16.mxu0 0
  %3300 = vmatpush1.bf16.msra.mxu0 %v3290
  %3301 = vmatprep.subr.bf16.mxu0 0
  %3302 = vmatpush1.bf16.msra.mxu0 %v3289
  %3303 = vmatprep.subr.bf16.mxu0 0
  %3304 = vmatpush1.bf16.msra.mxu0 %v3288
  %3305 = vmatprep.subr.bf16.mxu0 0
  %3306 = vmatpush1.bf16.msra.mxu0 %v3287
  %3307 = vmatprep.subr.bf16.mxu0 0
  %3308 = vmatpush1.bf16.msra.mxu0 %v3286
  %3309 = vmatprep.subr.bf16.mxu0 0
  %3310 = vmatpush1.bf16.msra.mxu0 %v3285
  %3311 = vmatprep.subr.bf16.mxu0 0
  %3312 = vmatpush1.bf16.msra.mxu0 %v3284
  %3313 = vmatprep.subr.bf16.mxu0 0
  %3314 = vmatpush1.bf16.msra.mxu0 %v3283
  %3315 = vmatprep.subr.bf16.mxu0 0
  %3316 = vmatpush2.bf16.msra.mxu0 0
  %3317 = vmatprep.subr.bf16.mxu0 0
  %3318 = vmatpush2.bf16.msra.mxu0 0
  %3319 = vmatprep.subr.bf16.mxu0 0
  %3320 = vmatpush2.bf16.msra.mxu0 0
  %3321 = vmatprep.subr.bf16.mxu0 0
  %3322 = vmatpush2.bf16.msra.mxu0 0
  %3323 = vmatprep.subr.bf16.mxu0 0
  %3324 = vmatpush2.bf16.msra.mxu0 0
  %3325 = vmatprep.subr.bf16.mxu0 0
  %3326 = vmatpush2.bf16.msra.mxu0 0
  %3327 = vmatprep.subr.bf16.mxu0 0
  %3328 = vmatpush2.bf16.msra.mxu0 0
  %3329 = vmatprep.subr.bf16.mxu0 0
  %3330 = vmatpush2.bf16.msra.mxu0 0
  %3331 = vmatprep.mubr.bf16.mxu0 0
  %3332 = vmatmul.mubr.bf16.gmra.mxu0 %v3233
  %v3333 = vpop.f32.mrf.mxu0
  %v3334 = vadd.f32 0.0, %v3333
  %v3335 = vpop.f32.mrf.mxu0
  %v3336 = vpop.f32.mrf.mxu0
  %v3337 = vpop.f32.mrf.mxu0
  %3338 = vdwg.mxu0
  %v3355 = vunpack.c.l.b16 %v3172
  %v3356 = vunpack.c.l.b16 %v3173
  %v3357 = vunpack.c.l.b16 %v3174
  %v3358 = vunpack.c.l.b16 %v3175
  %v3359 = vunpack.c.l.b16 %v3176
  %v3360 = vunpack.c.l.b16 %v3177
  %v3361 = vunpack.c.l.b16 %v3178
  %v3362 = vunpack.c.l.b16 %v3179
  %v3363 = vunpack.c.l.b16 %v3180
  %v3364 = vunpack.c.l.b16 %v3181
  %v3365 = vunpack.c.l.b16 %v3182
  %v3366 = vunpack.c.l.b16 %v3183
  %v3367 = vunpack.c.l.b16 %v3184
  %v3368 = vunpack.c.l.b16 %v3185
  %v3369 = vunpack.c.l.b16 %v3186
  %v3370 = vunpack.c.l.b16 %v3187
  %v3371 = vpack.c.b16 %v3356, %v3355
  %v3372 = vpack.c.b16 %v3358, %v3357
  %v3373 = vpack.c.b16 %v3360, %v3359
  %v3374 = vpack.c.b16 %v3362, %v3361
  %v3375 = vpack.c.b16 %v3364, %v3363
  %v3376 = vpack.c.b16 %v3366, %v3365
  %v3377 = vpack.c.b16 %v3368, %v3367
  %v3378 = vpack.c.b16 %v3370, %v3369
  %3387 = vmatprep.subr.bf16.mxu0 0
  %3388 = vmatpush1.bf16.msra.mxu0 %v3378
  %3389 = vmatprep.subr.bf16.mxu0 0
  %3390 = vmatpush1.bf16.msra.mxu0 %v3377
  %3391 = vmatprep.subr.bf16.mxu0 0
  %3392 = vmatpush1.bf16.msra.mxu0 %v3376
  %3393 = vmatprep.subr.bf16.mxu0 0
  %3394 = vmatpush1.bf16.msra.mxu0 %v3375
  %3395 = vmatprep.subr.bf16.mxu0 0
  %3396 = vmatpush1.bf16.msra.mxu0 %v3374
  %3397 = vmatprep.subr.bf16.mxu0 0
  %3398 = vmatpush1.bf16.msra.mxu0 %v3373
  %3399 = vmatprep.subr.bf16.mxu0 0
  %3400 = vmatpush1.bf16.msra.mxu0 %v3372
  %3401 = vmatprep.subr.bf16.mxu0 0
  %3402 = vmatpush1.bf16.msra.mxu0 %v3371
  %3403 = vmatprep.subr.bf16.mxu0 0
  %3404 = vmatpush2.bf16.msra.mxu0 0
  %3405 = vmatprep.subr.bf16.mxu0 0
  %3406 = vmatpush2.bf16.msra.mxu0 0
  %3407 = vmatprep.subr.bf16.mxu0 0
  %3408 = vmatpush2.bf16.msra.mxu0 0
  %3409 = vmatprep.subr.bf16.mxu0 0
  %3410 = vmatpush2.bf16.msra.mxu0 0
  %3411 = vmatprep.subr.bf16.mxu0 0
  %3412 = vmatpush2.bf16.msra.mxu0 0
  %3413 = vmatprep.subr.bf16.mxu0 0
  %3414 = vmatpush2.bf16.msra.mxu0 0
  %3415 = vmatprep.subr.bf16.mxu0 0
  %3416 = vmatpush2.bf16.msra.mxu0 0
  %3417 = vmatprep.subr.bf16.mxu0 0
  %3418 = vmatpush2.bf16.msra.mxu0 0
  %3419 = vmatprep.mubr.bf16.mxu0 0
  %3420 = vmatmul.mubr.bf16.gmra.mxu0 %v3171
  %v3421 = vpop.f32.mrf.mxu0
  %v3422 = vadd.f32 %v3334, %v3421
  %v3423 = vpop.f32.mrf.mxu0
  %v3424 = vpop.f32.mrf.mxu0
  %v3425 = vpop.f32.mrf.mxu0
  %3426 = vdwg.mxu0
  %s3427 = scalar_lea.vmem %s6, 4
  %v3428 = vld [vmem:[%s3427] sm:$0x3]
  %v3430 = vsel %vm3123, %v3428, 0
  %3432 = vmatprep.subr.bf16.mxu0 0
  %3433 = vmatpush1.bf16.msra.mxu0 0
  %3434 = vmatprep.subr.bf16.mxu0 0
  %3435 = vmatpush1.bf16.msra.mxu0 0
  %3436 = vmatprep.subr.bf16.mxu0 0
  %3437 = vmatpush1.bf16.msra.mxu0 0
  %3438 = vmatprep.subr.bf16.mxu0 0
  %3439 = vmatpush1.bf16.msra.mxu0 0
  %3440 = vmatprep.subr.bf16.mxu0 0
  %3441 = vmatpush1.bf16.msra.mxu0 0
  %3442 = vmatprep.subr.bf16.mxu0 0
  %3443 = vmatpush1.bf16.msra.mxu0 0
  %3444 = vmatprep.subr.bf16.mxu0 0
  %3445 = vmatpush1.bf16.msra.mxu0 0
  %3446 = vmatprep.subr.bf16.mxu0 0
  %3447 = vmatpush1.bf16.msra.mxu0 %v3129
  %3448 = vmatprep.subr.bf16.mxu0 0
  %3449 = vmatpush2.bf16.msra.mxu0 0
  %3450 = vmatprep.subr.bf16.mxu0 0
  %3451 = vmatpush2.bf16.msra.mxu0 0
  %3452 = vmatprep.subr.bf16.mxu0 0
  %3453 = vmatpush2.bf16.msra.mxu0 0
  %3454 = vmatprep.subr.bf16.mxu0 0
  %3455 = vmatpush2.bf16.msra.mxu0 0
  %3456 = vmatprep.subr.bf16.mxu0 0
  %3457 = vmatpush2.bf16.msra.mxu0 0
  %3458 = vmatprep.subr.bf16.mxu0 0
  %3459 = vmatpush2.bf16.msra.mxu0 0
  %3460 = vmatprep.subr.bf16.mxu0 0
  %3461 = vmatpush2.bf16.msra.mxu0 0
  %3462 = vmatprep.subr.bf16.mxu0 0
  %3463 = vmatpush2.bf16.msra.mxu0 0
  %3464 = vmatprep.mubr.bf16.mxu0 0
  %3465 = vmatmul.mubr.bf16.gmra.mxu0 %v3430
  %v3466 = vpop.f32.mrf.mxu0
  %v3467 = vadd.f32 0.0, %v3466
  %v3468 = vpop.f32.mrf.mxu0
  %v3469 = vpop.f32.mrf.mxu0
  %v3470 = vpop.f32.mrf.mxu0
  %3471 = vdwg.mxu0
  %v3472 = vpack.c.bf16 %v3467, %v3467
  %s3473 = scalar_lea.vmem %s7, 128
  %v3474 = vld [vmem:[%s3473] sm:$0xf]
  %v3475 = vld [vmem:[%s3473 + $0x4] sm:$0xf]
  %v3476 = vld [vmem:[%s3473 + $0x8] sm:$0xf]
  %v3477 = vld [vmem:[%s3473 + $0xc] sm:$0xf]
  %v3478 = vld [vmem:[%s3473 + $0x10] sm:$0xf]
  %v3479 = vld [vmem:[%s3473 + $0x14] sm:$0xf]
  %v3480 = vld [vmem:[%s3473 + $0x18] sm:$0xf]
  %v3481 = vld [vmem:[%s3473 + $0x1c] sm:$0xf]
  %v3482 = vld [vmem:[%s3473 + $0x20] sm:$0xf]
  %v3483 = vld [vmem:[%s3473 + $0x24] sm:$0xf]
  %v3484 = vld [vmem:[%s3473 + $0x28] sm:$0xf]
  %v3485 = vld [vmem:[%s3473 + $0x2c] sm:$0xf]
  %v3486 = vld [vmem:[%s3473 + $0x30] sm:$0xf]
  %v3487 = vld [vmem:[%s3473 + $0x34] sm:$0xf]
  %v3488 = vld [vmem:[%s3473 + $0x38] sm:$0xf]
  %v3489 = vld [vmem:[%s3473 + $0x3c] sm:$0xf]
  %v3506 = vunpack.c.l.b16 %v3474
  %v3507 = vunpack.c.l.b16 %v3475
  %v3508 = vunpack.c.l.b16 %v3476
  %v3509 = vunpack.c.l.b16 %v3477
  %v3510 = vunpack.c.l.b16 %v3478
  %v3511 = vunpack.c.l.b16 %v3479
  %v3512 = vunpack.c.l.b16 %v3480
  %v3513 = vunpack.c.l.b16 %v3481
  %v3514 = vunpack.c.l.b16 %v3482
  %v3515 = vunpack.c.l.b16 %v3483
  %v3516 = vunpack.c.l.b16 %v3484
  %v3517 = vunpack.c.l.b16 %v3485
  %v3518 = vunpack.c.l.b16 %v3486
  %v3519 = vunpack.c.l.b16 %v3487
  %v3520 = vunpack.c.l.b16 %v3488
  %v3521 = vunpack.c.l.b16 %v3489
  %v3522 = vpack.c.b16 %v3507, %v3506
  %v3523 = vpack.c.b16 %v3509, %v3508
  %v3524 = vpack.c.b16 %v3511, %v3510
  %v3525 = vpack.c.b16 %v3513, %v3512
  %v3526 = vpack.c.b16 %v3515, %v3514
  %v3527 = vpack.c.b16 %v3517, %v3516
  %v3528 = vpack.c.b16 %v3519, %v3518
  %v3529 = vpack.c.b16 %v3521, %v3520
  %3538 = vmatprep.subr.bf16.mxu0 0
  %3539 = vmatpush1.bf16.msra.mxu0 %v3529
  %3540 = vmatprep.subr.bf16.mxu0 0
  %3541 = vmatpush1.bf16.msra.mxu0 %v3528
  %3542 = vmatprep.subr.bf16.mxu0 0
  %3543 = vmatpush1.bf16.msra.mxu0 %v3527
  %3544 = vmatprep.subr.bf16.mxu0 0
  %3545 = vmatpush1.bf16.msra.mxu0 %v3526
  %3546 = vmatprep.subr.bf16.mxu0 0
  %3547 = vmatpush1.bf16.msra.mxu0 %v3525
  %3548 = vmatprep.subr.bf16.mxu0 0
  %3549 = vmatpush1.bf16.msra.mxu0 %v3524
  %3550 = vmatprep.subr.bf16.mxu0 0
  %3551 = vmatpush1.bf16.msra.mxu0 %v3523
  %3552 = vmatprep.subr.bf16.mxu0 0
  %3553 = vmatpush1.bf16.msra.mxu0 %v3522
  %3554 = vmatprep.subr.bf16.mxu0 0
  %3555 = vmatpush2.bf16.msra.mxu0 0
  %3556 = vmatprep.subr.bf16.mxu0 0
  %3557 = vmatpush2.bf16.msra.mxu0 0
  %3558 = vmatprep.subr.bf16.mxu0 0
  %3559 = vmatpush2.bf16.msra.mxu0 0
  %3560 = vmatprep.subr.bf16.mxu0 0
  %3561 = vmatpush2.bf16.msra.mxu0 0
  %3562 = vmatprep.subr.bf16.mxu0 0
  %3563 = vmatpush2.bf16.msra.mxu0 0
  %3564 = vmatprep.subr.bf16.mxu0 0
  %3565 = vmatpush2.bf16.msra.mxu0 0
  %3566 = vmatprep.subr.bf16.mxu0 0
  %3567 = vmatpush2.bf16.msra.mxu0 0
  %3568 = vmatprep.subr.bf16.mxu0 0
  %3569 = vmatpush2.bf16.msra.mxu0 0
  %3570 = vmatprep.mubr.bf16.mxu0 0
  %3571 = vmatmul.mubr.bf16.gmra.mxu0 %v3472
  %v3572 = vpop.f32.mrf.mxu0
  %v3573 = vadd.f32 0.0, %v3572
  %v3574 = vpop.f32.mrf.mxu0
  %v3575 = vpop.f32.mrf.mxu0
  %v3576 = vpop.f32.mrf.mxu0
  %3577 = vdwg.mxu0
  %v3578 = vadd.f32 %v3422, %v3573
  %v3579 = vld [vmem:[%s8] sm:$0x1]
  %v3581 = vlaneseq
  %v3582 = vshrl.u32 %v3581, 7
  %v3583 = vsub.s32 0, %v3582
  %v3584 = vrot.slane %v3579, %v3583
  %v3586 = vadd.f32 %v3578, %v3584
  %v3587 = vmax.f32 %v3586, 0.0
  %3588 = vst [vmem:[%s9] sm:$0xf] %v3587
  // Predicated region
  $region38: #{downsampling_convnet_forward.1} parent=0 // pred_check
    _
  $region39: #{downsampling_convnet_forward.1} parent=0 // pred_check_branch
    %3590 = sbr.rel (0) target = $region41
  $region40: #{downsampling_convnet_forward.1} parent=0 // pred_region
    _
  $region41: #{downsampling_convnet_forward.1} parent=0 // pred_fallthru
    _
  // Predicated region
  $region42: #{downsampling_convnet_forward.1} parent=0 // pred_check
    _
  $region43: #{downsampling_convnet_forward.1} parent=0 // pred_check_branch
    %3592 = sbr.rel (0) target = $region45
  $region44: #{downsampling_convnet_forward.1} parent=0 // pred_region
    _
  $region45: #{downsampling_convnet_forward.1} parent=0 // pred_fallthru
    _

</llo_original>
